<compile_context>
chip_gen: v7x
topology: tpu7x:2x2x1
jax: 0.10.0
libtpu: 0.0.40
codegen_flags: <defaults>
</compile_context>

<pallas_src>
import numpy as np
import jax
import jax.numpy as jnp
from jax import lax
from jax.experimental import pallas as pl
from jax.experimental.pallas import tpu as pltpu


def _make_fused_kernel(Cmid, Cout, K2, B, PB, L2):
    """Kernel closure over the static geometry of the two convolutions."""
    KK = K2 * K2

    def kernel(p1_ref, w1_ref, w2_ref, o_ref):
        # p1: (K1*K1*Cin + 1, 4*PB)  phase-split conv1 im2col; last row = validity mask,
        #                            per-phase lane pitch PB, spatial (a,b) flattened
        #                            on lanes with row pitch B.
        # w1: (Cmid, K1*K1*Cin + 1)  conv1 weights with b1 as the last column.
        # w2: (Cout, K2*K2*Cmid + 1) per-tap conv2 weights, column order
        #                            (kh*K2+kw)*Cmid + cm, with b2 as the last column.
        # o:  (Cout, L2)             lane-dense output, L2 = H2*B (2 junk cols per row).

        # conv1 (+bias, +conv2 zero-pad-ring mask) as one lane-dense matmul.
        v1 = jnp.dot(w1_ref[...], p1_ref[...],
                     preferred_element_type=jnp.float32)            # (Cmid, 4*PB)

        w2a = w2_ref[...]                                            # (Cout, KK*Cmid+1)
        # Initialize the accumulator with b2 broadcast over the lane-dense output.
        acc = jnp.broadcast_to(w2a[:, KK * Cmid:KK * Cmid + 1], (Cout, L2))

        # conv2: every stride-2 tap is a contiguous static lane slice of v1 (same
        # row pitch B as the accumulator), contracted with a (Cout, Cmid) tap weight.
        for kh in range(K2):
            for kw in range(K2):
                p = (kh % 2) * 2 + (kw % 2)                          # conv1 phase
                start = p * PB + (kh // 2) * B + (kw // 2)           # static offset
                slab = v1[:, start:start + L2]                       # (Cmid, L2)
                t = kh * K2 + kw
                w2t = w2a[:, t * Cmid:(t + 1) * Cmid]                # (Cout, Cmid)
                acc = acc + jnp.dot(w2t, slab,
                                    preferred_element_type=jnp.float32)
        o_ref[...] = acc

    return kernel


def _phase_masks(H1, W1, P2, A, B):
    """Static 0/1 validity rows (1, A*B) of conv1 outputs, one per phase (ph, pw)."""
    rows = []
    for ph in (0, 1):
        for pw in (0, 1):
            h1 = 2 * np.arange(A) + ph - P2
            w1 = 2 * np.arange(B) + pw - P2
            m = (((h1 >= 0) & (h1 < H1))[:, None]
                 & ((w1 >= 0) & (w1 < W1))[None, :])
            rows.append(jnp.asarray(m.astype(np.float32).reshape(1, A * B)))
    return rows


def _phase_split_patches(x_chw, K1, S1, P1, P2, A, B, PB, mask_rows):
    """Augmented phase-split conv1 im2col: (K1*K1*Cin + 1, 4*PB).

    Column p*PB + a*B + b (phase p = ph*2+pw) holds the conv1 input patch feeding
    conv1-output position (h1, w1) = (2a+ph-P2, 2b+pw-P2) (all-zero when OOB), with
    the extra last row = 1.0 on valid conv1 outputs / 0.0 on conv2's pad ring.
    No transposes: taps stacked tap-major match w1's (kh*K1+kw)*Cin + cin layout.
    """
    Cin, H, W = x_chw.shape
    padL = S1 * P2 + P1
    stride = 2 * S1
    need_h = stride * (A - 1) + S1 + (K1 - 1) + 1
    need_w = stride * (B - 1) + S1 + (K1 - 1) + 1
    xp = jnp.pad(x_chw, ((0, 0),
                         (padL, max(0, need_h - padL - H)),
                         (padL, max(0, need_w - padL - W))))
    blocks = []
    for ph in (0, 1):
        for pw in (0, 1):
            taps = []
            for i in range(K1):
                for j in range(K1):
                    h0 = S1 * ph + i
                    w0 = S1 * pw + j
                    taps.append(lax.slice(
                        xp, (0, h0, w0),
                        (Cin, h0 + stride * (A - 1) + 1, w0 + stride * (B - 1) + 1),
                        (1, stride, stride)))                        # (Cin, A, B)
            blk = jnp.stack(taps, axis=0).reshape(K1 * K1 * Cin, A * B)
            blk = jnp.concatenate([blk, mask_rows[ph * 2 + pw]], axis=0)  # (+mask row)
            blk = jnp.pad(blk, ((0, 0), (0, PB - A * B)))            # lane pad to pitch
            blocks.append(blk)
    return jnp.concatenate(blocks, axis=1)                           # (37, 4*PB)


def fused_double_conv(x_nchw, w1, b1, w2, b2):
    """Conv2d(4,4,3,s=2,p=2) -> Conv2d(4,4,5,s=2,p=5), fused into one pallas_call."""
    S1, P1 = 2, 2
    S2, P2 = 2, 5
    N, Cin, H, W = x_nchw.shape
    Cmid, _, K1, _ = w1.shape
    Cout, _, K2, _ = w2.shape
    H1 = (H + 2 * P1 - K1) // S1 + 1
    W1 = (W + 2 * P1 - K1) // S1 + 1
    H2 = (H1 + 2 * P2 - K2) // S2 + 1
    W2 = (W1 + 2 * P2 - K2) // S2 + 1
    assert S1 == 2 and S2 == 2 and (H1 + 2 * P2) % 2 == 0 and (W1 + 2 * P2) % 2 == 0
    A = (H1 + 2 * P2) // 2          # per-phase rows of the conv2-padded conv1 grid
    B = (W1 + 2 * P2) // 2          # per-phase cols
    L2 = H2 * B                     # lane-dense output pitch (keeps conv1's B stride)
    max_off = (K2 // 2) * B + (K2 // 2)
    PB = max_off + L2               # per-phase lane pitch so every tap slice is in-bounds
    assert PB >= A * B

    # Lane-dense, fully folded weight layouts (bias columns appended).
    w1_aug = jnp.concatenate(
        [jnp.transpose(w1, (0, 2, 3, 1)).reshape(Cmid, K1 * K1 * Cin),
         b1.reshape(Cmid, 1)], axis=1)                               # (4, 37)
    w2_aug = jnp.concatenate(
        [jnp.transpose(w2, (0, 2, 3, 1)).reshape(Cout, K2 * K2 * Cmid),
         b2.reshape(Cout, 1)], axis=1)                               # (4, 101)
    mask_rows = _phase_masks(H1, W1, P2, A, B)

    flops = 2 * (Cmid * (K1 * K1 * Cin + 1) * 4 * PB
                 + K2 * K2 * Cout * Cmid * L2)
    bytes_accessed = 4 * ((K1 * K1 * Cin + 1) * 4 * PB
                          + Cmid * (K1 * K1 * Cin + 1)
                          + Cout * (K2 * K2 * Cmid + 1)
                          + Cout * L2)

    call = pl.pallas_call(
        _make_fused_kernel(Cmid, Cout, K2, B, PB, L2),
        out_shape=jax.ShapeDtypeStruct((Cout, L2), jnp.float32),
        in_specs=[pl.BlockSpec(memory_space=pltpu.MemorySpace.VMEM)] * 3,
        out_specs=pl.BlockSpec(memory_space=pltpu.MemorySpace.VMEM),
        cost_estimate=pl.CostEstimate(flops=flops, transcendentals=0,
                                      bytes_accessed=bytes_accessed),
    )

    outs = []
    for n in range(N):   # N == 1 for this module; the loop folds away under jit.
        # TODO(synk): if N ever grows, fold it into a leading "parallel" grid axis
        # instead of separate pallas_calls (v7x megacore).
        p1 = _phase_split_patches(x_nchw[n], K1, S1, P1, P2, A, B, PB, mask_rows)
        o = call(p1, w1_aug, w2_aug)                       # (Cout, H2*B) lane-dense
        outs.append(o.reshape(Cout, H2, B)[:, :, :W2])     # drop pitch-junk columns
    return jnp.stack(outs, axis=0)                         # (N, Cout, H2, W2)


@jax.jit
def model_forward(x1, params):
    w1, b1, w2, b2 = params
    return fused_double_conv(x1, w1, b1, w2, b2)


def _torch_like_conv_init(key, cout, cin, k):
    # torch.nn.Conv2d default: U(-1/sqrt(fan_in), 1/sqrt(fan_in)), fan_in = cin*k*k
    kw_, kb_ = jax.random.split(key)
    bound = 1.0 / np.sqrt(cin * k * k)
    w = jax.random.uniform(kw_, (cout, cin, k, k), jnp.float32, -bound, bound)
    b = jax.random.uniform(kb_, (cout,), jnp.float32, -bound, bound)
    return w, b


if __name__ == "__main__":
    key = jax.random.PRNGKey(0)
    k1, k2, kx = jax.random.split(key, 3)

    w1, b1 = _torch_like_conv_init(k1, 4, 4, 3)   # conv1: Conv2d(4, 4, 3, stride=2, padding=2)
    w2, b2 = _torch_like_conv_init(k2, 4, 4, 5)   # conv2: Conv2d(4, 4, 5, stride=2, padding=5)
    x1 = jax.random.normal(kx, (1, 4, 45, 53), jnp.float32)

    out = model_forward(x1, (w1, b1, w2, b2))
    out = jax.block_until_ready(out)
    assert out.shape == (1, 4, 15, 17), out.shape

    # Reference check against XLA convs (same semantics as the torch module).
    ref1 = lax.conv_general_dilated(
        x1, w1, (2, 2), [(2, 2), (2, 2)],
        dimension_numbers=("NCHW", "OIHW", "NCHW")) + b1.reshape(1, -1, 1, 1)
    ref2 = lax.conv_general_dilated(
        ref1, w2, (2, 2), [(5, 5), (5, 5)],
        dimension_numbers=("NCHW", "OIHW", "NCHW")) + b2.reshape(1, -1, 1, 1)
    np.testing.assert_allclose(np.asarray(out), np.asarray(ref2), rtol=1e-4, atol=1e-4)

    print("KERNEL_OK")
</pallas_src>

<mosaic_0001>
module attributes {stable_mosaic.version = 11 : i64} {
  func.func @kernel(%arg0: memref<37x1300xf32, #tpu.memory_space<vmem>>, %arg1: memref<4x37xf32, #tpu.memory_space<vmem>>, %arg2: memref<4x101xf32, #tpu.memory_space<vmem>>, %arg3: memref<4x285xf32, #tpu.memory_space<vmem>>) attributes {dimension_semantics = [], scalar_prefetch = 0 : i64, scratch_operands = 0 : i64, tpu.core_type = #tpu.core_type<tc>} {
    %c0 = arith.constant 0 : index
    %c0_0 = arith.constant 0 : index
    %0 = vector.load %arg1[%c0, %c0_0] : memref<4x37xf32, #tpu.memory_space<vmem>>, vector<4x37xf32>
    %c0_1 = arith.constant 0 : index
    %c0_2 = arith.constant 0 : index
    %1 = vector.load %arg0[%c0_1, %c0_2] : memref<37x1300xf32, #tpu.memory_space<vmem>>, vector<37x1300xf32>
    %cst = arith.constant dense<0.000000e+00> : vector<4x1300xf32>
    %2 = tpu.matmul %0, %1, %cst {dimension_numbers = #tpu.dot_dimension_numbers<[1], [0], [0], [1], [0, 0, 1, 1], [], []>} : vector<4x37xf32>, vector<37x1300xf32>, vector<4x1300xf32> -> vector<4x1300xf32>
    %c0_3 = arith.constant 0 : index
    %c0_4 = arith.constant 0 : index
    %3 = vector.load %arg2[%c0_3, %c0_4] : memref<4x101xf32, #tpu.memory_space<vmem>>, vector<4x101xf32>
    %4 = vector.extract_strided_slice %3 {offsets = [0, 100], sizes = [4, 1], strides = [1, 1]} : vector<4x101xf32> to vector<4x1xf32>
    %5 = vector.shape_cast %4 : vector<4x1xf32> to vector<4x1xf32>
    %6 = vector.broadcast %5 : vector<4x1xf32> to vector<4x285xf32>
    %7 = vector.extract_strided_slice %2 {offsets = [0, 0], sizes = [4, 285], strides = [1, 1]} : vector<4x1300xf32> to vector<4x285xf32>
    %8 = vector.extract_strided_slice %3 {offsets = [0, 0], sizes = [4, 4], strides = [1, 1]} : vector<4x101xf32> to vector<4x4xf32>
    %cst_5 = arith.constant dense<0.000000e+00> : vector<4x285xf32>
    %9 = tpu.matmul %8, %7, %cst_5 {dimension_numbers = #tpu.dot_dimension_numbers<[1], [0], [0], [1], [0, 0, 1, 1], [], []>} : vector<4x4xf32>, vector<4x285xf32>, vector<4x285xf32> -> vector<4x285xf32>
    %10 = arith.addf %6, %9 : vector<4x285xf32>
    %11 = vector.extract_strided_slice %2 {offsets = [0, 325], sizes = [4, 285], strides = [1, 1]} : vector<4x1300xf32> to vector<4x285xf32>
    %12 = vector.extract_strided_slice %3 {offsets = [0, 4], sizes = [4, 4], strides = [1, 1]} : vector<4x101xf32> to vector<4x4xf32>
    %cst_6 = arith.constant dense<0.000000e+00> : vector<4x285xf32>
    %13 = tpu.matmul %12, %11, %cst_6 {dimension_numbers = #tpu.dot_dimension_numbers<[1], [0], [0], [1], [0, 0, 1, 1], [], []>} : vector<4x4xf32>, vector<4x285xf32>, vector<4x285xf32> -> vector<4x285xf32>
    %14 = arith.addf %10, %13 : vector<4x285xf32>
    %15 = vector.extract_strided_slice %2 {offsets = [0, 1], sizes = [4, 285], strides = [1, 1]} : vector<4x1300xf32> to vector<4x285xf32>
    %16 = vector.extract_strided_slice %3 {offsets = [0, 8], sizes = [4, 4], strides = [1, 1]} : vector<4x101xf32> to vector<4x4xf32>
    %cst_7 = arith.constant dense<0.000000e+00> : vector<4x285xf32>
    %17 = tpu.matmul %16, %15, %cst_7 {dimension_numbers = #tpu.dot_dimension_numbers<[1], [0], [0], [1], [0, 0, 1, 1], [], []>} : vector<4x4xf32>, vector<4x285xf32>, vector<4x285xf32> -> vector<4x285xf32>
    %18 = arith.addf %14, %17 : vector<4x285xf32>
    %19 = vector.extract_strided_slice %2 {offsets = [0, 326], sizes = [4, 285], strides = [1, 1]} : vector<4x1300xf32> to vector<4x285xf32>
    %20 = vector.extract_strided_slice %3 {offsets = [0, 12], sizes = [4, 4], strides = [1, 1]} : vector<4x101xf32> to vector<4x4xf32>
    %cst_8 = arith.constant dense<0.000000e+00> : vector<4x285xf32>
    %21 = tpu.matmul %20, %19, %cst_8 {dimension_numbers = #tpu.dot_dimension_numbers<[1], [0], [0], [1], [0, 0, 1, 1], [], []>} : vector<4x4xf32>, vector<4x285xf32>, vector<4x285xf32> -> vector<4x285xf32>
    %22 = arith.addf %18, %21 : vector<4x285xf32>
    %23 = vector.extract_strided_slice %2 {offsets = [0, 2], sizes = [4, 285], strides = [1, 1]} : vector<4x1300xf32> to vector<4x285xf32>
    %24 = vector.extract_strided_slice %3 {offsets = [0, 16], sizes = [4, 4], strides = [1, 1]} : vector<4x101xf32> to vector<4x4xf32>
    %cst_9 = arith.constant dense<0.000000e+00> : vector<4x285xf32>
    %25 = tpu.matmul %24, %23, %cst_9 {dimension_numbers = #tpu.dot_dimension_numbers<[1], [0], [0], [1], [0, 0, 1, 1], [], []>} : vector<4x4xf32>, vector<4x285xf32>, vector<4x285xf32> -> vector<4x285xf32>
    %26 = arith.addf %22, %25 : vector<4x285xf32>
    %27 = vector.extract_strided_slice %2 {offsets = [0, 650], sizes = [4, 285], strides = [1, 1]} : vector<4x1300xf32> to vector<4x285xf32>
    %28 = vector.extract_strided_slice %3 {offsets = [0, 20], sizes = [4, 4], strides = [1, 1]} : vector<4x101xf32> to vector<4x4xf32>
    %cst_10 = arith.constant dense<0.000000e+00> : vector<4x285xf32>
    %29 = tpu.matmul %28, %27, %cst_10 {dimension_numbers = #tpu.dot_dimension_numbers<[1], [0], [0], [1], [0, 0, 1, 1], [], []>} : vector<4x4xf32>, vector<4x285xf32>, vector<4x285xf32> -> vector<4x285xf32>
    %30 = arith.addf %26, %29 : vector<4x285xf32>
    %31 = vector.extract_strided_slice %2 {offsets = [0, 975], sizes = [4, 285], strides = [1, 1]} : vector<4x1300xf32> to vector<4x285xf32>
    %32 = vector.extract_strided_slice %3 {offsets = [0, 24], sizes = [4, 4], strides = [1, 1]} : vector<4x101xf32> to vector<4x4xf32>
    %cst_11 = arith.constant dense<0.000000e+00> : vector<4x285xf32>
    %33 = tpu.matmul %32, %31, %cst_11 {dimension_numbers = #tpu.dot_dimension_numbers<[1], [0], [0], [1], [0, 0, 1, 1], [], []>} : vector<4x4xf32>, vector<4x285xf32>, vector<4x285xf32> -> vector<4x285xf32>
    %34 = arith.addf %30, %33 : vector<4x285xf32>
    %35 = vector.extract_strided_slice %2 {offsets = [0, 651], sizes = [4, 285], strides = [1, 1]} : vector<4x1300xf32> to vector<4x285xf32>
    %36 = vector.extract_strided_slice %3 {offsets = [0, 28], sizes = [4, 4], strides = [1, 1]} : vector<4x101xf32> to vector<4x4xf32>
    %cst_12 = arith.constant dense<0.000000e+00> : vector<4x285xf32>
    %37 = tpu.matmul %36, %35, %cst_12 {dimension_numbers = #tpu.dot_dimension_numbers<[1], [0], [0], [1], [0, 0, 1, 1], [], []>} : vector<4x4xf32>, vector<4x285xf32>, vector<4x285xf32> -> vector<4x285xf32>
    %38 = arith.addf %34, %37 : vector<4x285xf32>
    %39 = vector.extract_strided_slice %2 {offsets = [0, 976], sizes = [4, 285], strides = [1, 1]} : vector<4x1300xf32> to vector<4x285xf32>
    %40 = vector.extract_strided_slice %3 {offsets = [0, 32], sizes = [4, 4], strides = [1, 1]} : vector<4x101xf32> to vector<4x4xf32>
    %cst_13 = arith.constant dense<0.000000e+00> : vector<4x285xf32>
    %41 = tpu.matmul %40, %39, %cst_13 {dimension_numbers = #tpu.dot_dimension_numbers<[1], [0], [0], [1], [0, 0, 1, 1], [], []>} : vector<4x4xf32>, vector<4x285xf32>, vector<4x285xf32> -> vector<4x285xf32>
    %42 = arith.addf %38, %41 : vector<4x285xf32>
    %43 = vector.extract_strided_slice %2 {offsets = [0, 652], sizes = [4, 285], strides = [1, 1]} : vector<4x1300xf32> to vector<4x285xf32>
    %44 = vector.extract_strided_slice %3 {offsets = [0, 36], sizes = [4, 4], strides = [1, 1]} : vector<4x101xf32> to vector<4x4xf32>
    %cst_14 = arith.constant dense<0.000000e+00> : vector<4x285xf32>
    %45 = tpu.matmul %44, %43, %cst_14 {dimension_numbers = #tpu.dot_dimension_numbers<[1], [0], [0], [1], [0, 0, 1, 1], [], []>} : vector<4x4xf32>, vector<4x285xf32>, vector<4x285xf32> -> vector<4x285xf32>
    %46 = arith.addf %42, %45 : vector<4x285xf32>
    %47 = vector.extract_strided_slice %2 {offsets = [0, 19], sizes = [4, 285], strides = [1, 1]} : vector<4x1300xf32> to vector<4x285xf32>
    %48 = vector.extract_strided_slice %3 {offsets = [0, 40], sizes = [4, 4], strides = [1, 1]} : vector<4x101xf32> to vector<4x4xf32>
    %cst_15 = arith.constant dense<0.000000e+00> : vector<4x285xf32>
    %49 = tpu.matmul %48, %47, %cst_15 {dimension_numbers = #tpu.dot_dimension_numbers<[1], [0], [0], [1], [0, 0, 1, 1], [], []>} : vector<4x4xf32>, vector<4x285xf32>, vector<4x285xf32> -> vector<4x285xf32>
    %50 = arith.addf %46, %49 : vector<4x285xf32>
    %51 = vector.extract_strided_slice %2 {offsets = [0, 344], sizes = [4, 285], strides = [1, 1]} : vector<4x1300xf32> to vector<4x285xf32>
    %52 = vector.extract_strided_slice %3 {offsets = [0, 44], sizes = [4, 4], strides = [1, 1]} : vector<4x101xf32> to vector<4x4xf32>
    %cst_16 = arith.constant dense<0.000000e+00> : vector<4x285xf32>
    %53 = tpu.matmul %52, %51, %cst_16 {dimension_numbers = #tpu.dot_dimension_numbers<[1], [0], [0], [1], [0, 0, 1, 1], [], []>} : vector<4x4xf32>, vector<4x285xf32>, vector<4x285xf32> -> vector<4x285xf32>
    %54 = arith.addf %50, %53 : vector<4x285xf32>
    %55 = vector.extract_strided_slice %2 {offsets = [0, 20], sizes = [4, 285], strides = [1, 1]} : vector<4x1300xf32> to vector<4x285xf32>
    %56 = vector.extract_strided_slice %3 {offsets = [0, 48], sizes = [4, 4], strides = [1, 1]} : vector<4x101xf32> to vector<4x4xf32>
    %cst_17 = arith.constant dense<0.000000e+00> : vector<4x285xf32>
    %57 = tpu.matmul %56, %55, %cst_17 {dimension_numbers = #tpu.dot_dimension_numbers<[1], [0], [0], [1], [0, 0, 1, 1], [], []>} : vector<4x4xf32>, vector<4x285xf32>, vector<4x285xf32> -> vector<4x285xf32>
    %58 = arith.addf %54, %57 : vector<4x285xf32>
    %59 = vector.extract_strided_slice %2 {offsets = [0, 345], sizes = [4, 285], strides = [1, 1]} : vector<4x1300xf32> to vector<4x285xf32>
    %60 = vector.extract_strided_slice %3 {offsets = [0, 52], sizes = [4, 4], strides = [1, 1]} : vector<4x101xf32> to vector<4x4xf32>
    %cst_18 = arith.constant dense<0.000000e+00> : vector<4x285xf32>
    %61 = tpu.matmul %60, %59, %cst_18 {dimension_numbers = #tpu.dot_dimension_numbers<[1], [0], [0], [1], [0, 0, 1, 1], [], []>} : vector<4x4xf32>, vector<4x285xf32>, vector<4x285xf32> -> vector<4x285xf32>
    %62 = arith.addf %58, %61 : vector<4x285xf32>
    %63 = vector.extract_strided_slice %2 {offsets = [0, 21], sizes = [4, 285], strides = [1, 1]} : vector<4x1300xf32> to vector<4x285xf32>
    %64 = vector.extract_strided_slice %3 {offsets = [0, 56], sizes = [4, 4], strides = [1, 1]} : vector<4x101xf32> to vector<4x4xf32>
    %cst_19 = arith.constant dense<0.000000e+00> : vector<4x285xf32>
    %65 = tpu.matmul %64, %63, %cst_19 {dimension_numbers = #tpu.dot_dimension_numbers<[1], [0], [0], [1], [0, 0, 1, 1], [], []>} : vector<4x4xf32>, vector<4x285xf32>, vector<4x285xf32> -> vector<4x285xf32>
    %66 = arith.addf %62, %65 : vector<4x285xf32>
    %67 = vector.extract_strided_slice %2 {offsets = [0, 669], sizes = [4, 285], strides = [1, 1]} : vector<4x1300xf32> to vector<4x285xf32>
    %68 = vector.extract_strided_slice %3 {offsets = [0, 60], sizes = [4, 4], strides = [1, 1]} : vector<4x101xf32> to vector<4x4xf32>
    %cst_20 = arith.constant dense<0.000000e+00> : vector<4x285xf32>
    %69 = tpu.matmul %68, %67, %cst_20 {dimension_numbers = #tpu.dot_dimension_numbers<[1], [0], [0], [1], [0, 0, 1, 1], [], []>} : vector<4x4xf32>, vector<4x285xf32>, vector<4x285xf32> -> vector<4x285xf32>
    %70 = arith.addf %66, %69 : vector<4x285xf32>
    %71 = vector.extract_strided_slice %2 {offsets = [0, 994], sizes = [4, 285], strides = [1, 1]} : vector<4x1300xf32> to vector<4x285xf32>
    %72 = vector.extract_strided_slice %3 {offsets = [0, 64], sizes = [4, 4], strides = [1, 1]} : vector<4x101xf32> to vector<4x4xf32>
    %cst_21 = arith.constant dense<0.000000e+00> : vector<4x285xf32>
    %73 = tpu.matmul %72, %71, %cst_21 {dimension_numbers = #tpu.dot_dimension_numbers<[1], [0], [0], [1], [0, 0, 1, 1], [], []>} : vector<4x4xf32>, vector<4x285xf32>, vector<4x285xf32> -> vector<4x285xf32>
    %74 = arith.addf %70, %73 : vector<4x285xf32>
    %75 = vector.extract_strided_slice %2 {offsets = [0, 670], sizes = [4, 285], strides = [1, 1]} : vector<4x1300xf32> to vector<4x285xf32>
    %76 = vector.extract_strided_slice %3 {offsets = [0, 68], sizes = [4, 4], strides = [1, 1]} : vector<4x101xf32> to vector<4x4xf32>
    %cst_22 = arith.constant dense<0.000000e+00> : vector<4x285xf32>
    %77 = tpu.matmul %76, %75, %cst_22 {dimension_numbers = #tpu.dot_dimension_numbers<[1], [0], [0], [1], [0, 0, 1, 1], [], []>} : vector<4x4xf32>, vector<4x285xf32>, vector<4x285xf32> -> vector<4x285xf32>
    %78 = arith.addf %74, %77 : vector<4x285xf32>
    %79 = vector.extract_strided_slice %2 {offsets = [0, 995], sizes = [4, 285], strides = [1, 1]} : vector<4x1300xf32> to vector<4x285xf32>
    %80 = vector.extract_strided_slice %3 {offsets = [0, 72], sizes = [4, 4], strides = [1, 1]} : vector<4x101xf32> to vector<4x4xf32>
    %cst_23 = arith.constant dense<0.000000e+00> : vector<4x285xf32>
    %81 = tpu.matmul %80, %79, %cst_23 {dimension_numbers = #tpu.dot_dimension_numbers<[1], [0], [0], [1], [0, 0, 1, 1], [], []>} : vector<4x4xf32>, vector<4x285xf32>, vector<4x285xf32> -> vector<4x285xf32>
    %82 = arith.addf %78, %81 : vector<4x285xf32>
    %83 = vector.extract_strided_slice %2 {offsets = [0, 671], sizes = [4, 285], strides = [1, 1]} : vector<4x1300xf32> to vector<4x285xf32>
    %84 = vector.extract_strided_slice %3 {offsets = [0, 76], sizes = [4, 4], strides = [1, 1]} : vector<4x101xf32> to vector<4x4xf32>
    %cst_24 = arith.constant dense<0.000000e+00> : vector<4x285xf32>
    %85 = tpu.matmul %84, %83, %cst_24 {dimension_numbers = #tpu.dot_dimension_numbers<[1], [0], [0], [1], [0, 0, 1, 1], [], []>} : vector<4x4xf32>, vector<4x285xf32>, vector<4x285xf32> -> vector<4x285xf32>
    %86 = arith.addf %82, %85 : vector<4x285xf32>
    %87 = vector.extract_strided_slice %2 {offsets = [0, 38], sizes = [4, 285], strides = [1, 1]} : vector<4x1300xf32> to vector<4x285xf32>
    %88 = vector.extract_strided_slice %3 {offsets = [0, 80], sizes = [4, 4], strides = [1, 1]} : vector<4x101xf32> to vector<4x4xf32>
    %cst_25 = arith.constant dense<0.000000e+00> : vector<4x285xf32>
    %89 = tpu.matmul %88, %87, %cst_25 {dimension_numbers = #tpu.dot_dimension_numbers<[1], [0], [0], [1], [0, 0, 1, 1], [], []>} : vector<4x4xf32>, vector<4x285xf32>, vector<4x285xf32> -> vector<4x285xf32>
    %90 = arith.addf %86, %89 : vector<4x285xf32>
    %91 = vector.extract_strided_slice %2 {offsets = [0, 363], sizes = [4, 285], strides = [1, 1]} : vector<4x1300xf32> to vector<4x285xf32>
    %92 = vector.extract_strided_slice %3 {offsets = [0, 84], sizes = [4, 4], strides = [1, 1]} : vector<4x101xf32> to vector<4x4xf32>
    %cst_26 = arith.constant dense<0.000000e+00> : vector<4x285xf32>
    %93 = tpu.matmul %92, %91, %cst_26 {dimension_numbers = #tpu.dot_dimension_numbers<[1], [0], [0], [1], [0, 0, 1, 1], [], []>} : vector<4x4xf32>, vector<4x285xf32>, vector<4x285xf32> -> vector<4x285xf32>
    %94 = arith.addf %90, %93 : vector<4x285xf32>
    %95 = vector.extract_strided_slice %2 {offsets = [0, 39], sizes = [4, 285], strides = [1, 1]} : vector<4x1300xf32> to vector<4x285xf32>
    %96 = vector.extract_strided_slice %3 {offsets = [0, 88], sizes = [4, 4], strides = [1, 1]} : vector<4x101xf32> to vector<4x4xf32>
    %cst_27 = arith.constant dense<0.000000e+00> : vector<4x285xf32>
    %97 = tpu.matmul %96, %95, %cst_27 {dimension_numbers = #tpu.dot_dimension_numbers<[1], [0], [0], [1], [0, 0, 1, 1], [], []>} : vector<4x4xf32>, vector<4x285xf32>, vector<4x285xf32> -> vector<4x285xf32>
    %98 = arith.addf %94, %97 : vector<4x285xf32>
    %99 = vector.extract_strided_slice %2 {offsets = [0, 364], sizes = [4, 285], strides = [1, 1]} : vector<4x1300xf32> to vector<4x285xf32>
    %100 = vector.extract_strided_slice %3 {offsets = [0, 92], sizes = [4, 4], strides = [1, 1]} : vector<4x101xf32> to vector<4x4xf32>
    %cst_28 = arith.constant dense<0.000000e+00> : vector<4x285xf32>
    %101 = tpu.matmul %100, %99, %cst_28 {dimension_numbers = #tpu.dot_dimension_numbers<[1], [0], [0], [1], [0, 0, 1, 1], [], []>} : vector<4x4xf32>, vector<4x285xf32>, vector<4x285xf32> -> vector<4x285xf32>
    %102 = arith.addf %98, %101 : vector<4x285xf32>
    %103 = vector.extract_strided_slice %2 {offsets = [0, 40], sizes = [4, 285], strides = [1, 1]} : vector<4x1300xf32> to vector<4x285xf32>
    %104 = vector.extract_strided_slice %3 {offsets = [0, 96], sizes = [4, 4], strides = [1, 1]} : vector<4x101xf32> to vector<4x4xf32>
    %cst_29 = arith.constant dense<0.000000e+00> : vector<4x285xf32>
    %105 = tpu.matmul %104, %103, %cst_29 {dimension_numbers = #tpu.dot_dimension_numbers<[1], [0], [0], [1], [0, 0, 1, 1], [], []>} : vector<4x4xf32>, vector<4x285xf32>, vector<4x285xf32> -> vector<4x285xf32>
    %106 = arith.addf %102, %105 : vector<4x285xf32>
    %c0_30 = arith.constant 0 : index
    %c0_31 = arith.constant 0 : index
    %107 = vector.load %arg3[%c0_30, %c0_31] : memref<4x285xf32, #tpu.memory_space<vmem>>, vector<4x285xf32>
    tpu.vector_store %arg3[%c0_30, %c0_31], %106 {strides = array<i32>} : memref<4x285xf32, #tpu.memory_space<vmem>>, vector<4x285xf32>,
    return
  }
}

</mosaic_0001>

<llo_original>
// kernel: model_forward.1
$region0: #{model_forward.1}
  #allocation0 [shape = 'u32[]', space=smem, size = 0x4, offset = 0x4, fixed_abs, tag = 'smem constant byte address 0x4 - core index']
  #allocation1 [shape = 'u32[144,128]{1,0:T(1,128)}', space=vmem, size = 0x12000, scoped, tag = 'internal scratch']
  %s0 = inlined_call_operand.vmem [shape: f32[37,1300], index: 0, kind: input, shape index: {}]
  %s1 = inlined_call_operand.vmem [shape: f32[4,37], index: 1, kind: input, shape index: {}]
  %s2 = inlined_call_operand.vmem [shape: f32[4,101], index: 2, kind: input, shape index: {}]
  %s3 = inlined_call_operand.vmem [shape: f32[4,285], index: 3, kind: output, shape index: {}]
  %s4 = sld [smem:[#allocation0]]
  $region22: #{model_forward.1} parent=0
    _
  %s6 = ssub.s32 1, %s4
  %s7 = scalar_select 0, %s6, %s4
  // Predicated region
  $region2: #{model_forward.1} parent=0 // pred_check
    _
  $region3: #{model_forward.1} parent=0 // pred_check_branch
    %9 = sbr.rel (0) target = $region5
  $region4: #{model_forward.1} parent=0 // pred_region
    _
  $region5: #{model_forward.1} parent=0 // pred_fallthru
    _
  // Predicated region
  $region6: #{model_forward.1} parent=0 // pred_check
    _
  $region7: #{model_forward.1} parent=0 // pred_check_branch
    %11 = sbr.rel (0) target = $region9
  $region8: #{model_forward.1} parent=0 // pred_region
    _
  $region9: #{model_forward.1} parent=0 // pred_fallthru
    _
  // Predicated region
  $region10: #{model_forward.1} parent=0 // pred_check
    _
  $region11: #{model_forward.1} parent=0 // pred_check_branch
    %13 = sbr.rel (0) target = $region13
  $region12: #{model_forward.1} parent=0 // pred_region
    _
  $region13: #{model_forward.1} parent=0 // pred_fallthru
    _
  %v14 = vld [vmem:[%s1] sm:$0xf]
  %v15 = vld [vmem:[%s0] sm:$0xff]
  %v16 = vld [vmem:[%s0 + $0x8] sm:$0xff]
  %v17 = vld [vmem:[%s0 + $0x10] sm:$0xff]
  %v18 = vld [vmem:[%s0 + $0x18] sm:$0xff]
  %v19 = vld [vmem:[%s0 + $0x20] sm:$0xff]
  %v20 = vld [vmem:[%s0 + $0x28] sm:$0xff]
  %v21 = vld [vmem:[%s0 + $0x30] sm:$0xff]
  %v22 = vld [vmem:[%s0 + $0x38] sm:$0xff]
  %v23 = vld [vmem:[%s0 + $0x40] sm:$0xff]
  %v24 = vld [vmem:[%s0 + $0x48] sm:$0xff]
  %v25 = vld [vmem:[%s0 + $0x58] sm:$0xff]
  %v26 = vld [vmem:[%s0 + $0x60] sm:$0xff]
  %v27 = vld [vmem:[%s0 + $0x68] sm:$0xff]
  %v28 = vld [vmem:[%s0 + $0x70] sm:$0xff]
  %v29 = vld [vmem:[%s0 + $0x78] sm:$0xff]
  %v30 = vld [vmem:[%s0 + $0x80] sm:$0xff]
  %v31 = vld [vmem:[%s0 + $0x88] sm:$0xff]
  %v32 = vld [vmem:[%s0 + $0x90] sm:$0xff]
  %v33 = vld [vmem:[%s0 + $0x98] sm:$0xff]
  %v34 = vld [vmem:[%s0 + $0xa0] sm:$0xff]
  %v35 = vld [vmem:[%s0 + $0xb0] sm:$0xff]
  %v36 = vld [vmem:[%s0 + $0xb8] sm:$0xff]
  %v37 = vld [vmem:[%s0 + $0xc0] sm:$0xff]
  %v38 = vld [vmem:[%s0 + $0xc8] sm:$0xff]
  %v39 = vld [vmem:[%s0 + $0xd0] sm:$0xff]
  %v40 = vld [vmem:[%s0 + $0xd8] sm:$0xff]
  %v41 = vld [vmem:[%s0 + $0xe0] sm:$0xff]
  %v42 = vld [vmem:[%s0 + $0xe8] sm:$0xff]
  %v43 = vld [vmem:[%s0 + $0xf0] sm:$0xff]
  %v44 = vld [vmem:[%s0 + $0xf8] sm:$0xff]
  %v45 = vld [vmem:[%s0 + $0x108] sm:$0xff]
  %v46 = vld [vmem:[%s0 + $0x110] sm:$0xff]
  %v47 = vld [vmem:[%s0 + $0x118] sm:$0xff]
  %v48 = vld [vmem:[%s0 + $0x120] sm:$0xff]
  %v49 = vld [vmem:[%s0 + $0x128] sm:$0xff]
  %v50 = vld [vmem:[%s0 + $0x130] sm:$0xff]
  %v51 = vld [vmem:[%s0 + $0x138] sm:$0xff]
  %v52 = vld [vmem:[%s0 + $0x140] sm:$0xff]
  %v53 = vld [vmem:[%s0 + $0x148] sm:$0xff]
  %v54 = vld [vmem:[%s0 + $0x150] sm:$0xff]
  %v55 = vld [vmem:[%s0 + $0x160] sm:$0x1f]
  %v56 = vld [vmem:[%s0 + $0x168] sm:$0x1f]
  %v57 = vld [vmem:[%s0 + $0x170] sm:$0x1f]
  %v58 = vld [vmem:[%s0 + $0x178] sm:$0x1f]
  %v59 = vld [vmem:[%s0 + $0x180] sm:$0x1f]
  %v60 = vld [vmem:[%s0 + $0x188] sm:$0x1f]
  %v61 = vld [vmem:[%s0 + $0x190] sm:$0x1f]
  %v62 = vld [vmem:[%s0 + $0x198] sm:$0x1f]
  %v63 = vld [vmem:[%s0 + $0x1a0] sm:$0x1f]
  %v64 = vld [vmem:[%s0 + $0x1a8] sm:$0x1f]
  %vm65 = vcmask 302080
  %v67 = vsel %vm65, %v14, 0
  %vm69 = vcmask 1044480
  %v71 = vsel %vm69, %v55, 0
  %v74 = vsel %vm69, %v56, 0
  %v77 = vsel %vm69, %v57, 0
  %v80 = vsel %vm69, %v58, 0
  %v83 = vsel %vm69, %v59, 0
  %v86 = vsel %vm69, %v60, 0
  %v89 = vsel %vm69, %v61, 0
  %v92 = vsel %vm69, %v62, 0
  %v95 = vsel %vm69, %v63, 0
  %v98 = vsel %vm69, %v64, 0
  %100 = vmatprep.subr.mxu0 %v16
  %101 = vmatpush1.msra.mxu0 %v15
  %102 = vmatprep.subr.mxu0 %v26
  %103 = vmatpush1.msra.mxu0 %v25
  %104 = vmatprep.subr.mxu0 %v36
  %105 = vmatpush1.msra.mxu0 %v35
  %106 = vmatprep.subr.mxu0 %v46
  %107 = vmatpush1.msra.mxu0 %v45
  %108 = vmatprep.subr.mxu0 %v74
  %109 = vmatpush1.msra.mxu0 %v71
  %110 = vmatprep.subr.mxu0 0.0
  %111 = vmatpush1.msra.mxu0 0.0
  %112 = vmatprep.subr.mxu0 0.0
  %113 = vmatpush1.msra.mxu0 0.0
  %114 = vmatprep.subr.mxu0 0.0
  %115 = vmatpush1.msra.mxu0 0.0
  %116 = vmatprep.subr.mxu0 0.0
  %117 = vmatpush1.msra.mxu0 0.0
  %118 = vmatprep.subr.mxu0 0.0
  %119 = vmatpush1.msra.mxu0 0.0
  %120 = vmatprep.subr.mxu0 0.0
  %121 = vmatpush1.msra.mxu0 0.0
  %122 = vmatprep.subr.mxu0 0.0
  %123 = vmatpush1.msra.mxu0 0.0
  %124 = vmatprep.subr.mxu0 0.0
  %125 = vmatpush1.msra.mxu0 0.0
  %126 = vmatprep.subr.mxu0 0.0
  %127 = vmatpush1.msra.mxu0 0.0
  %128 = vmatprep.subr.mxu0 0.0
  %129 = vmatpush1.msra.mxu0 0.0
  %130 = vmatprep.subr.mxu0 0.0
  %131 = vmatpush1.msra.mxu0 0.0
  %132 = vmatprep.subr.mxu0 0.0
  %133 = vmatpush1.msra.mxu0 0.0
  %134 = vmatprep.subr.mxu0 0.0
  %135 = vmatpush1.msra.mxu0 0.0
  %136 = vmatprep.subr.mxu0 0.0
  %137 = vmatpush1.msra.mxu0 0.0
  %138 = vmatprep.subr.mxu0 0.0
  %139 = vmatpush1.msra.mxu0 0.0
  %140 = vmatprep.subr.mxu0 0.0
  %141 = vmatpush1.msra.mxu0 0.0
  %142 = vmatprep.subr.mxu0 0.0
  %143 = vmatpush1.msra.mxu0 0.0
  %144 = vmatprep.subr.mxu0 0.0
  %145 = vmatpush1.msra.mxu0 0.0
  %146 = vmatprep.subr.mxu0 0.0
  %147 = vmatpush1.msra.mxu0 0.0
  %148 = vmatprep.subr.mxu0 0.0
  %149 = vmatpush1.msra.mxu0 0.0
  %150 = vmatprep.subr.mxu0 0.0
  %151 = vmatpush1.msra.mxu0 0.0
  %152 = vmatprep.subr.mxu0 0.0
  %153 = vmatpush1.msra.mxu0 0.0
  %154 = vmatprep.subr.mxu0 0.0
  %155 = vmatpush1.msra.mxu0 0.0
  %156 = vmatprep.subr.mxu0 0.0
  %157 = vmatpush1.msra.mxu0 0.0
  %158 = vmatprep.subr.mxu0 0.0
  %159 = vmatpush1.msra.mxu0 0.0
  %160 = vmatprep.subr.mxu0 0.0
  %161 = vmatpush1.msra.mxu0 0.0
  %162 = vmatprep.subr.mxu0 0.0
  %163 = vmatpush1.msra.mxu0 0.0
  %164 = vmatprep.mubr.f32.mxu0 0.0
  %165 = vmatmul.mubr.f32.gmra.mrb[0].mxu0 %v67
  %v166 = vpop.f32.mrb[0].mxu0
  %v167 = vadd.f32 0.0, %v166
  %v168 = vpop.f32.mrb[0].mxu0
  %v169 = vadd.f32 0.0, %v168
  %170 = vdwg.mxu0
  %171 = vmatprep.subr.mxu0 %v18
  %172 = vmatpush1.msra.mxu0 %v17
  %173 = vmatprep.subr.mxu0 %v28
  %174 = vmatpush1.msra.mxu0 %v27
  %175 = vmatprep.subr.mxu0 %v38
  %176 = vmatpush1.msra.mxu0 %v37
  %177 = vmatprep.subr.mxu0 %v48
  %178 = vmatpush1.msra.mxu0 %v47
  %179 = vmatprep.subr.mxu0 %v80
  %180 = vmatpush1.msra.mxu0 %v77
  %181 = vmatprep.subr.mxu0 0.0
  %182 = vmatpush1.msra.mxu0 0.0
  %183 = vmatprep.subr.mxu0 0.0
  %184 = vmatpush1.msra.mxu0 0.0
  %185 = vmatprep.subr.mxu0 0.0
  %186 = vmatpush1.msra.mxu0 0.0
  %187 = vmatprep.subr.mxu0 0.0
  %188 = vmatpush1.msra.mxu0 0.0
  %189 = vmatprep.subr.mxu0 0.0
  %190 = vmatpush1.msra.mxu0 0.0
  %191 = vmatprep.subr.mxu0 0.0
  %192 = vmatpush1.msra.mxu0 0.0
  %193 = vmatprep.subr.mxu0 0.0
  %194 = vmatpush1.msra.mxu0 0.0
  %195 = vmatprep.subr.mxu0 0.0
  %196 = vmatpush1.msra.mxu0 0.0
  %197 = vmatprep.subr.mxu0 0.0
  %198 = vmatpush1.msra.mxu0 0.0
  %199 = vmatprep.subr.mxu0 0.0
  %200 = vmatpush1.msra.mxu0 0.0
  %201 = vmatprep.subr.mxu0 0.0
  %202 = vmatpush1.msra.mxu0 0.0
  %203 = vmatprep.subr.mxu0 0.0
  %204 = vmatpush1.msra.mxu0 0.0
  %205 = vmatprep.subr.mxu0 0.0
  %206 = vmatpush1.msra.mxu0 0.0
  %207 = vmatprep.subr.mxu0 0.0
  %208 = vmatpush1.msra.mxu0 0.0
  %209 = vmatprep.subr.mxu0 0.0
  %210 = vmatpush1.msra.mxu0 0.0
  %211 = vmatprep.subr.mxu0 0.0
  %212 = vmatpush1.msra.mxu0 0.0
  %213 = vmatprep.subr.mxu0 0.0
  %214 = vmatpush1.msra.mxu0 0.0
  %215 = vmatprep.subr.mxu0 0.0
  %216 = vmatpush1.msra.mxu0 0.0
  %217 = vmatprep.subr.mxu0 0.0
  %218 = vmatpush1.msra.mxu0 0.0
  %219 = vmatprep.subr.mxu0 0.0
  %220 = vmatpush1.msra.mxu0 0.0
  %221 = vmatprep.subr.mxu0 0.0
  %222 = vmatpush1.msra.mxu0 0.0
  %223 = vmatprep.subr.mxu0 0.0
  %224 = vmatpush1.msra.mxu0 0.0
  %225 = vmatprep.subr.mxu0 0.0
  %226 = vmatpush1.msra.mxu0 0.0
  %227 = vmatprep.subr.mxu0 0.0
  %228 = vmatpush1.msra.mxu0 0.0
  %229 = vmatprep.subr.mxu0 0.0
  %230 = vmatpush1.msra.mxu0 0.0
  %231 = vmatprep.subr.mxu0 0.0
  %232 = vmatpush1.msra.mxu0 0.0
  %233 = vmatprep.subr.mxu0 0.0
  %234 = vmatpush1.msra.mxu0 0.0
  %235 = vmatprep.mubr.f32.mxu0 0.0
  %236 = vmatmul.mubr.f32.gmra.mrb[0].mxu0 %v67
  %v237 = vpop.f32.mrb[0].mxu0
  %v238 = vadd.f32 0.0, %v237
  %v239 = vpop.f32.mrb[0].mxu0
  %v240 = vadd.f32 0.0, %v239
  %241 = vdwg.mxu0
  %242 = vmatprep.subr.mxu0 %v20
  %243 = vmatpush1.msra.mxu0 %v19
  %244 = vmatprep.subr.mxu0 %v30
  %245 = vmatpush1.msra.mxu0 %v29
  %246 = vmatprep.subr.mxu0 %v40
  %247 = vmatpush1.msra.mxu0 %v39
  %248 = vmatprep.subr.mxu0 %v50
  %249 = vmatpush1.msra.mxu0 %v49
  %250 = vmatprep.subr.mxu0 %v86
  %251 = vmatpush1.msra.mxu0 %v83
  %252 = vmatprep.subr.mxu0 0.0
  %253 = vmatpush1.msra.mxu0 0.0
  %254 = vmatprep.subr.mxu0 0.0
  %255 = vmatpush1.msra.mxu0 0.0
  %256 = vmatprep.subr.mxu0 0.0
  %257 = vmatpush1.msra.mxu0 0.0
  %258 = vmatprep.subr.mxu0 0.0
  %259 = vmatpush1.msra.mxu0 0.0
  %260 = vmatprep.subr.mxu0 0.0
  %261 = vmatpush1.msra.mxu0 0.0
  %262 = vmatprep.subr.mxu0 0.0
  %263 = vmatpush1.msra.mxu0 0.0
  %264 = vmatprep.subr.mxu0 0.0
  %265 = vmatpush1.msra.mxu0 0.0
  %266 = vmatprep.subr.mxu0 0.0
  %267 = vmatpush1.msra.mxu0 0.0
  %268 = vmatprep.subr.mxu0 0.0
  %269 = vmatpush1.msra.mxu0 0.0
  %270 = vmatprep.subr.mxu0 0.0
  %271 = vmatpush1.msra.mxu0 0.0
  %272 = vmatprep.subr.mxu0 0.0
  %273 = vmatpush1.msra.mxu0 0.0
  %274 = vmatprep.subr.mxu0 0.0
  %275 = vmatpush1.msra.mxu0 0.0
  %276 = vmatprep.subr.mxu0 0.0
  %277 = vmatpush1.msra.mxu0 0.0
  %278 = vmatprep.subr.mxu0 0.0
  %279 = vmatpush1.msra.mxu0 0.0
  %280 = vmatprep.subr.mxu0 0.0
  %281 = vmatpush1.msra.mxu0 0.0
  %282 = vmatprep.subr.mxu0 0.0
  %283 = vmatpush1.msra.mxu0 0.0
  %284 = vmatprep.subr.mxu0 0.0
  %285 = vmatpush1.msra.mxu0 0.0
  %286 = vmatprep.subr.mxu0 0.0
  %287 = vmatpush1.msra.mxu0 0.0
  %288 = vmatprep.subr.mxu0 0.0
  %289 = vmatpush1.msra.mxu0 0.0
  %290 = vmatprep.subr.mxu0 0.0
  %291 = vmatpush1.msra.mxu0 0.0
  %292 = vmatprep.subr.mxu0 0.0
  %293 = vmatpush1.msra.mxu0 0.0
  %294 = vmatprep.subr.mxu0 0.0
  %295 = vmatpush1.msra.mxu0 0.0
  %296 = vmatprep.subr.mxu0 0.0
  %297 = vmatpush1.msra.mxu0 0.0
  %298 = vmatprep.subr.mxu0 0.0
  %299 = vmatpush1.msra.mxu0 0.0
  %300 = vmatprep.subr.mxu0 0.0
  %301 = vmatpush1.msra.mxu0 0.0
  %302 = vmatprep.subr.mxu0 0.0
  %303 = vmatpush1.msra.mxu0 0.0
  %304 = vmatprep.subr.mxu0 0.0
  %305 = vmatpush1.msra.mxu0 0.0
  %306 = vmatprep.mubr.f32.mxu0 0.0
  %307 = vmatmul.mubr.f32.gmra.mrb[0].mxu0 %v67
  %v308 = vpop.f32.mrb[0].mxu0
  %v309 = vadd.f32 0.0, %v308
  %v310 = vpop.f32.mrb[0].mxu0
  %v311 = vadd.f32 0.0, %v310
  %312 = vdwg.mxu0
  %313 = vmatprep.subr.mxu0 %v22
  %314 = vmatpush1.msra.mxu0 %v21
  %315 = vmatprep.subr.mxu0 %v32
  %316 = vmatpush1.msra.mxu0 %v31
  %317 = vmatprep.subr.mxu0 %v42
  %318 = vmatpush1.msra.mxu0 %v41
  %319 = vmatprep.subr.mxu0 %v52
  %320 = vmatpush1.msra.mxu0 %v51
  %321 = vmatprep.subr.mxu0 %v92
  %322 = vmatpush1.msra.mxu0 %v89
  %323 = vmatprep.subr.mxu0 0.0
  %324 = vmatpush1.msra.mxu0 0.0
  %325 = vmatprep.subr.mxu0 0.0
  %326 = vmatpush1.msra.mxu0 0.0
  %327 = vmatprep.subr.mxu0 0.0
  %328 = vmatpush1.msra.mxu0 0.0
  %329 = vmatprep.subr.mxu0 0.0
  %330 = vmatpush1.msra.mxu0 0.0
  %331 = vmatprep.subr.mxu0 0.0
  %332 = vmatpush1.msra.mxu0 0.0
  %333 = vmatprep.subr.mxu0 0.0
  %334 = vmatpush1.msra.mxu0 0.0
  %335 = vmatprep.subr.mxu0 0.0
  %336 = vmatpush1.msra.mxu0 0.0
  %337 = vmatprep.subr.mxu0 0.0
  %338 = vmatpush1.msra.mxu0 0.0
  %339 = vmatprep.subr.mxu0 0.0
  %340 = vmatpush1.msra.mxu0 0.0
  %341 = vmatprep.subr.mxu0 0.0
  %342 = vmatpush1.msra.mxu0 0.0
  %343 = vmatprep.subr.mxu0 0.0
  %344 = vmatpush1.msra.mxu0 0.0
  %345 = vmatprep.subr.mxu0 0.0
  %346 = vmatpush1.msra.mxu0 0.0
  %347 = vmatprep.subr.mxu0 0.0
  %348 = vmatpush1.msra.mxu0 0.0
  %349 = vmatprep.subr.mxu0 0.0
  %350 = vmatpush1.msra.mxu0 0.0
  %351 = vmatprep.subr.mxu0 0.0
  %352 = vmatpush1.msra.mxu0 0.0
  %353 = vmatprep.subr.mxu0 0.0
  %354 = vmatpush1.msra.mxu0 0.0
  %355 = vmatprep.subr.mxu0 0.0
  %356 = vmatpush1.msra.mxu0 0.0
  %357 = vmatprep.subr.mxu0 0.0
  %358 = vmatpush1.msra.mxu0 0.0
  %359 = vmatprep.subr.mxu0 0.0
  %360 = vmatpush1.msra.mxu0 0.0
  %361 = vmatprep.subr.mxu0 0.0
  %362 = vmatpush1.msra.mxu0 0.0
  %363 = vmatprep.subr.mxu0 0.0
  %364 = vmatpush1.msra.mxu0 0.0
  %365 = vmatprep.subr.mxu0 0.0
  %366 = vmatpush1.msra.mxu0 0.0
  %367 = vmatprep.subr.mxu0 0.0
  %368 = vmatpush1.msra.mxu0 0.0
  %369 = vmatprep.subr.mxu0 0.0
  %370 = vmatpush1.msra.mxu0 0.0
  %371 = vmatprep.subr.mxu0 0.0
  %372 = vmatpush1.msra.mxu0 0.0
  %373 = vmatprep.subr.mxu0 0.0
  %374 = vmatpush1.msra.mxu0 0.0
  %375 = vmatprep.subr.mxu0 0.0
  %376 = vmatpush1.msra.mxu0 0.0
  %377 = vmatprep.mubr.f32.mxu0 0.0
  %378 = vmatmul.mubr.f32.gmra.mrb[0].mxu0 %v67
  %v379 = vpop.f32.mrb[0].mxu0
  %v380 = vadd.f32 0.0, %v379
  %v381 = vpop.f32.mrb[0].mxu0
  %v382 = vadd.f32 0.0, %v381
  %383 = vdwg.mxu0
  %384 = vmatprep.subr.mxu0 %v24
  %385 = vmatpush1.msra.mxu0 %v23
  %386 = vmatprep.subr.mxu0 %v34
  %387 = vmatpush1.msra.mxu0 %v33
  %388 = vmatprep.subr.mxu0 %v44
  %389 = vmatpush1.msra.mxu0 %v43
  %390 = vmatprep.subr.mxu0 %v54
  %391 = vmatpush1.msra.mxu0 %v53
  %392 = vmatprep.subr.mxu0 %v98
  %393 = vmatpush1.msra.mxu0 %v95
  %394 = vmatprep.subr.mxu0 0.0
  %395 = vmatpush1.msra.mxu0 0.0
  %396 = vmatprep.subr.mxu0 0.0
  %397 = vmatpush1.msra.mxu0 0.0
  %398 = vmatprep.subr.mxu0 0.0
  %399 = vmatpush1.msra.mxu0 0.0
  %400 = vmatprep.subr.mxu0 0.0
  %401 = vmatpush1.msra.mxu0 0.0
  %402 = vmatprep.subr.mxu0 0.0
  %403 = vmatpush1.msra.mxu0 0.0
  %404 = vmatprep.subr.mxu0 0.0
  %405 = vmatpush1.msra.mxu0 0.0
  %406 = vmatprep.subr.mxu0 0.0
  %407 = vmatpush1.msra.mxu0 0.0
  %408 = vmatprep.subr.mxu0 0.0
  %409 = vmatpush1.msra.mxu0 0.0
  %410 = vmatprep.subr.mxu0 0.0
  %411 = vmatpush1.msra.mxu0 0.0
  %412 = vmatprep.subr.mxu0 0.0
  %413 = vmatpush1.msra.mxu0 0.0
  %414 = vmatprep.subr.mxu0 0.0
  %415 = vmatpush1.msra.mxu0 0.0
  %416 = vmatprep.subr.mxu0 0.0
  %417 = vmatpush1.msra.mxu0 0.0
  %418 = vmatprep.subr.mxu0 0.0
  %419 = vmatpush1.msra.mxu0 0.0
  %420 = vmatprep.subr.mxu0 0.0
  %421 = vmatpush1.msra.mxu0 0.0
  %422 = vmatprep.subr.mxu0 0.0
  %423 = vmatpush1.msra.mxu0 0.0
  %424 = vmatprep.subr.mxu0 0.0
  %425 = vmatpush1.msra.mxu0 0.0
  %426 = vmatprep.subr.mxu0 0.0
  %427 = vmatpush1.msra.mxu0 0.0
  %428 = vmatprep.subr.mxu0 0.0
  %429 = vmatpush1.msra.mxu0 0.0
  %430 = vmatprep.subr.mxu0 0.0
  %431 = vmatpush1.msra.mxu0 0.0
  %432 = vmatprep.subr.mxu0 0.0
  %433 = vmatpush1.msra.mxu0 0.0
  %434 = vmatprep.subr.mxu0 0.0
  %435 = vmatpush1.msra.mxu0 0.0
  %436 = vmatprep.subr.mxu0 0.0
  %437 = vmatpush1.msra.mxu0 0.0
  %438 = vmatprep.subr.mxu0 0.0
  %439 = vmatpush1.msra.mxu0 0.0
  %440 = vmatprep.subr.mxu0 0.0
  %441 = vmatpush1.msra.mxu0 0.0
  %442 = vmatprep.subr.mxu0 0.0
  %443 = vmatpush1.msra.mxu0 0.0
  %444 = vmatprep.subr.mxu0 0.0
  %445 = vmatpush1.msra.mxu0 0.0
  %446 = vmatprep.subr.mxu0 0.0
  %447 = vmatpush1.msra.mxu0 0.0
  %448 = vmatprep.mubr.f32.mxu0 0.0
  %449 = vmatmul.mubr.f32.gmra.mrb[0].mxu0 %v67
  %v450 = vpop.f32.mrb[0].mxu0
  %v451 = vadd.f32 0.0, %v450
  %v452 = vpop.f32.mrb[0].mxu0
  %v453 = vadd.f32 0.0, %v452
  %454 = vdwg.mxu0
  %v455 = vld [vmem:[%s2] sm:$0xf]
  %457 = vset.pattern.permute.xlu0 100
  %458 = vperm.xlu0 %457, %v455
  %v459 = vpop.permute.xlu0 %458
  %vm461 = vcmask 31744
  %v462 = vsel %vm461, %v455, 0
  %vm464 = vcmask 1043456
  %v466 = vsel %vm464, %v167, 0
  %v469 = vsel %vm464, %v169, 0
  %v472 = vsel %vm464, %v238, 0
  %474 = vmatprep.subr.mxu0 %v469
  %475 = vmatpush1.msra.mxu0 %v466
  %476 = vmatprep.subr.mxu0 0.0
  %477 = vmatpush1.msra.mxu0 0.0
  %478 = vmatprep.subr.mxu0 0.0
  %479 = vmatpush1.msra.mxu0 0.0
  %480 = vmatprep.subr.mxu0 0.0
  %481 = vmatpush1.msra.mxu0 0.0
  %482 = vmatprep.subr.mxu0 0.0
  %483 = vmatpush1.msra.mxu0 0.0
  %484 = vmatprep.subr.mxu0 0.0
  %485 = vmatpush1.msra.mxu0 0.0
  %486 = vmatprep.subr.mxu0 0.0
  %487 = vmatpush1.msra.mxu0 0.0
  %488 = vmatprep.subr.mxu0 0.0
  %489 = vmatpush1.msra.mxu0 0.0
  %490 = vmatprep.subr.mxu0 0.0
  %491 = vmatpush1.msra.mxu0 0.0
  %492 = vmatprep.subr.mxu0 0.0
  %493 = vmatpush1.msra.mxu0 0.0
  %494 = vmatprep.subr.mxu0 0.0
  %495 = vmatpush1.msra.mxu0 0.0
  %496 = vmatprep.subr.mxu0 0.0
  %497 = vmatpush1.msra.mxu0 0.0
  %498 = vmatprep.subr.mxu0 0.0
  %499 = vmatpush1.msra.mxu0 0.0
  %500 = vmatprep.subr.mxu0 0.0
  %501 = vmatpush1.msra.mxu0 0.0
  %502 = vmatprep.subr.mxu0 0.0
  %503 = vmatpush1.msra.mxu0 0.0
  %504 = vmatprep.subr.mxu0 0.0
  %505 = vmatpush1.msra.mxu0 0.0
  %506 = vmatprep.subr.mxu0 0.0
  %507 = vmatpush1.msra.mxu0 0.0
  %508 = vmatprep.subr.mxu0 0.0
  %509 = vmatpush1.msra.mxu0 0.0
  %510 = vmatprep.subr.mxu0 0.0
  %511 = vmatpush1.msra.mxu0 0.0
  %512 = vmatprep.subr.mxu0 0.0
  %513 = vmatpush1.msra.mxu0 0.0
  %514 = vmatprep.subr.mxu0 0.0
  %515 = vmatpush1.msra.mxu0 0.0
  %516 = vmatprep.subr.mxu0 0.0
  %517 = vmatpush1.msra.mxu0 0.0
  %518 = vmatprep.subr.mxu0 0.0
  %519 = vmatpush1.msra.mxu0 0.0
  %520 = vmatprep.subr.mxu0 0.0
  %521 = vmatpush1.msra.mxu0 0.0
  %522 = vmatprep.subr.mxu0 0.0
  %523 = vmatpush1.msra.mxu0 0.0
  %524 = vmatprep.subr.mxu0 0.0
  %525 = vmatpush1.msra.mxu0 0.0
  %526 = vmatprep.subr.mxu0 0.0
  %527 = vmatpush1.msra.mxu0 0.0
  %528 = vmatprep.subr.mxu0 0.0
  %529 = vmatpush1.msra.mxu0 0.0
  %530 = vmatprep.subr.mxu0 0.0
  %531 = vmatpush1.msra.mxu0 0.0
  %532 = vmatprep.subr.mxu0 0.0
  %533 = vmatpush1.msra.mxu0 0.0
  %534 = vmatprep.subr.mxu0 0.0
  %535 = vmatpush1.msra.mxu0 0.0
  %536 = vmatprep.subr.mxu0 0.0
  %537 = vmatpush1.msra.mxu0 0.0
  %538 = vmatprep.mubr.f32.mxu0 0.0
  %539 = vmatmul.mubr.f32.gmra.mrb[0].mxu0 %v462
  %v540 = vpop.f32.mrb[0].mxu0
  %v541 = vadd.f32 0.0, %v540
  %v542 = vpop.f32.mrb[0].mxu0
  %v543 = vadd.f32 0.0, %v542
  %544 = vdwg.mxu0
  %545 = vmatprep.subr.mxu0 0.0
  %546 = vmatpush1.msra.mxu0 %v472
  %547 = vmatprep.subr.mxu0 0.0
  %548 = vmatpush1.msra.mxu0 0.0
  %549 = vmatprep.subr.mxu0 0.0
  %550 = vmatpush1.msra.mxu0 0.0
  %551 = vmatprep.subr.mxu0 0.0
  %552 = vmatpush1.msra.mxu0 0.0
  %553 = vmatprep.subr.mxu0 0.0
  %554 = vmatpush1.msra.mxu0 0.0
  %555 = vmatprep.subr.mxu0 0.0
  %556 = vmatpush1.msra.mxu0 0.0
  %557 = vmatprep.subr.mxu0 0.0
  %558 = vmatpush1.msra.mxu0 0.0
  %559 = vmatprep.subr.mxu0 0.0
  %560 = vmatpush1.msra.mxu0 0.0
  %561 = vmatprep.subr.mxu0 0.0
  %562 = vmatpush1.msra.mxu0 0.0
  %563 = vmatprep.subr.mxu0 0.0
  %564 = vmatpush1.msra.mxu0 0.0
  %565 = vmatprep.subr.mxu0 0.0
  %566 = vmatpush1.msra.mxu0 0.0
  %567 = vmatprep.subr.mxu0 0.0
  %568 = vmatpush1.msra.mxu0 0.0
  %569 = vmatprep.subr.mxu0 0.0
  %570 = vmatpush1.msra.mxu0 0.0
  %571 = vmatprep.subr.mxu0 0.0
  %572 = vmatpush1.msra.mxu0 0.0
  %573 = vmatprep.subr.mxu0 0.0
  %574 = vmatpush1.msra.mxu0 0.0
  %575 = vmatprep.subr.mxu0 0.0
  %576 = vmatpush1.msra.mxu0 0.0
  %577 = vmatprep.subr.mxu0 0.0
  %578 = vmatpush1.msra.mxu0 0.0
  %579 = vmatprep.subr.mxu0 0.0
  %580 = vmatpush1.msra.mxu0 0.0
  %581 = vmatprep.subr.mxu0 0.0
  %582 = vmatpush1.msra.mxu0 0.0
  %583 = vmatprep.subr.mxu0 0.0
  %584 = vmatpush1.msra.mxu0 0.0
  %585 = vmatprep.subr.mxu0 0.0
  %586 = vmatpush1.msra.mxu0 0.0
  %587 = vmatprep.subr.mxu0 0.0
  %588 = vmatpush1.msra.mxu0 0.0
  %589 = vmatprep.subr.mxu0 0.0
  %590 = vmatpush1.msra.mxu0 0.0
  %591 = vmatprep.subr.mxu0 0.0
  %592 = vmatpush1.msra.mxu0 0.0
  %593 = vmatprep.subr.mxu0 0.0
  %594 = vmatpush1.msra.mxu0 0.0
  %595 = vmatprep.subr.mxu0 0.0
  %596 = vmatpush1.msra.mxu0 0.0
  %597 = vmatprep.subr.mxu0 0.0
  %598 = vmatpush1.msra.mxu0 0.0
  %599 = vmatprep.subr.mxu0 0.0
  %600 = vmatpush1.msra.mxu0 0.0
  %601 = vmatprep.subr.mxu0 0.0
  %602 = vmatpush1.msra.mxu0 0.0
  %603 = vmatprep.subr.mxu0 0.0
  %604 = vmatpush1.msra.mxu0 0.0
  %605 = vmatprep.subr.mxu0 0.0
  %606 = vmatpush1.msra.mxu0 0.0
  %607 = vmatprep.subr.mxu0 0.0
  %608 = vmatpush1.msra.mxu0 0.0
  %609 = vmatprep.mubr.f32.mxu0 0.0
  %610 = vmatmul.mubr.f32.gmra.mrb[0].mxu0 %v462
  %v611 = vpop.f32.mrb[0].mxu0
  %v612 = vadd.f32 0.0, %v611
  %v613 = vpop.f32.mrb[0].mxu0
  %614 = vdwg.mxu0
  %v615 = vadd.f32 %v459, %v541
  %v616 = vadd.f32 %v459, %v543
  %v617 = vadd.f32 %v459, %v612
  %618 = vrot.lane.b32.xlu0 %v455, 124
  %v619 = vpop.permute.xlu0 %618
  %622 = vrot.lane.b32.xlu0 %v238, 59
  %v623 = vpop.permute.xlu0 %622
  %624 = vrot.lane.b32.xlu0 %v240, 59
  %v625 = vpop.permute.xlu0 %624
  %626 = vrot.lane.b32.xlu0 %v309, 59
  %v627 = vpop.permute.xlu0 %626
  %vm628 = vcmask 482304
  %v629 = vsel %vm628, %v623, %v625
  %v630 = vsel %vm628, %v625, %v627
  %v631 = vsel %vm461, %v619, 0
  %v633 = vsel %vm464, %v629, 0
  %v635 = vsel %vm464, %v630, 0
  %v637 = vsel %vm464, %v627, 0
  %639 = vmatprep.subr.mxu0 %v635
  %640 = vmatpush1.msra.mxu0 %v633
  %641 = vmatprep.subr.mxu0 0.0
  %642 = vmatpush1.msra.mxu0 0.0
  %643 = vmatprep.subr.mxu0 0.0
  %644 = vmatpush1.msra.mxu0 0.0
  %645 = vmatprep.subr.mxu0 0.0
  %646 = vmatpush1.msra.mxu0 0.0
  %647 = vmatprep.subr.mxu0 0.0
  %648 = vmatpush1.msra.mxu0 0.0
  %649 = vmatprep.subr.mxu0 0.0
  %650 = vmatpush1.msra.mxu0 0.0
  %651 = vmatprep.subr.mxu0 0.0
  %652 = vmatpush1.msra.mxu0 0.0
  %653 = vmatprep.subr.mxu0 0.0
  %654 = vmatpush1.msra.mxu0 0.0
  %655 = vmatprep.subr.mxu0 0.0
  %656 = vmatpush1.msra.mxu0 0.0
  %657 = vmatprep.subr.mxu0 0.0
  %658 = vmatpush1.msra.mxu0 0.0
  %659 = vmatprep.subr.mxu0 0.0
  %660 = vmatpush1.msra.mxu0 0.0
  %661 = vmatprep.subr.mxu0 0.0
  %662 = vmatpush1.msra.mxu0 0.0
  %663 = vmatprep.subr.mxu0 0.0
  %664 = vmatpush1.msra.mxu0 0.0
  %665 = vmatprep.subr.mxu0 0.0
  %666 = vmatpush1.msra.mxu0 0.0
  %667 = vmatprep.subr.mxu0 0.0
  %668 = vmatpush1.msra.mxu0 0.0
  %669 = vmatprep.subr.mxu0 0.0
  %670 = vmatpush1.msra.mxu0 0.0
  %671 = vmatprep.subr.mxu0 0.0
  %672 = vmatpush1.msra.mxu0 0.0
  %673 = vmatprep.subr.mxu0 0.0
  %674 = vmatpush1.msra.mxu0 0.0
  %675 = vmatprep.subr.mxu0 0.0
  %676 = vmatpush1.msra.mxu0 0.0
  %677 = vmatprep.subr.mxu0 0.0
  %678 = vmatpush1.msra.mxu0 0.0
  %679 = vmatprep.subr.mxu0 0.0
  %680 = vmatpush1.msra.mxu0 0.0
  %681 = vmatprep.subr.mxu0 0.0
  %682 = vmatpush1.msra.mxu0 0.0
  %683 = vmatprep.subr.mxu0 0.0
  %684 = vmatpush1.msra.mxu0 0.0
  %685 = vmatprep.subr.mxu0 0.0
  %686 = vmatpush1.msra.mxu0 0.0
  %687 = vmatprep.subr.mxu0 0.0
  %688 = vmatpush1.msra.mxu0 0.0
  %689 = vmatprep.subr.mxu0 0.0
  %690 = vmatpush1.msra.mxu0 0.0
  %691 = vmatprep.subr.mxu0 0.0
  %692 = vmatpush1.msra.mxu0 0.0
  %693 = vmatprep.subr.mxu0 0.0
  %694 = vmatpush1.msra.mxu0 0.0
  %695 = vmatprep.subr.mxu0 0.0
  %696 = vmatpush1.msra.mxu0 0.0
  %697 = vmatprep.subr.mxu0 0.0
  %698 = vmatpush1.msra.mxu0 0.0
  %699 = vmatprep.subr.mxu0 0.0
  %700 = vmatpush1.msra.mxu0 0.0
  %701 = vmatprep.subr.mxu0 0.0
  %702 = vmatpush1.msra.mxu0 0.0
  %703 = vmatprep.mubr.f32.mxu0 0.0
  %704 = vmatmul.mubr.f32.gmra.mrb[0].mxu0 %v631
  %v705 = vpop.f32.mrb[0].mxu0
  %v706 = vadd.f32 0.0, %v705
  %v707 = vpop.f32.mrb[0].mxu0
  %v708 = vadd.f32 0.0, %v707
  %709 = vdwg.mxu0
  %710 = vmatprep.subr.mxu0 0.0
  %711 = vmatpush1.msra.mxu0 %v637
  %712 = vmatprep.subr.mxu0 0.0
  %713 = vmatpush1.msra.mxu0 0.0
  %714 = vmatprep.subr.mxu0 0.0
  %715 = vmatpush1.msra.mxu0 0.0
  %716 = vmatprep.subr.mxu0 0.0
  %717 = vmatpush1.msra.mxu0 0.0
  %718 = vmatprep.subr.mxu0 0.0
  %719 = vmatpush1.msra.mxu0 0.0
  %720 = vmatprep.subr.mxu0 0.0
  %721 = vmatpush1.msra.mxu0 0.0
  %722 = vmatprep.subr.mxu0 0.0
  %723 = vmatpush1.msra.mxu0 0.0
  %724 = vmatprep.subr.mxu0 0.0
  %725 = vmatpush1.msra.mxu0 0.0
  %726 = vmatprep.subr.mxu0 0.0
  %727 = vmatpush1.msra.mxu0 0.0
  %728 = vmatprep.subr.mxu0 0.0
  %729 = vmatpush1.msra.mxu0 0.0
  %730 = vmatprep.subr.mxu0 0.0
  %731 = vmatpush1.msra.mxu0 0.0
  %732 = vmatprep.subr.mxu0 0.0
  %733 = vmatpush1.msra.mxu0 0.0
  %734 = vmatprep.subr.mxu0 0.0
  %735 = vmatpush1.msra.mxu0 0.0
  %736 = vmatprep.subr.mxu0 0.0
  %737 = vmatpush1.msra.mxu0 0.0
  %738 = vmatprep.subr.mxu0 0.0
  %739 = vmatpush1.msra.mxu0 0.0
  %740 = vmatprep.subr.mxu0 0.0
  %741 = vmatpush1.msra.mxu0 0.0
  %742 = vmatprep.subr.mxu0 0.0
  %743 = vmatpush1.msra.mxu0 0.0
  %744 = vmatprep.subr.mxu0 0.0
  %745 = vmatpush1.msra.mxu0 0.0
  %746 = vmatprep.subr.mxu0 0.0
  %747 = vmatpush1.msra.mxu0 0.0
  %748 = vmatprep.subr.mxu0 0.0
  %749 = vmatpush1.msra.mxu0 0.0
  %750 = vmatprep.subr.mxu0 0.0
  %751 = vmatpush1.msra.mxu0 0.0
  %752 = vmatprep.subr.mxu0 0.0
  %753 = vmatpush1.msra.mxu0 0.0
  %754 = vmatprep.subr.mxu0 0.0
  %755 = vmatpush1.msra.mxu0 0.0
  %756 = vmatprep.subr.mxu0 0.0
  %757 = vmatpush1.msra.mxu0 0.0
  %758 = vmatprep.subr.mxu0 0.0
  %759 = vmatpush1.msra.mxu0 0.0
  %760 = vmatprep.subr.mxu0 0.0
  %761 = vmatpush1.msra.mxu0 0.0
  %762 = vmatprep.subr.mxu0 0.0
  %763 = vmatpush1.msra.mxu0 0.0
  %764 = vmatprep.subr.mxu0 0.0
  %765 = vmatpush1.msra.mxu0 0.0
  %766 = vmatprep.subr.mxu0 0.0
  %767 = vmatpush1.msra.mxu0 0.0
  %768 = vmatprep.subr.mxu0 0.0
  %769 = vmatpush1.msra.mxu0 0.0
  %770 = vmatprep.subr.mxu0 0.0
  %771 = vmatpush1.msra.mxu0 0.0
  %772 = vmatprep.subr.mxu0 0.0
  %773 = vmatpush1.msra.mxu0 0.0
  %774 = vmatprep.mubr.f32.mxu0 0.0
  %775 = vmatmul.mubr.f32.gmra.mrb[0].mxu0 %v631
  %v776 = vpop.f32.mrb[0].mxu0
  %v777 = vadd.f32 0.0, %v776
  %v778 = vpop.f32.mrb[0].mxu0
  %779 = vdwg.mxu0
  %v780 = vadd.f32 %v615, %v706
  %v781 = vadd.f32 %v616, %v708
  %v782 = vadd.f32 %v617, %v777
  %783 = vrot.lane.b32.xlu0 %v455, 120
  %v784 = vpop.permute.xlu0 %783
  %785 = vrot.lane.b32.xlu0 %v167, 127
  %v786 = vpop.permute.xlu0 %785
  %787 = vrot.lane.b32.xlu0 %v169, 127
  %v788 = vpop.permute.xlu0 %787
  %789 = vrot.lane.b32.xlu0 %v238, 127
  %v790 = vpop.permute.xlu0 %789
  %vm791 = vcmask 1039360
  %v792 = vsel %vm791, %v786, %v788
  %v793 = vsel %vm791, %v788, %v790
  %v794 = vsel %vm461, %v784, 0
  %v796 = vsel %vm464, %v792, 0
  %v798 = vsel %vm464, %v793, 0
  %v800 = vsel %vm464, %v790, 0
  %802 = vmatprep.subr.mxu0 %v798
  %803 = vmatpush1.msra.mxu0 %v796
  %804 = vmatprep.subr.mxu0 0.0
  %805 = vmatpush1.msra.mxu0 0.0
  %806 = vmatprep.subr.mxu0 0.0
  %807 = vmatpush1.msra.mxu0 0.0
  %808 = vmatprep.subr.mxu0 0.0
  %809 = vmatpush1.msra.mxu0 0.0
  %810 = vmatprep.subr.mxu0 0.0
  %811 = vmatpush1.msra.mxu0 0.0
  %812 = vmatprep.subr.mxu0 0.0
  %813 = vmatpush1.msra.mxu0 0.0
  %814 = vmatprep.subr.mxu0 0.0
  %815 = vmatpush1.msra.mxu0 0.0
  %816 = vmatprep.subr.mxu0 0.0
  %817 = vmatpush1.msra.mxu0 0.0
  %818 = vmatprep.subr.mxu0 0.0
  %819 = vmatpush1.msra.mxu0 0.0
  %820 = vmatprep.subr.mxu0 0.0
  %821 = vmatpush1.msra.mxu0 0.0
  %822 = vmatprep.subr.mxu0 0.0
  %823 = vmatpush1.msra.mxu0 0.0
  %824 = vmatprep.subr.mxu0 0.0
  %825 = vmatpush1.msra.mxu0 0.0
  %826 = vmatprep.subr.mxu0 0.0
  %827 = vmatpush1.msra.mxu0 0.0
  %828 = vmatprep.subr.mxu0 0.0
  %829 = vmatpush1.msra.mxu0 0.0
  %830 = vmatprep.subr.mxu0 0.0
  %831 = vmatpush1.msra.mxu0 0.0
  %832 = vmatprep.subr.mxu0 0.0
  %833 = vmatpush1.msra.mxu0 0.0
  %834 = vmatprep.subr.mxu0 0.0
  %835 = vmatpush1.msra.mxu0 0.0
  %836 = vmatprep.subr.mxu0 0.0
  %837 = vmatpush1.msra.mxu0 0.0
  %838 = vmatprep.subr.mxu0 0.0
  %839 = vmatpush1.msra.mxu0 0.0
  %840 = vmatprep.subr.mxu0 0.0
  %841 = vmatpush1.msra.mxu0 0.0
  %842 = vmatprep.subr.mxu0 0.0
  %843 = vmatpush1.msra.mxu0 0.0
  %844 = vmatprep.subr.mxu0 0.0
  %845 = vmatpush1.msra.mxu0 0.0
  %846 = vmatprep.subr.mxu0 0.0
  %847 = vmatpush1.msra.mxu0 0.0
  %848 = vmatprep.subr.mxu0 0.0
  %849 = vmatpush1.msra.mxu0 0.0
  %850 = vmatprep.subr.mxu0 0.0
  %851 = vmatpush1.msra.mxu0 0.0
  %852 = vmatprep.subr.mxu0 0.0
  %853 = vmatpush1.msra.mxu0 0.0
  %854 = vmatprep.subr.mxu0 0.0
  %855 = vmatpush1.msra.mxu0 0.0
  %856 = vmatprep.subr.mxu0 0.0
  %857 = vmatpush1.msra.mxu0 0.0
  %858 = vmatprep.subr.mxu0 0.0
  %859 = vmatpush1.msra.mxu0 0.0
  %860 = vmatprep.subr.mxu0 0.0
  %861 = vmatpush1.msra.mxu0 0.0
  %862 = vmatprep.subr.mxu0 0.0
  %863 = vmatpush1.msra.mxu0 0.0
  %864 = vmatprep.subr.mxu0 0.0
  %865 = vmatpush1.msra.mxu0 0.0
  %866 = vmatprep.mubr.f32.mxu0 0.0
  %867 = vmatmul.mubr.f32.gmra.mrb[0].mxu0 %v794
  %v868 = vpop.f32.mrb[0].mxu0
  %v869 = vadd.f32 0.0, %v868
  %v870 = vpop.f32.mrb[0].mxu0
  %v871 = vadd.f32 0.0, %v870
  %872 = vdwg.mxu0
  %873 = vmatprep.subr.mxu0 0.0
  %874 = vmatpush1.msra.mxu0 %v800
  %875 = vmatprep.subr.mxu0 0.0
  %876 = vmatpush1.msra.mxu0 0.0
  %877 = vmatprep.subr.mxu0 0.0
  %878 = vmatpush1.msra.mxu0 0.0
  %879 = vmatprep.subr.mxu0 0.0
  %880 = vmatpush1.msra.mxu0 0.0
  %881 = vmatprep.subr.mxu0 0.0
  %882 = vmatpush1.msra.mxu0 0.0
  %883 = vmatprep.subr.mxu0 0.0
  %884 = vmatpush1.msra.mxu0 0.0
  %885 = vmatprep.subr.mxu0 0.0
  %886 = vmatpush1.msra.mxu0 0.0
  %887 = vmatprep.subr.mxu0 0.0
  %888 = vmatpush1.msra.mxu0 0.0
  %889 = vmatprep.subr.mxu0 0.0
  %890 = vmatpush1.msra.mxu0 0.0
  %891 = vmatprep.subr.mxu0 0.0
  %892 = vmatpush1.msra.mxu0 0.0
  %893 = vmatprep.subr.mxu0 0.0
  %894 = vmatpush1.msra.mxu0 0.0
  %895 = vmatprep.subr.mxu0 0.0
  %896 = vmatpush1.msra.mxu0 0.0
  %897 = vmatprep.subr.mxu0 0.0
  %898 = vmatpush1.msra.mxu0 0.0
  %899 = vmatprep.subr.mxu0 0.0
  %900 = vmatpush1.msra.mxu0 0.0
  %901 = vmatprep.subr.mxu0 0.0
  %902 = vmatpush1.msra.mxu0 0.0
  %903 = vmatprep.subr.mxu0 0.0
  %904 = vmatpush1.msra.mxu0 0.0
  %905 = vmatprep.subr.mxu0 0.0
  %906 = vmatpush1.msra.mxu0 0.0
  %907 = vmatprep.subr.mxu0 0.0
  %908 = vmatpush1.msra.mxu0 0.0
  %909 = vmatprep.subr.mxu0 0.0
  %910 = vmatpush1.msra.mxu0 0.0
  %911 = vmatprep.subr.mxu0 0.0
  %912 = vmatpush1.msra.mxu0 0.0
  %913 = vmatprep.subr.mxu0 0.0
  %914 = vmatpush1.msra.mxu0 0.0
  %915 = vmatprep.subr.mxu0 0.0
  %916 = vmatpush1.msra.mxu0 0.0
  %917 = vmatprep.subr.mxu0 0.0
  %918 = vmatpush1.msra.mxu0 0.0
  %919 = vmatprep.subr.mxu0 0.0
  %920 = vmatpush1.msra.mxu0 0.0
  %921 = vmatprep.subr.mxu0 0.0
  %922 = vmatpush1.msra.mxu0 0.0
  %923 = vmatprep.subr.mxu0 0.0
  %924 = vmatpush1.msra.mxu0 0.0
  %925 = vmatprep.subr.mxu0 0.0
  %926 = vmatpush1.msra.mxu0 0.0
  %927 = vmatprep.subr.mxu0 0.0
  %928 = vmatpush1.msra.mxu0 0.0
  %929 = vmatprep.subr.mxu0 0.0
  %930 = vmatpush1.msra.mxu0 0.0
  %931 = vmatprep.subr.mxu0 0.0
  %932 = vmatpush1.msra.mxu0 0.0
  %933 = vmatprep.subr.mxu0 0.0
  %934 = vmatpush1.msra.mxu0 0.0
  %935 = vmatprep.subr.mxu0 0.0
  %936 = vmatpush1.msra.mxu0 0.0
  %937 = vmatprep.mubr.f32.mxu0 0.0
  %938 = vmatmul.mubr.f32.gmra.mrb[0].mxu0 %v794
  %v939 = vpop.f32.mrb[0].mxu0
  %v940 = vadd.f32 0.0, %v939
  %v941 = vpop.f32.mrb[0].mxu0
  %942 = vdwg.mxu0
  %v943 = vadd.f32 %v780, %v869
  %v944 = vadd.f32 %v781, %v871
  %v945 = vadd.f32 %v782, %v940
  %946 = vrot.lane.b32.xlu0 %v455, 116
  %v947 = vpop.permute.xlu0 %946
  %948 = vrot.lane.b32.xlu0 %v238, 58
  %v949 = vpop.permute.xlu0 %948
  %950 = vrot.lane.b32.xlu0 %v240, 58
  %v951 = vpop.permute.xlu0 %950
  %952 = vrot.lane.b32.xlu0 %v309, 58
  %v953 = vpop.permute.xlu0 %952
  %vm954 = vcmask 474112
  %v955 = vsel %vm954, %v949, %v951
  %v956 = vsel %vm954, %v951, %v953
  %v957 = vsel %vm461, %v947, 0
  %v959 = vsel %vm464, %v955, 0
  %v961 = vsel %vm464, %v956, 0
  %v963 = vsel %vm464, %v953, 0
  %965 = vmatprep.subr.mxu0 %v961
  %966 = vmatpush1.msra.mxu0 %v959
  %967 = vmatprep.subr.mxu0 0.0
  %968 = vmatpush1.msra.mxu0 0.0
  %969 = vmatprep.subr.mxu0 0.0
  %970 = vmatpush1.msra.mxu0 0.0
  %971 = vmatprep.subr.mxu0 0.0
  %972 = vmatpush1.msra.mxu0 0.0
  %973 = vmatprep.subr.mxu0 0.0
  %974 = vmatpush1.msra.mxu0 0.0
  %975 = vmatprep.subr.mxu0 0.0
  %976 = vmatpush1.msra.mxu0 0.0
  %977 = vmatprep.subr.mxu0 0.0
  %978 = vmatpush1.msra.mxu0 0.0
  %979 = vmatprep.subr.mxu0 0.0
  %980 = vmatpush1.msra.mxu0 0.0
  %981 = vmatprep.subr.mxu0 0.0
  %982 = vmatpush1.msra.mxu0 0.0
  %983 = vmatprep.subr.mxu0 0.0
  %984 = vmatpush1.msra.mxu0 0.0
  %985 = vmatprep.subr.mxu0 0.0
  %986 = vmatpush1.msra.mxu0 0.0
  %987 = vmatprep.subr.mxu0 0.0
  %988 = vmatpush1.msra.mxu0 0.0
  %989 = vmatprep.subr.mxu0 0.0
  %990 = vmatpush1.msra.mxu0 0.0
  %991 = vmatprep.subr.mxu0 0.0
  %992 = vmatpush1.msra.mxu0 0.0
  %993 = vmatprep.subr.mxu0 0.0
  %994 = vmatpush1.msra.mxu0 0.0
  %995 = vmatprep.subr.mxu0 0.0
  %996 = vmatpush1.msra.mxu0 0.0
  %997 = vmatprep.subr.mxu0 0.0
  %998 = vmatpush1.msra.mxu0 0.0
  %999 = vmatprep.subr.mxu0 0.0
  %1000 = vmatpush1.msra.mxu0 0.0
  %1001 = vmatprep.subr.mxu0 0.0
  %1002 = vmatpush1.msra.mxu0 0.0
  %1003 = vmatprep.subr.mxu0 0.0
  %1004 = vmatpush1.msra.mxu0 0.0
  %1005 = vmatprep.subr.mxu0 0.0
  %1006 = vmatpush1.msra.mxu0 0.0
  %1007 = vmatprep.subr.mxu0 0.0
  %1008 = vmatpush1.msra.mxu0 0.0
  %1009 = vmatprep.subr.mxu0 0.0
  %1010 = vmatpush1.msra.mxu0 0.0
  %1011 = vmatprep.subr.mxu0 0.0
  %1012 = vmatpush1.msra.mxu0 0.0
  %1013 = vmatprep.subr.mxu0 0.0
  %1014 = vmatpush1.msra.mxu0 0.0
  %1015 = vmatprep.subr.mxu0 0.0
  %1016 = vmatpush1.msra.mxu0 0.0
  %1017 = vmatprep.subr.mxu0 0.0
  %1018 = vmatpush1.msra.mxu0 0.0
  %1019 = vmatprep.subr.mxu0 0.0
  %1020 = vmatpush1.msra.mxu0 0.0
  %1021 = vmatprep.subr.mxu0 0.0
  %1022 = vmatpush1.msra.mxu0 0.0
  %1023 = vmatprep.subr.mxu0 0.0
  %1024 = vmatpush1.msra.mxu0 0.0
  %1025 = vmatprep.subr.mxu0 0.0
  %1026 = vmatpush1.msra.mxu0 0.0
  %1027 = vmatprep.subr.mxu0 0.0
  %1028 = vmatpush1.msra.mxu0 0.0
  %1029 = vmatprep.mubr.f32.mxu0 0.0
  %1030 = vmatmul.mubr.f32.gmra.mrb[0].mxu0 %v957
  %v1031 = vpop.f32.mrb[0].mxu0
  %v1032 = vadd.f32 0.0, %v1031
  %v1033 = vpop.f32.mrb[0].mxu0
  %v1034 = vadd.f32 0.0, %v1033
  %1035 = vdwg.mxu0
  %1036 = vmatprep.subr.mxu0 0.0
  %1037 = vmatpush1.msra.mxu0 %v963
  %1038 = vmatprep.subr.mxu0 0.0
  %1039 = vmatpush1.msra.mxu0 0.0
  %1040 = vmatprep.subr.mxu0 0.0
  %1041 = vmatpush1.msra.mxu0 0.0
  %1042 = vmatprep.subr.mxu0 0.0
  %1043 = vmatpush1.msra.mxu0 0.0
  %1044 = vmatprep.subr.mxu0 0.0
  %1045 = vmatpush1.msra.mxu0 0.0
  %1046 = vmatprep.subr.mxu0 0.0
  %1047 = vmatpush1.msra.mxu0 0.0
  %1048 = vmatprep.subr.mxu0 0.0
  %1049 = vmatpush1.msra.mxu0 0.0
  %1050 = vmatprep.subr.mxu0 0.0
  %1051 = vmatpush1.msra.mxu0 0.0
  %1052 = vmatprep.subr.mxu0 0.0
  %1053 = vmatpush1.msra.mxu0 0.0
  %1054 = vmatprep.subr.mxu0 0.0
  %1055 = vmatpush1.msra.mxu0 0.0
  %1056 = vmatprep.subr.mxu0 0.0
  %1057 = vmatpush1.msra.mxu0 0.0
  %1058 = vmatprep.subr.mxu0 0.0
  %1059 = vmatpush1.msra.mxu0 0.0
  %1060 = vmatprep.subr.mxu0 0.0
  %1061 = vmatpush1.msra.mxu0 0.0
  %1062 = vmatprep.subr.mxu0 0.0
  %1063 = vmatpush1.msra.mxu0 0.0
  %1064 = vmatprep.subr.mxu0 0.0
  %1065 = vmatpush1.msra.mxu0 0.0
  %1066 = vmatprep.subr.mxu0 0.0
  %1067 = vmatpush1.msra.mxu0 0.0
  %1068 = vmatprep.subr.mxu0 0.0
  %1069 = vmatpush1.msra.mxu0 0.0
  %1070 = vmatprep.subr.mxu0 0.0
  %1071 = vmatpush1.msra.mxu0 0.0
  %1072 = vmatprep.subr.mxu0 0.0
  %1073 = vmatpush1.msra.mxu0 0.0
  %1074 = vmatprep.subr.mxu0 0.0
  %1075 = vmatpush1.msra.mxu0 0.0
  %1076 = vmatprep.subr.mxu0 0.0
  %1077 = vmatpush1.msra.mxu0 0.0
  %1078 = vmatprep.subr.mxu0 0.0
  %1079 = vmatpush1.msra.mxu0 0.0
  %1080 = vmatprep.subr.mxu0 0.0
  %1081 = vmatpush1.msra.mxu0 0.0
  %1082 = vmatprep.subr.mxu0 0.0
  %1083 = vmatpush1.msra.mxu0 0.0
  %1084 = vmatprep.subr.mxu0 0.0
  %1085 = vmatpush1.msra.mxu0 0.0
  %1086 = vmatprep.subr.mxu0 0.0
  %1087 = vmatpush1.msra.mxu0 0.0
  %1088 = vmatprep.subr.mxu0 0.0
  %1089 = vmatpush1.msra.mxu0 0.0
  %1090 = vmatprep.subr.mxu0 0.0
  %1091 = vmatpush1.msra.mxu0 0.0
  %1092 = vmatprep.subr.mxu0 0.0
  %1093 = vmatpush1.msra.mxu0 0.0
  %1094 = vmatprep.subr.mxu0 0.0
  %1095 = vmatpush1.msra.mxu0 0.0
  %1096 = vmatprep.subr.mxu0 0.0
  %1097 = vmatpush1.msra.mxu0 0.0
  %1098 = vmatprep.subr.mxu0 0.0
  %1099 = vmatpush1.msra.mxu0 0.0
  %1100 = vmatprep.mubr.f32.mxu0 0.0
  %1101 = vmatmul.mubr.f32.gmra.mrb[0].mxu0 %v957
  %v1102 = vpop.f32.mrb[0].mxu0
  %v1103 = vadd.f32 0.0, %v1102
  %v1104 = vpop.f32.mrb[0].mxu0
  %1105 = vdwg.mxu0
  %v1106 = vadd.f32 %v943, %v1032
  %v1107 = vadd.f32 %v944, %v1034
  %v1108 = vadd.f32 %v945, %v1103
  %1109 = vrot.lane.b32.xlu0 %v455, 112
  %v1110 = vpop.permute.xlu0 %1109
  %1111 = vrot.lane.b32.xlu0 %v167, 126
  %v1112 = vpop.permute.xlu0 %1111
  %1113 = vrot.lane.b32.xlu0 %v169, 126
  %v1114 = vpop.permute.xlu0 %1113
  %1115 = vrot.lane.b32.xlu0 %v238, 126
  %v1116 = vpop.permute.xlu0 %1115
  %vm1117 = vcmask 1031168
  %v1118 = vsel %vm1117, %v1112, %v1114
  %v1119 = vsel %vm1117, %v1114, %v1116
  %v1120 = vsel %vm461, %v1110, 0
  %v1122 = vsel %vm464, %v1118, 0
  %v1124 = vsel %vm464, %v1119, 0
  %v1126 = vsel %vm464, %v1116, 0
  %1128 = vmatprep.subr.mxu0 %v1124
  %1129 = vmatpush1.msra.mxu0 %v1122
  %1130 = vmatprep.subr.mxu0 0.0
  %1131 = vmatpush1.msra.mxu0 0.0
  %1132 = vmatprep.subr.mxu0 0.0
  %1133 = vmatpush1.msra.mxu0 0.0
  %1134 = vmatprep.subr.mxu0 0.0
  %1135 = vmatpush1.msra.mxu0 0.0
  %1136 = vmatprep.subr.mxu0 0.0
  %1137 = vmatpush1.msra.mxu0 0.0
  %1138 = vmatprep.subr.mxu0 0.0
  %1139 = vmatpush1.msra.mxu0 0.0
  %1140 = vmatprep.subr.mxu0 0.0
  %1141 = vmatpush1.msra.mxu0 0.0
  %1142 = vmatprep.subr.mxu0 0.0
  %1143 = vmatpush1.msra.mxu0 0.0
  %1144 = vmatprep.subr.mxu0 0.0
  %1145 = vmatpush1.msra.mxu0 0.0
  %1146 = vmatprep.subr.mxu0 0.0
  %1147 = vmatpush1.msra.mxu0 0.0
  %1148 = vmatprep.subr.mxu0 0.0
  %1149 = vmatpush1.msra.mxu0 0.0
  %1150 = vmatprep.subr.mxu0 0.0
  %1151 = vmatpush1.msra.mxu0 0.0
  %1152 = vmatprep.subr.mxu0 0.0
  %1153 = vmatpush1.msra.mxu0 0.0
  %1154 = vmatprep.subr.mxu0 0.0
  %1155 = vmatpush1.msra.mxu0 0.0
  %1156 = vmatprep.subr.mxu0 0.0
  %1157 = vmatpush1.msra.mxu0 0.0
  %1158 = vmatprep.subr.mxu0 0.0
  %1159 = vmatpush1.msra.mxu0 0.0
  %1160 = vmatprep.subr.mxu0 0.0
  %1161 = vmatpush1.msra.mxu0 0.0
  %1162 = vmatprep.subr.mxu0 0.0
  %1163 = vmatpush1.msra.mxu0 0.0
  %1164 = vmatprep.subr.mxu0 0.0
  %1165 = vmatpush1.msra.mxu0 0.0
  %1166 = vmatprep.subr.mxu0 0.0
  %1167 = vmatpush1.msra.mxu0 0.0
  %1168 = vmatprep.subr.mxu0 0.0
  %1169 = vmatpush1.msra.mxu0 0.0
  %1170 = vmatprep.subr.mxu0 0.0
  %1171 = vmatpush1.msra.mxu0 0.0
  %1172 = vmatprep.subr.mxu0 0.0
  %1173 = vmatpush1.msra.mxu0 0.0
  %1174 = vmatprep.subr.mxu0 0.0
  %1175 = vmatpush1.msra.mxu0 0.0
  %1176 = vmatprep.subr.mxu0 0.0
  %1177 = vmatpush1.msra.mxu0 0.0
  %1178 = vmatprep.subr.mxu0 0.0
  %1179 = vmatpush1.msra.mxu0 0.0
  %1180 = vmatprep.subr.mxu0 0.0
  %1181 = vmatpush1.msra.mxu0 0.0
  %1182 = vmatprep.subr.mxu0 0.0
  %1183 = vmatpush1.msra.mxu0 0.0
  %1184 = vmatprep.subr.mxu0 0.0
  %1185 = vmatpush1.msra.mxu0 0.0
  %1186 = vmatprep.subr.mxu0 0.0
  %1187 = vmatpush1.msra.mxu0 0.0
  %1188 = vmatprep.subr.mxu0 0.0
  %1189 = vmatpush1.msra.mxu0 0.0
  %1190 = vmatprep.subr.mxu0 0.0
  %1191 = vmatpush1.msra.mxu0 0.0
  %1192 = vmatprep.mubr.f32.mxu0 0.0
  %1193 = vmatmul.mubr.f32.gmra.mrb[0].mxu0 %v1120
  %v1194 = vpop.f32.mrb[0].mxu0
  %v1195 = vadd.f32 0.0, %v1194
  %v1196 = vpop.f32.mrb[0].mxu0
  %v1197 = vadd.f32 0.0, %v1196
  %1198 = vdwg.mxu0
  %1199 = vmatprep.subr.mxu0 0.0
  %1200 = vmatpush1.msra.mxu0 %v1126
  %1201 = vmatprep.subr.mxu0 0.0
  %1202 = vmatpush1.msra.mxu0 0.0
  %1203 = vmatprep.subr.mxu0 0.0
  %1204 = vmatpush1.msra.mxu0 0.0
  %1205 = vmatprep.subr.mxu0 0.0
  %1206 = vmatpush1.msra.mxu0 0.0
  %1207 = vmatprep.subr.mxu0 0.0
  %1208 = vmatpush1.msra.mxu0 0.0
  %1209 = vmatprep.subr.mxu0 0.0
  %1210 = vmatpush1.msra.mxu0 0.0
  %1211 = vmatprep.subr.mxu0 0.0
  %1212 = vmatpush1.msra.mxu0 0.0
  %1213 = vmatprep.subr.mxu0 0.0
  %1214 = vmatpush1.msra.mxu0 0.0
  %1215 = vmatprep.subr.mxu0 0.0
  %1216 = vmatpush1.msra.mxu0 0.0
  %1217 = vmatprep.subr.mxu0 0.0
  %1218 = vmatpush1.msra.mxu0 0.0
  %1219 = vmatprep.subr.mxu0 0.0
  %1220 = vmatpush1.msra.mxu0 0.0
  %1221 = vmatprep.subr.mxu0 0.0
  %1222 = vmatpush1.msra.mxu0 0.0
  %1223 = vmatprep.subr.mxu0 0.0
  %1224 = vmatpush1.msra.mxu0 0.0
  %1225 = vmatprep.subr.mxu0 0.0
  %1226 = vmatpush1.msra.mxu0 0.0
  %1227 = vmatprep.subr.mxu0 0.0
  %1228 = vmatpush1.msra.mxu0 0.0
  %1229 = vmatprep.subr.mxu0 0.0
  %1230 = vmatpush1.msra.mxu0 0.0
  %1231 = vmatprep.subr.mxu0 0.0
  %1232 = vmatpush1.msra.mxu0 0.0
  %1233 = vmatprep.subr.mxu0 0.0
  %1234 = vmatpush1.msra.mxu0 0.0
  %1235 = vmatprep.subr.mxu0 0.0
  %1236 = vmatpush1.msra.mxu0 0.0
  %1237 = vmatprep.subr.mxu0 0.0
  %1238 = vmatpush1.msra.mxu0 0.0
  %1239 = vmatprep.subr.mxu0 0.0
  %1240 = vmatpush1.msra.mxu0 0.0
  %1241 = vmatprep.subr.mxu0 0.0
  %1242 = vmatpush1.msra.mxu0 0.0
  %1243 = vmatprep.subr.mxu0 0.0
  %1244 = vmatpush1.msra.mxu0 0.0
  %1245 = vmatprep.subr.mxu0 0.0
  %1246 = vmatpush1.msra.mxu0 0.0
  %1247 = vmatprep.subr.mxu0 0.0
  %1248 = vmatpush1.msra.mxu0 0.0
  %1249 = vmatprep.subr.mxu0 0.0
  %1250 = vmatpush1.msra.mxu0 0.0
  %1251 = vmatprep.subr.mxu0 0.0
  %1252 = vmatpush1.msra.mxu0 0.0
  %1253 = vmatprep.subr.mxu0 0.0
  %1254 = vmatpush1.msra.mxu0 0.0
  %1255 = vmatprep.subr.mxu0 0.0
  %1256 = vmatpush1.msra.mxu0 0.0
  %1257 = vmatprep.subr.mxu0 0.0
  %1258 = vmatpush1.msra.mxu0 0.0
  %1259 = vmatprep.subr.mxu0 0.0
  %1260 = vmatpush1.msra.mxu0 0.0
  %1261 = vmatprep.subr.mxu0 0.0
  %1262 = vmatpush1.msra.mxu0 0.0
  %1263 = vmatprep.mubr.f32.mxu0 0.0
  %1264 = vmatmul.mubr.f32.gmra.mrb[0].mxu0 %v1120
  %v1265 = vpop.f32.mrb[0].mxu0
  %v1266 = vadd.f32 0.0, %v1265
  %v1267 = vpop.f32.mrb[0].mxu0
  %1268 = vdwg.mxu0
  %v1269 = vadd.f32 %v1106, %v1195
  %v1270 = vadd.f32 %v1107, %v1197
  %v1271 = vadd.f32 %v1108, %v1266
  %1272 = vrot.lane.b32.xlu0 %v455, 108
  %v1273 = vpop.permute.xlu0 %1272
  %1277 = vrot.lane.b32.xlu0 %v311, 118
  %v1278 = vpop.permute.xlu0 %1277
  %1279 = vrot.lane.b32.xlu0 %v380, 118
  %v1280 = vpop.permute.xlu0 %1279
  %1281 = vrot.lane.b32.xlu0 %v382, 118
  %v1282 = vpop.permute.xlu0 %1281
  %vm1283 = vcmask 965632
  %v1284 = vsel %vm1283, %v1278, %v1280
  %v1285 = vsel %vm1283, %v1280, %v1282
  %v1286 = vsel %vm461, %v1273, 0
  %v1288 = vsel %vm464, %v1284, 0
  %v1290 = vsel %vm464, %v1285, 0
  %v1292 = vsel %vm464, %v1282, 0
  %1294 = vmatprep.subr.mxu0 %v1290
  %1295 = vmatpush1.msra.mxu0 %v1288
  %1296 = vmatprep.subr.mxu0 0.0
  %1297 = vmatpush1.msra.mxu0 0.0
  %1298 = vmatprep.subr.mxu0 0.0
  %1299 = vmatpush1.msra.mxu0 0.0
  %1300 = vmatprep.subr.mxu0 0.0
  %1301 = vmatpush1.msra.mxu0 0.0
  %1302 = vmatprep.subr.mxu0 0.0
  %1303 = vmatpush1.msra.mxu0 0.0
  %1304 = vmatprep.subr.mxu0 0.0
  %1305 = vmatpush1.msra.mxu0 0.0
  %1306 = vmatprep.subr.mxu0 0.0
  %1307 = vmatpush1.msra.mxu0 0.0
  %1308 = vmatprep.subr.mxu0 0.0
  %1309 = vmatpush1.msra.mxu0 0.0
  %1310 = vmatprep.subr.mxu0 0.0
  %1311 = vmatpush1.msra.mxu0 0.0
  %1312 = vmatprep.subr.mxu0 0.0
  %1313 = vmatpush1.msra.mxu0 0.0
  %1314 = vmatprep.subr.mxu0 0.0
  %1315 = vmatpush1.msra.mxu0 0.0
  %1316 = vmatprep.subr.mxu0 0.0
  %1317 = vmatpush1.msra.mxu0 0.0
  %1318 = vmatprep.subr.mxu0 0.0
  %1319 = vmatpush1.msra.mxu0 0.0
  %1320 = vmatprep.subr.mxu0 0.0
  %1321 = vmatpush1.msra.mxu0 0.0
  %1322 = vmatprep.subr.mxu0 0.0
  %1323 = vmatpush1.msra.mxu0 0.0
  %1324 = vmatprep.subr.mxu0 0.0
  %1325 = vmatpush1.msra.mxu0 0.0
  %1326 = vmatprep.subr.mxu0 0.0
  %1327 = vmatpush1.msra.mxu0 0.0
  %1328 = vmatprep.subr.mxu0 0.0
  %1329 = vmatpush1.msra.mxu0 0.0
  %1330 = vmatprep.subr.mxu0 0.0
  %1331 = vmatpush1.msra.mxu0 0.0
  %1332 = vmatprep.subr.mxu0 0.0
  %1333 = vmatpush1.msra.mxu0 0.0
  %1334 = vmatprep.subr.mxu0 0.0
  %1335 = vmatpush1.msra.mxu0 0.0
  %1336 = vmatprep.subr.mxu0 0.0
  %1337 = vmatpush1.msra.mxu0 0.0
  %1338 = vmatprep.subr.mxu0 0.0
  %1339 = vmatpush1.msra.mxu0 0.0
  %1340 = vmatprep.subr.mxu0 0.0
  %1341 = vmatpush1.msra.mxu0 0.0
  %1342 = vmatprep.subr.mxu0 0.0
  %1343 = vmatpush1.msra.mxu0 0.0
  %1344 = vmatprep.subr.mxu0 0.0
  %1345 = vmatpush1.msra.mxu0 0.0
  %1346 = vmatprep.subr.mxu0 0.0
  %1347 = vmatpush1.msra.mxu0 0.0
  %1348 = vmatprep.subr.mxu0 0.0
  %1349 = vmatpush1.msra.mxu0 0.0
  %1350 = vmatprep.subr.mxu0 0.0
  %1351 = vmatpush1.msra.mxu0 0.0
  %1352 = vmatprep.subr.mxu0 0.0
  %1353 = vmatpush1.msra.mxu0 0.0
  %1354 = vmatprep.subr.mxu0 0.0
  %1355 = vmatpush1.msra.mxu0 0.0
  %1356 = vmatprep.subr.mxu0 0.0
  %1357 = vmatpush1.msra.mxu0 0.0
  %1358 = vmatprep.mubr.f32.mxu0 0.0
  %1359 = vmatmul.mubr.f32.gmra.mrb[0].mxu0 %v1286
  %v1360 = vpop.f32.mrb[0].mxu0
  %v1361 = vadd.f32 0.0, %v1360
  %v1362 = vpop.f32.mrb[0].mxu0
  %v1363 = vadd.f32 0.0, %v1362
  %1364 = vdwg.mxu0
  %1365 = vmatprep.subr.mxu0 0.0
  %1366 = vmatpush1.msra.mxu0 %v1292
  %1367 = vmatprep.subr.mxu0 0.0
  %1368 = vmatpush1.msra.mxu0 0.0
  %1369 = vmatprep.subr.mxu0 0.0
  %1370 = vmatpush1.msra.mxu0 0.0
  %1371 = vmatprep.subr.mxu0 0.0
  %1372 = vmatpush1.msra.mxu0 0.0
  %1373 = vmatprep.subr.mxu0 0.0
  %1374 = vmatpush1.msra.mxu0 0.0
  %1375 = vmatprep.subr.mxu0 0.0
  %1376 = vmatpush1.msra.mxu0 0.0
  %1377 = vmatprep.subr.mxu0 0.0
  %1378 = vmatpush1.msra.mxu0 0.0
  %1379 = vmatprep.subr.mxu0 0.0
  %1380 = vmatpush1.msra.mxu0 0.0
  %1381 = vmatprep.subr.mxu0 0.0
  %1382 = vmatpush1.msra.mxu0 0.0
  %1383 = vmatprep.subr.mxu0 0.0
  %1384 = vmatpush1.msra.mxu0 0.0
  %1385 = vmatprep.subr.mxu0 0.0
  %1386 = vmatpush1.msra.mxu0 0.0
  %1387 = vmatprep.subr.mxu0 0.0
  %1388 = vmatpush1.msra.mxu0 0.0
  %1389 = vmatprep.subr.mxu0 0.0
  %1390 = vmatpush1.msra.mxu0 0.0
  %1391 = vmatprep.subr.mxu0 0.0
  %1392 = vmatpush1.msra.mxu0 0.0
  %1393 = vmatprep.subr.mxu0 0.0
  %1394 = vmatpush1.msra.mxu0 0.0
  %1395 = vmatprep.subr.mxu0 0.0
  %1396 = vmatpush1.msra.mxu0 0.0
  %1397 = vmatprep.subr.mxu0 0.0
  %1398 = vmatpush1.msra.mxu0 0.0
  %1399 = vmatprep.subr.mxu0 0.0
  %1400 = vmatpush1.msra.mxu0 0.0
  %1401 = vmatprep.subr.mxu0 0.0
  %1402 = vmatpush1.msra.mxu0 0.0
  %1403 = vmatprep.subr.mxu0 0.0
  %1404 = vmatpush1.msra.mxu0 0.0
  %1405 = vmatprep.subr.mxu0 0.0
  %1406 = vmatpush1.msra.mxu0 0.0
  %1407 = vmatprep.subr.mxu0 0.0
  %1408 = vmatpush1.msra.mxu0 0.0
  %1409 = vmatprep.subr.mxu0 0.0
  %1410 = vmatpush1.msra.mxu0 0.0
  %1411 = vmatprep.subr.mxu0 0.0
  %1412 = vmatpush1.msra.mxu0 0.0
  %1413 = vmatprep.subr.mxu0 0.0
  %1414 = vmatpush1.msra.mxu0 0.0
  %1415 = vmatprep.subr.mxu0 0.0
  %1416 = vmatpush1.msra.mxu0 0.0
  %1417 = vmatprep.subr.mxu0 0.0
  %1418 = vmatpush1.msra.mxu0 0.0
  %1419 = vmatprep.subr.mxu0 0.0
  %1420 = vmatpush1.msra.mxu0 0.0
  %1421 = vmatprep.subr.mxu0 0.0
  %1422 = vmatpush1.msra.mxu0 0.0
  %1423 = vmatprep.subr.mxu0 0.0
  %1424 = vmatpush1.msra.mxu0 0.0
  %1425 = vmatprep.subr.mxu0 0.0
  %1426 = vmatpush1.msra.mxu0 0.0
  %1427 = vmatprep.subr.mxu0 0.0
  %1428 = vmatpush1.msra.mxu0 0.0
  %1429 = vmatprep.mubr.f32.mxu0 0.0
  %1430 = vmatmul.mubr.f32.gmra.mrb[0].mxu0 %v1286
  %v1431 = vpop.f32.mrb[0].mxu0
  %v1432 = vadd.f32 0.0, %v1431
  %v1433 = vpop.f32.mrb[0].mxu0
  %1434 = vdwg.mxu0
  %v1435 = vadd.f32 %v1269, %v1361
  %v1436 = vadd.f32 %v1270, %v1363
  %v1437 = vadd.f32 %v1271, %v1432
  %1438 = vrot.lane.b32.xlu0 %v455, 104
  %v1439 = vpop.permute.xlu0 %1438
  %1442 = vrot.lane.b32.xlu0 %v382, 49
  %v1443 = vpop.permute.xlu0 %1442
  %1444 = vrot.lane.b32.xlu0 %v451, 49
  %v1445 = vpop.permute.xlu0 %1444
  %1446 = vrot.lane.b32.xlu0 %v453, 49
  %v1447 = vpop.permute.xlu0 %1446
  %vm1448 = vcmask 400384
  %v1449 = vsel %vm1448, %v1443, %v1445
  %v1450 = vsel %vm1448, %v1445, %v1447
  %v1451 = vsel %vm461, %v1439, 0
  %v1453 = vsel %vm464, %v1449, 0
  %v1455 = vsel %vm464, %v1450, 0
  %v1457 = vsel %vm464, %v1447, 0
  %1459 = vmatprep.subr.mxu0 %v1455
  %1460 = vmatpush1.msra.mxu0 %v1453
  %1461 = vmatprep.subr.mxu0 0.0
  %1462 = vmatpush1.msra.mxu0 0.0
  %1463 = vmatprep.subr.mxu0 0.0
  %1464 = vmatpush1.msra.mxu0 0.0
  %1465 = vmatprep.subr.mxu0 0.0
  %1466 = vmatpush1.msra.mxu0 0.0
  %1467 = vmatprep.subr.mxu0 0.0
  %1468 = vmatpush1.msra.mxu0 0.0
  %1469 = vmatprep.subr.mxu0 0.0
  %1470 = vmatpush1.msra.mxu0 0.0
  %1471 = vmatprep.subr.mxu0 0.0
  %1472 = vmatpush1.msra.mxu0 0.0
  %1473 = vmatprep.subr.mxu0 0.0
  %1474 = vmatpush1.msra.mxu0 0.0
  %1475 = vmatprep.subr.mxu0 0.0
  %1476 = vmatpush1.msra.mxu0 0.0
  %1477 = vmatprep.subr.mxu0 0.0
  %1478 = vmatpush1.msra.mxu0 0.0
  %1479 = vmatprep.subr.mxu0 0.0
  %1480 = vmatpush1.msra.mxu0 0.0
  %1481 = vmatprep.subr.mxu0 0.0
  %1482 = vmatpush1.msra.mxu0 0.0
  %1483 = vmatprep.subr.mxu0 0.0
  %1484 = vmatpush1.msra.mxu0 0.0
  %1485 = vmatprep.subr.mxu0 0.0
  %1486 = vmatpush1.msra.mxu0 0.0
  %1487 = vmatprep.subr.mxu0 0.0
  %1488 = vmatpush1.msra.mxu0 0.0
  %1489 = vmatprep.subr.mxu0 0.0
  %1490 = vmatpush1.msra.mxu0 0.0
  %1491 = vmatprep.subr.mxu0 0.0
  %1492 = vmatpush1.msra.mxu0 0.0
  %1493 = vmatprep.subr.mxu0 0.0
  %1494 = vmatpush1.msra.mxu0 0.0
  %1495 = vmatprep.subr.mxu0 0.0
  %1496 = vmatpush1.msra.mxu0 0.0
  %1497 = vmatprep.subr.mxu0 0.0
  %1498 = vmatpush1.msra.mxu0 0.0
  %1499 = vmatprep.subr.mxu0 0.0
  %1500 = vmatpush1.msra.mxu0 0.0
  %1501 = vmatprep.subr.mxu0 0.0
  %1502 = vmatpush1.msra.mxu0 0.0
  %1503 = vmatprep.subr.mxu0 0.0
  %1504 = vmatpush1.msra.mxu0 0.0
  %1505 = vmatprep.subr.mxu0 0.0
  %1506 = vmatpush1.msra.mxu0 0.0
  %1507 = vmatprep.subr.mxu0 0.0
  %1508 = vmatpush1.msra.mxu0 0.0
  %1509 = vmatprep.subr.mxu0 0.0
  %1510 = vmatpush1.msra.mxu0 0.0
  %1511 = vmatprep.subr.mxu0 0.0
  %1512 = vmatpush1.msra.mxu0 0.0
  %1513 = vmatprep.subr.mxu0 0.0
  %1514 = vmatpush1.msra.mxu0 0.0
  %1515 = vmatprep.subr.mxu0 0.0
  %1516 = vmatpush1.msra.mxu0 0.0
  %1517 = vmatprep.subr.mxu0 0.0
  %1518 = vmatpush1.msra.mxu0 0.0
  %1519 = vmatprep.subr.mxu0 0.0
  %1520 = vmatpush1.msra.mxu0 0.0
  %1521 = vmatprep.subr.mxu0 0.0
  %1522 = vmatpush1.msra.mxu0 0.0
  %1523 = vmatprep.mubr.f32.mxu0 0.0
  %1524 = vmatmul.mubr.f32.gmra.mrb[0].mxu0 %v1451
  %v1525 = vpop.f32.mrb[0].mxu0
  %v1526 = vadd.f32 0.0, %v1525
  %v1527 = vpop.f32.mrb[0].mxu0
  %v1528 = vadd.f32 0.0, %v1527
  %1529 = vdwg.mxu0
  %1530 = vmatprep.subr.mxu0 0.0
  %1531 = vmatpush1.msra.mxu0 %v1457
  %1532 = vmatprep.subr.mxu0 0.0
  %1533 = vmatpush1.msra.mxu0 0.0
  %1534 = vmatprep.subr.mxu0 0.0
  %1535 = vmatpush1.msra.mxu0 0.0
  %1536 = vmatprep.subr.mxu0 0.0
  %1537 = vmatpush1.msra.mxu0 0.0
  %1538 = vmatprep.subr.mxu0 0.0
  %1539 = vmatpush1.msra.mxu0 0.0
  %1540 = vmatprep.subr.mxu0 0.0
  %1541 = vmatpush1.msra.mxu0 0.0
  %1542 = vmatprep.subr.mxu0 0.0
  %1543 = vmatpush1.msra.mxu0 0.0
  %1544 = vmatprep.subr.mxu0 0.0
  %1545 = vmatpush1.msra.mxu0 0.0
  %1546 = vmatprep.subr.mxu0 0.0
  %1547 = vmatpush1.msra.mxu0 0.0
  %1548 = vmatprep.subr.mxu0 0.0
  %1549 = vmatpush1.msra.mxu0 0.0
  %1550 = vmatprep.subr.mxu0 0.0
  %1551 = vmatpush1.msra.mxu0 0.0
  %1552 = vmatprep.subr.mxu0 0.0
  %1553 = vmatpush1.msra.mxu0 0.0
  %1554 = vmatprep.subr.mxu0 0.0
  %1555 = vmatpush1.msra.mxu0 0.0
  %1556 = vmatprep.subr.mxu0 0.0
  %1557 = vmatpush1.msra.mxu0 0.0
  %1558 = vmatprep.subr.mxu0 0.0
  %1559 = vmatpush1.msra.mxu0 0.0
  %1560 = vmatprep.subr.mxu0 0.0
  %1561 = vmatpush1.msra.mxu0 0.0
  %1562 = vmatprep.subr.mxu0 0.0
  %1563 = vmatpush1.msra.mxu0 0.0
  %1564 = vmatprep.subr.mxu0 0.0
  %1565 = vmatpush1.msra.mxu0 0.0
  %1566 = vmatprep.subr.mxu0 0.0
  %1567 = vmatpush1.msra.mxu0 0.0
  %1568 = vmatprep.subr.mxu0 0.0
  %1569 = vmatpush1.msra.mxu0 0.0
  %1570 = vmatprep.subr.mxu0 0.0
  %1571 = vmatpush1.msra.mxu0 0.0
  %1572 = vmatprep.subr.mxu0 0.0
  %1573 = vmatpush1.msra.mxu0 0.0
  %1574 = vmatprep.subr.mxu0 0.0
  %1575 = vmatpush1.msra.mxu0 0.0
  %1576 = vmatprep.subr.mxu0 0.0
  %1577 = vmatpush1.msra.mxu0 0.0
  %1578 = vmatprep.subr.mxu0 0.0
  %1579 = vmatpush1.msra.mxu0 0.0
  %1580 = vmatprep.subr.mxu0 0.0
  %1581 = vmatpush1.msra.mxu0 0.0
  %1582 = vmatprep.subr.mxu0 0.0
  %1583 = vmatpush1.msra.mxu0 0.0
  %1584 = vmatprep.subr.mxu0 0.0
  %1585 = vmatpush1.msra.mxu0 0.0
  %1586 = vmatprep.subr.mxu0 0.0
  %1587 = vmatpush1.msra.mxu0 0.0
  %1588 = vmatprep.subr.mxu0 0.0
  %1589 = vmatpush1.msra.mxu0 0.0
  %1590 = vmatprep.subr.mxu0 0.0
  %1591 = vmatpush1.msra.mxu0 0.0
  %1592 = vmatprep.subr.mxu0 0.0
  %1593 = vmatpush1.msra.mxu0 0.0
  %1594 = vmatprep.mubr.f32.mxu0 0.0
  %1595 = vmatmul.mubr.f32.gmra.mrb[0].mxu0 %v1451
  %v1596 = vpop.f32.mrb[0].mxu0
  %v1597 = vadd.f32 0.0, %v1596
  %v1598 = vpop.f32.mrb[0].mxu0
  %1599 = vdwg.mxu0
  %v1600 = vadd.f32 %v1435, %v1526
  %v1601 = vadd.f32 %v1436, %v1528
  %v1602 = vadd.f32 %v1437, %v1597
  %1603 = vrot.lane.b32.xlu0 %v455, 100
  %v1604 = vpop.permute.xlu0 %1603
  %1605 = vrot.lane.b32.xlu0 %v311, 117
  %v1606 = vpop.permute.xlu0 %1605
  %1607 = vrot.lane.b32.xlu0 %v380, 117
  %v1608 = vpop.permute.xlu0 %1607
  %1609 = vrot.lane.b32.xlu0 %v382, 117
  %v1610 = vpop.permute.xlu0 %1609
  %vm1611 = vcmask 957440
  %v1612 = vsel %vm1611, %v1606, %v1608
  %v1613 = vsel %vm1611, %v1608, %v1610
  %v1614 = vsel %vm461, %v1604, 0
  %v1616 = vsel %vm464, %v1612, 0
  %v1618 = vsel %vm464, %v1613, 0
  %v1620 = vsel %vm464, %v1610, 0
  %1622 = vmatprep.subr.mxu0 %v1618
  %1623 = vmatpush1.msra.mxu0 %v1616
  %1624 = vmatprep.subr.mxu0 0.0
  %1625 = vmatpush1.msra.mxu0 0.0
  %1626 = vmatprep.subr.mxu0 0.0
  %1627 = vmatpush1.msra.mxu0 0.0
  %1628 = vmatprep.subr.mxu0 0.0
  %1629 = vmatpush1.msra.mxu0 0.0
  %1630 = vmatprep.subr.mxu0 0.0
  %1631 = vmatpush1.msra.mxu0 0.0
  %1632 = vmatprep.subr.mxu0 0.0
  %1633 = vmatpush1.msra.mxu0 0.0
  %1634 = vmatprep.subr.mxu0 0.0
  %1635 = vmatpush1.msra.mxu0 0.0
  %1636 = vmatprep.subr.mxu0 0.0
  %1637 = vmatpush1.msra.mxu0 0.0
  %1638 = vmatprep.subr.mxu0 0.0
  %1639 = vmatpush1.msra.mxu0 0.0
  %1640 = vmatprep.subr.mxu0 0.0
  %1641 = vmatpush1.msra.mxu0 0.0
  %1642 = vmatprep.subr.mxu0 0.0
  %1643 = vmatpush1.msra.mxu0 0.0
  %1644 = vmatprep.subr.mxu0 0.0
  %1645 = vmatpush1.msra.mxu0 0.0
  %1646 = vmatprep.subr.mxu0 0.0
  %1647 = vmatpush1.msra.mxu0 0.0
  %1648 = vmatprep.subr.mxu0 0.0
  %1649 = vmatpush1.msra.mxu0 0.0
  %1650 = vmatprep.subr.mxu0 0.0
  %1651 = vmatpush1.msra.mxu0 0.0
  %1652 = vmatprep.subr.mxu0 0.0
  %1653 = vmatpush1.msra.mxu0 0.0
  %1654 = vmatprep.subr.mxu0 0.0
  %1655 = vmatpush1.msra.mxu0 0.0
  %1656 = vmatprep.subr.mxu0 0.0
  %1657 = vmatpush1.msra.mxu0 0.0
  %1658 = vmatprep.subr.mxu0 0.0
  %1659 = vmatpush1.msra.mxu0 0.0
  %1660 = vmatprep.subr.mxu0 0.0
  %1661 = vmatpush1.msra.mxu0 0.0
  %1662 = vmatprep.subr.mxu0 0.0
  %1663 = vmatpush1.msra.mxu0 0.0
  %1664 = vmatprep.subr.mxu0 0.0
  %1665 = vmatpush1.msra.mxu0 0.0
  %1666 = vmatprep.subr.mxu0 0.0
  %1667 = vmatpush1.msra.mxu0 0.0
  %1668 = vmatprep.subr.mxu0 0.0
  %1669 = vmatpush1.msra.mxu0 0.0
  %1670 = vmatprep.subr.mxu0 0.0
  %1671 = vmatpush1.msra.mxu0 0.0
  %1672 = vmatprep.subr.mxu0 0.0
  %1673 = vmatpush1.msra.mxu0 0.0
  %1674 = vmatprep.subr.mxu0 0.0
  %1675 = vmatpush1.msra.mxu0 0.0
  %1676 = vmatprep.subr.mxu0 0.0
  %1677 = vmatpush1.msra.mxu0 0.0
  %1678 = vmatprep.subr.mxu0 0.0
  %1679 = vmatpush1.msra.mxu0 0.0
  %1680 = vmatprep.subr.mxu0 0.0
  %1681 = vmatpush1.msra.mxu0 0.0
  %1682 = vmatprep.subr.mxu0 0.0
  %1683 = vmatpush1.msra.mxu0 0.0
  %1684 = vmatprep.subr.mxu0 0.0
  %1685 = vmatpush1.msra.mxu0 0.0
  %1686 = vmatprep.mubr.f32.mxu0 0.0
  %1687 = vmatmul.mubr.f32.gmra.mrb[0].mxu0 %v1614
  %v1688 = vpop.f32.mrb[0].mxu0
  %v1689 = vadd.f32 0.0, %v1688
  %v1690 = vpop.f32.mrb[0].mxu0
  %v1691 = vadd.f32 0.0, %v1690
  %1692 = vdwg.mxu0
  %1693 = vmatprep.subr.mxu0 0.0
  %1694 = vmatpush1.msra.mxu0 %v1620
  %1695 = vmatprep.subr.mxu0 0.0
  %1696 = vmatpush1.msra.mxu0 0.0
  %1697 = vmatprep.subr.mxu0 0.0
  %1698 = vmatpush1.msra.mxu0 0.0
  %1699 = vmatprep.subr.mxu0 0.0
  %1700 = vmatpush1.msra.mxu0 0.0
  %1701 = vmatprep.subr.mxu0 0.0
  %1702 = vmatpush1.msra.mxu0 0.0
  %1703 = vmatprep.subr.mxu0 0.0
  %1704 = vmatpush1.msra.mxu0 0.0
  %1705 = vmatprep.subr.mxu0 0.0
  %1706 = vmatpush1.msra.mxu0 0.0
  %1707 = vmatprep.subr.mxu0 0.0
  %1708 = vmatpush1.msra.mxu0 0.0
  %1709 = vmatprep.subr.mxu0 0.0
  %1710 = vmatpush1.msra.mxu0 0.0
  %1711 = vmatprep.subr.mxu0 0.0
  %1712 = vmatpush1.msra.mxu0 0.0
  %1713 = vmatprep.subr.mxu0 0.0
  %1714 = vmatpush1.msra.mxu0 0.0
  %1715 = vmatprep.subr.mxu0 0.0
  %1716 = vmatpush1.msra.mxu0 0.0
  %1717 = vmatprep.subr.mxu0 0.0
  %1718 = vmatpush1.msra.mxu0 0.0
  %1719 = vmatprep.subr.mxu0 0.0
  %1720 = vmatpush1.msra.mxu0 0.0
  %1721 = vmatprep.subr.mxu0 0.0
  %1722 = vmatpush1.msra.mxu0 0.0
  %1723 = vmatprep.subr.mxu0 0.0
  %1724 = vmatpush1.msra.mxu0 0.0
  %1725 = vmatprep.subr.mxu0 0.0
  %1726 = vmatpush1.msra.mxu0 0.0
  %1727 = vmatprep.subr.mxu0 0.0
  %1728 = vmatpush1.msra.mxu0 0.0
  %1729 = vmatprep.subr.mxu0 0.0
  %1730 = vmatpush1.msra.mxu0 0.0
  %1731 = vmatprep.subr.mxu0 0.0
  %1732 = vmatpush1.msra.mxu0 0.0
  %1733 = vmatprep.subr.mxu0 0.0
  %1734 = vmatpush1.msra.mxu0 0.0
  %1735 = vmatprep.subr.mxu0 0.0
  %1736 = vmatpush1.msra.mxu0 0.0
  %1737 = vmatprep.subr.mxu0 0.0
  %1738 = vmatpush1.msra.mxu0 0.0
  %1739 = vmatprep.subr.mxu0 0.0
  %1740 = vmatpush1.msra.mxu0 0.0
  %1741 = vmatprep.subr.mxu0 0.0
  %1742 = vmatpush1.msra.mxu0 0.0
  %1743 = vmatprep.subr.mxu0 0.0
  %1744 = vmatpush1.msra.mxu0 0.0
  %1745 = vmatprep.subr.mxu0 0.0
  %1746 = vmatpush1.msra.mxu0 0.0
  %1747 = vmatprep.subr.mxu0 0.0
  %1748 = vmatpush1.msra.mxu0 0.0
  %1749 = vmatprep.subr.mxu0 0.0
  %1750 = vmatpush1.msra.mxu0 0.0
  %1751 = vmatprep.subr.mxu0 0.0
  %1752 = vmatpush1.msra.mxu0 0.0
  %1753 = vmatprep.subr.mxu0 0.0
  %1754 = vmatpush1.msra.mxu0 0.0
  %1755 = vmatprep.subr.mxu0 0.0
  %1756 = vmatpush1.msra.mxu0 0.0
  %1757 = vmatprep.mubr.f32.mxu0 0.0
  %1758 = vmatmul.mubr.f32.gmra.mrb[0].mxu0 %v1614
  %v1759 = vpop.f32.mrb[0].mxu0
  %v1760 = vadd.f32 0.0, %v1759
  %v1761 = vpop.f32.mrb[0].mxu0
  %1762 = vdwg.mxu0
  %v1763 = vadd.f32 %v1600, %v1689
  %v1764 = vadd.f32 %v1601, %v1691
  %v1765 = vadd.f32 %v1602, %v1760
  %1766 = vrot.lane.b32.xlu0 %v455, 96
  %v1767 = vpop.permute.xlu0 %1766
  %1768 = vrot.lane.b32.xlu0 %v382, 48
  %v1769 = vpop.permute.xlu0 %1768
  %1770 = vrot.lane.b32.xlu0 %v451, 48
  %v1771 = vpop.permute.xlu0 %1770
  %1772 = vrot.lane.b32.xlu0 %v453, 48
  %v1773 = vpop.permute.xlu0 %1772
  %vm1774 = vcmask 392192
  %v1775 = vsel %vm1774, %v1769, %v1771
  %v1776 = vsel %vm1774, %v1771, %v1773
  %v1777 = vsel %vm461, %v1767, 0
  %v1779 = vsel %vm464, %v1775, 0
  %v1781 = vsel %vm464, %v1776, 0
  %v1783 = vsel %vm464, %v1773, 0
  %1785 = vmatprep.subr.mxu0 %v1781
  %1786 = vmatpush1.msra.mxu0 %v1779
  %1787 = vmatprep.subr.mxu0 0.0
  %1788 = vmatpush1.msra.mxu0 0.0
  %1789 = vmatprep.subr.mxu0 0.0
  %1790 = vmatpush1.msra.mxu0 0.0
  %1791 = vmatprep.subr.mxu0 0.0
  %1792 = vmatpush1.msra.mxu0 0.0
  %1793 = vmatprep.subr.mxu0 0.0
  %1794 = vmatpush1.msra.mxu0 0.0
  %1795 = vmatprep.subr.mxu0 0.0
  %1796 = vmatpush1.msra.mxu0 0.0
  %1797 = vmatprep.subr.mxu0 0.0
  %1798 = vmatpush1.msra.mxu0 0.0
  %1799 = vmatprep.subr.mxu0 0.0
  %1800 = vmatpush1.msra.mxu0 0.0
  %1801 = vmatprep.subr.mxu0 0.0
  %1802 = vmatpush1.msra.mxu0 0.0
  %1803 = vmatprep.subr.mxu0 0.0
  %1804 = vmatpush1.msra.mxu0 0.0
  %1805 = vmatprep.subr.mxu0 0.0
  %1806 = vmatpush1.msra.mxu0 0.0
  %1807 = vmatprep.subr.mxu0 0.0
  %1808 = vmatpush1.msra.mxu0 0.0
  %1809 = vmatprep.subr.mxu0 0.0
  %1810 = vmatpush1.msra.mxu0 0.0
  %1811 = vmatprep.subr.mxu0 0.0
  %1812 = vmatpush1.msra.mxu0 0.0
  %1813 = vmatprep.subr.mxu0 0.0
  %1814 = vmatpush1.msra.mxu0 0.0
  %1815 = vmatprep.subr.mxu0 0.0
  %1816 = vmatpush1.msra.mxu0 0.0
  %1817 = vmatprep.subr.mxu0 0.0
  %1818 = vmatpush1.msra.mxu0 0.0
  %1819 = vmatprep.subr.mxu0 0.0
  %1820 = vmatpush1.msra.mxu0 0.0
  %1821 = vmatprep.subr.mxu0 0.0
  %1822 = vmatpush1.msra.mxu0 0.0
  %1823 = vmatprep.subr.mxu0 0.0
  %1824 = vmatpush1.msra.mxu0 0.0
  %1825 = vmatprep.subr.mxu0 0.0
  %1826 = vmatpush1.msra.mxu0 0.0
  %1827 = vmatprep.subr.mxu0 0.0
  %1828 = vmatpush1.msra.mxu0 0.0
  %1829 = vmatprep.subr.mxu0 0.0
  %1830 = vmatpush1.msra.mxu0 0.0
  %1831 = vmatprep.subr.mxu0 0.0
  %1832 = vmatpush1.msra.mxu0 0.0
  %1833 = vmatprep.subr.mxu0 0.0
  %1834 = vmatpush1.msra.mxu0 0.0
  %1835 = vmatprep.subr.mxu0 0.0
  %1836 = vmatpush1.msra.mxu0 0.0
  %1837 = vmatprep.subr.mxu0 0.0
  %1838 = vmatpush1.msra.mxu0 0.0
  %1839 = vmatprep.subr.mxu0 0.0
  %1840 = vmatpush1.msra.mxu0 0.0
  %1841 = vmatprep.subr.mxu0 0.0
  %1842 = vmatpush1.msra.mxu0 0.0
  %1843 = vmatprep.subr.mxu0 0.0
  %1844 = vmatpush1.msra.mxu0 0.0
  %1845 = vmatprep.subr.mxu0 0.0
  %1846 = vmatpush1.msra.mxu0 0.0
  %1847 = vmatprep.subr.mxu0 0.0
  %1848 = vmatpush1.msra.mxu0 0.0
  %1849 = vmatprep.mubr.f32.mxu0 0.0
  %1850 = vmatmul.mubr.f32.gmra.mrb[0].mxu0 %v1777
  %v1851 = vpop.f32.mrb[0].mxu0
  %v1852 = vadd.f32 0.0, %v1851
  %v1853 = vpop.f32.mrb[0].mxu0
  %v1854 = vadd.f32 0.0, %v1853
  %1855 = vdwg.mxu0
  %1856 = vmatprep.subr.mxu0 0.0
  %1857 = vmatpush1.msra.mxu0 %v1783
  %1858 = vmatprep.subr.mxu0 0.0
  %1859 = vmatpush1.msra.mxu0 0.0
  %1860 = vmatprep.subr.mxu0 0.0
  %1861 = vmatpush1.msra.mxu0 0.0
  %1862 = vmatprep.subr.mxu0 0.0
  %1863 = vmatpush1.msra.mxu0 0.0
  %1864 = vmatprep.subr.mxu0 0.0
  %1865 = vmatpush1.msra.mxu0 0.0
  %1866 = vmatprep.subr.mxu0 0.0
  %1867 = vmatpush1.msra.mxu0 0.0
  %1868 = vmatprep.subr.mxu0 0.0
  %1869 = vmatpush1.msra.mxu0 0.0
  %1870 = vmatprep.subr.mxu0 0.0
  %1871 = vmatpush1.msra.mxu0 0.0
  %1872 = vmatprep.subr.mxu0 0.0
  %1873 = vmatpush1.msra.mxu0 0.0
  %1874 = vmatprep.subr.mxu0 0.0
  %1875 = vmatpush1.msra.mxu0 0.0
  %1876 = vmatprep.subr.mxu0 0.0
  %1877 = vmatpush1.msra.mxu0 0.0
  %1878 = vmatprep.subr.mxu0 0.0
  %1879 = vmatpush1.msra.mxu0 0.0
  %1880 = vmatprep.subr.mxu0 0.0
  %1881 = vmatpush1.msra.mxu0 0.0
  %1882 = vmatprep.subr.mxu0 0.0
  %1883 = vmatpush1.msra.mxu0 0.0
  %1884 = vmatprep.subr.mxu0 0.0
  %1885 = vmatpush1.msra.mxu0 0.0
  %1886 = vmatprep.subr.mxu0 0.0
  %1887 = vmatpush1.msra.mxu0 0.0
  %1888 = vmatprep.subr.mxu0 0.0
  %1889 = vmatpush1.msra.mxu0 0.0
  %1890 = vmatprep.subr.mxu0 0.0
  %1891 = vmatpush1.msra.mxu0 0.0
  %1892 = vmatprep.subr.mxu0 0.0
  %1893 = vmatpush1.msra.mxu0 0.0
  %1894 = vmatprep.subr.mxu0 0.0
  %1895 = vmatpush1.msra.mxu0 0.0
  %1896 = vmatprep.subr.mxu0 0.0
  %1897 = vmatpush1.msra.mxu0 0.0
  %1898 = vmatprep.subr.mxu0 0.0
  %1899 = vmatpush1.msra.mxu0 0.0
  %1900 = vmatprep.subr.mxu0 0.0
  %1901 = vmatpush1.msra.mxu0 0.0
  %1902 = vmatprep.subr.mxu0 0.0
  %1903 = vmatpush1.msra.mxu0 0.0
  %1904 = vmatprep.subr.mxu0 0.0
  %1905 = vmatpush1.msra.mxu0 0.0
  %1906 = vmatprep.subr.mxu0 0.0
  %1907 = vmatpush1.msra.mxu0 0.0
  %1908 = vmatprep.subr.mxu0 0.0
  %1909 = vmatpush1.msra.mxu0 0.0
  %1910 = vmatprep.subr.mxu0 0.0
  %1911 = vmatpush1.msra.mxu0 0.0
  %1912 = vmatprep.subr.mxu0 0.0
  %1913 = vmatpush1.msra.mxu0 0.0
  %1914 = vmatprep.subr.mxu0 0.0
  %1915 = vmatpush1.msra.mxu0 0.0
  %1916 = vmatprep.subr.mxu0 0.0
  %1917 = vmatpush1.msra.mxu0 0.0
  %1918 = vmatprep.subr.mxu0 0.0
  %1919 = vmatpush1.msra.mxu0 0.0
  %1920 = vmatprep.mubr.f32.mxu0 0.0
  %1921 = vmatmul.mubr.f32.gmra.mrb[0].mxu0 %v1777
  %v1922 = vpop.f32.mrb[0].mxu0
  %v1923 = vadd.f32 0.0, %v1922
  %v1924 = vpop.f32.mrb[0].mxu0
  %1925 = vdwg.mxu0
  %v1926 = vadd.f32 %v1763, %v1852
  %v1927 = vadd.f32 %v1764, %v1854
  %v1928 = vadd.f32 %v1765, %v1923
  %1929 = vrot.lane.b32.xlu0 %v455, 92
  %v1930 = vpop.permute.xlu0 %1929
  %1931 = vrot.lane.b32.xlu0 %v311, 116
  %v1932 = vpop.permute.xlu0 %1931
  %1933 = vrot.lane.b32.xlu0 %v380, 116
  %v1934 = vpop.permute.xlu0 %1933
  %1935 = vrot.lane.b32.xlu0 %v382, 116
  %v1936 = vpop.permute.xlu0 %1935
  %vm1937 = vcmask 949248
  %v1938 = vsel %vm1937, %v1932, %v1934
  %v1939 = vsel %vm1937, %v1934, %v1936
  %v1940 = vsel %vm461, %v1930, 0
  %v1942 = vsel %vm464, %v1938, 0
  %v1944 = vsel %vm464, %v1939, 0
  %v1946 = vsel %vm464, %v1936, 0
  %1948 = vmatprep.subr.mxu0 %v1944
  %1949 = vmatpush1.msra.mxu0 %v1942
  %1950 = vmatprep.subr.mxu0 0.0
  %1951 = vmatpush1.msra.mxu0 0.0
  %1952 = vmatprep.subr.mxu0 0.0
  %1953 = vmatpush1.msra.mxu0 0.0
  %1954 = vmatprep.subr.mxu0 0.0
  %1955 = vmatpush1.msra.mxu0 0.0
  %1956 = vmatprep.subr.mxu0 0.0
  %1957 = vmatpush1.msra.mxu0 0.0
  %1958 = vmatprep.subr.mxu0 0.0
  %1959 = vmatpush1.msra.mxu0 0.0
  %1960 = vmatprep.subr.mxu0 0.0
  %1961 = vmatpush1.msra.mxu0 0.0
  %1962 = vmatprep.subr.mxu0 0.0
  %1963 = vmatpush1.msra.mxu0 0.0
  %1964 = vmatprep.subr.mxu0 0.0
  %1965 = vmatpush1.msra.mxu0 0.0
  %1966 = vmatprep.subr.mxu0 0.0
  %1967 = vmatpush1.msra.mxu0 0.0
  %1968 = vmatprep.subr.mxu0 0.0
  %1969 = vmatpush1.msra.mxu0 0.0
  %1970 = vmatprep.subr.mxu0 0.0
  %1971 = vmatpush1.msra.mxu0 0.0
  %1972 = vmatprep.subr.mxu0 0.0
  %1973 = vmatpush1.msra.mxu0 0.0
  %1974 = vmatprep.subr.mxu0 0.0
  %1975 = vmatpush1.msra.mxu0 0.0
  %1976 = vmatprep.subr.mxu0 0.0
  %1977 = vmatpush1.msra.mxu0 0.0
  %1978 = vmatprep.subr.mxu0 0.0
  %1979 = vmatpush1.msra.mxu0 0.0
  %1980 = vmatprep.subr.mxu0 0.0
  %1981 = vmatpush1.msra.mxu0 0.0
  %1982 = vmatprep.subr.mxu0 0.0
  %1983 = vmatpush1.msra.mxu0 0.0
  %1984 = vmatprep.subr.mxu0 0.0
  %1985 = vmatpush1.msra.mxu0 0.0
  %1986 = vmatprep.subr.mxu0 0.0
  %1987 = vmatpush1.msra.mxu0 0.0
  %1988 = vmatprep.subr.mxu0 0.0
  %1989 = vmatpush1.msra.mxu0 0.0
  %1990 = vmatprep.subr.mxu0 0.0
  %1991 = vmatpush1.msra.mxu0 0.0
  %1992 = vmatprep.subr.mxu0 0.0
  %1993 = vmatpush1.msra.mxu0 0.0
  %1994 = vmatprep.subr.mxu0 0.0
  %1995 = vmatpush1.msra.mxu0 0.0
  %1996 = vmatprep.subr.mxu0 0.0
  %1997 = vmatpush1.msra.mxu0 0.0
  %1998 = vmatprep.subr.mxu0 0.0
  %1999 = vmatpush1.msra.mxu0 0.0
  %2000 = vmatprep.subr.mxu0 0.0
  %2001 = vmatpush1.msra.mxu0 0.0
  %2002 = vmatprep.subr.mxu0 0.0
  %2003 = vmatpush1.msra.mxu0 0.0
  %2004 = vmatprep.subr.mxu0 0.0
  %2005 = vmatpush1.msra.mxu0 0.0
  %2006 = vmatprep.subr.mxu0 0.0
  %2007 = vmatpush1.msra.mxu0 0.0
  %2008 = vmatprep.subr.mxu0 0.0
  %2009 = vmatpush1.msra.mxu0 0.0
  %2010 = vmatprep.subr.mxu0 0.0
  %2011 = vmatpush1.msra.mxu0 0.0
  %2012 = vmatprep.mubr.f32.mxu0 0.0
  %2013 = vmatmul.mubr.f32.gmra.mrb[0].mxu0 %v1940
  %v2014 = vpop.f32.mrb[0].mxu0
  %v2015 = vadd.f32 0.0, %v2014
  %v2016 = vpop.f32.mrb[0].mxu0
  %v2017 = vadd.f32 0.0, %v2016
  %2018 = vdwg.mxu0
  %2019 = vmatprep.subr.mxu0 0.0
  %2020 = vmatpush1.msra.mxu0 %v1946
  %2021 = vmatprep.subr.mxu0 0.0
  %2022 = vmatpush1.msra.mxu0 0.0
  %2023 = vmatprep.subr.mxu0 0.0
  %2024 = vmatpush1.msra.mxu0 0.0
  %2025 = vmatprep.subr.mxu0 0.0
  %2026 = vmatpush1.msra.mxu0 0.0
  %2027 = vmatprep.subr.mxu0 0.0
  %2028 = vmatpush1.msra.mxu0 0.0
  %2029 = vmatprep.subr.mxu0 0.0
  %2030 = vmatpush1.msra.mxu0 0.0
  %2031 = vmatprep.subr.mxu0 0.0
  %2032 = vmatpush1.msra.mxu0 0.0
  %2033 = vmatprep.subr.mxu0 0.0
  %2034 = vmatpush1.msra.mxu0 0.0
  %2035 = vmatprep.subr.mxu0 0.0
  %2036 = vmatpush1.msra.mxu0 0.0
  %2037 = vmatprep.subr.mxu0 0.0
  %2038 = vmatpush1.msra.mxu0 0.0
  %2039 = vmatprep.subr.mxu0 0.0
  %2040 = vmatpush1.msra.mxu0 0.0
  %2041 = vmatprep.subr.mxu0 0.0
  %2042 = vmatpush1.msra.mxu0 0.0
  %2043 = vmatprep.subr.mxu0 0.0
  %2044 = vmatpush1.msra.mxu0 0.0
  %2045 = vmatprep.subr.mxu0 0.0
  %2046 = vmatpush1.msra.mxu0 0.0
  %2047 = vmatprep.subr.mxu0 0.0
  %2048 = vmatpush1.msra.mxu0 0.0
  %2049 = vmatprep.subr.mxu0 0.0
  %2050 = vmatpush1.msra.mxu0 0.0
  %2051 = vmatprep.subr.mxu0 0.0
  %2052 = vmatpush1.msra.mxu0 0.0
  %2053 = vmatprep.subr.mxu0 0.0
  %2054 = vmatpush1.msra.mxu0 0.0
  %2055 = vmatprep.subr.mxu0 0.0
  %2056 = vmatpush1.msra.mxu0 0.0
  %2057 = vmatprep.subr.mxu0 0.0
  %2058 = vmatpush1.msra.mxu0 0.0
  %2059 = vmatprep.subr.mxu0 0.0
  %2060 = vmatpush1.msra.mxu0 0.0
  %2061 = vmatprep.subr.mxu0 0.0
  %2062 = vmatpush1.msra.mxu0 0.0
  %2063 = vmatprep.subr.mxu0 0.0
  %2064 = vmatpush1.msra.mxu0 0.0
  %2065 = vmatprep.subr.mxu0 0.0
  %2066 = vmatpush1.msra.mxu0 0.0
  %2067 = vmatprep.subr.mxu0 0.0
  %2068 = vmatpush1.msra.mxu0 0.0
  %2069 = vmatprep.subr.mxu0 0.0
  %2070 = vmatpush1.msra.mxu0 0.0
  %2071 = vmatprep.subr.mxu0 0.0
  %2072 = vmatpush1.msra.mxu0 0.0
  %2073 = vmatprep.subr.mxu0 0.0
  %2074 = vmatpush1.msra.mxu0 0.0
  %2075 = vmatprep.subr.mxu0 0.0
  %2076 = vmatpush1.msra.mxu0 0.0
  %2077 = vmatprep.subr.mxu0 0.0
  %2078 = vmatpush1.msra.mxu0 0.0
  %2079 = vmatprep.subr.mxu0 0.0
  %2080 = vmatpush1.msra.mxu0 0.0
  %2081 = vmatprep.subr.mxu0 0.0
  %2082 = vmatpush1.msra.mxu0 0.0
  %2083 = vmatprep.mubr.f32.mxu0 0.0
  %2084 = vmatmul.mubr.f32.gmra.mrb[0].mxu0 %v1940
  %v2085 = vpop.f32.mrb[0].mxu0
  %v2086 = vadd.f32 0.0, %v2085
  %v2087 = vpop.f32.mrb[0].mxu0
  %2088 = vdwg.mxu0
  %v2089 = vadd.f32 %v1926, %v2015
  %v2090 = vadd.f32 %v1927, %v2017
  %v2091 = vadd.f32 %v1928, %v2086
  %2092 = vrot.lane.b32.xlu0 %v455, 88
  %v2093 = vpop.permute.xlu0 %2092
  %2094 = vrot.lane.b32.xlu0 %v167, 109
  %v2095 = vpop.permute.xlu0 %2094
  %2096 = vrot.lane.b32.xlu0 %v169, 109
  %v2097 = vpop.permute.xlu0 %2096
  %2098 = vrot.lane.b32.xlu0 %v238, 109
  %v2099 = vpop.permute.xlu0 %2098
  %vm2100 = vcmask 891904
  %v2101 = vsel %vm2100, %v2095, %v2097
  %v2102 = vsel %vm2100, %v2097, %v2099
  %v2103 = vsel %vm461, %v2093, 0
  %v2105 = vsel %vm464, %v2101, 0
  %v2107 = vsel %vm464, %v2102, 0
  %v2109 = vsel %vm464, %v2099, 0
  %2111 = vmatprep.subr.mxu0 %v2107
  %2112 = vmatpush1.msra.mxu0 %v2105
  %2113 = vmatprep.subr.mxu0 0.0
  %2114 = vmatpush1.msra.mxu0 0.0
  %2115 = vmatprep.subr.mxu0 0.0
  %2116 = vmatpush1.msra.mxu0 0.0
  %2117 = vmatprep.subr.mxu0 0.0
  %2118 = vmatpush1.msra.mxu0 0.0
  %2119 = vmatprep.subr.mxu0 0.0
  %2120 = vmatpush1.msra.mxu0 0.0
  %2121 = vmatprep.subr.mxu0 0.0
  %2122 = vmatpush1.msra.mxu0 0.0
  %2123 = vmatprep.subr.mxu0 0.0
  %2124 = vmatpush1.msra.mxu0 0.0
  %2125 = vmatprep.subr.mxu0 0.0
  %2126 = vmatpush1.msra.mxu0 0.0
  %2127 = vmatprep.subr.mxu0 0.0
  %2128 = vmatpush1.msra.mxu0 0.0
  %2129 = vmatprep.subr.mxu0 0.0
  %2130 = vmatpush1.msra.mxu0 0.0
  %2131 = vmatprep.subr.mxu0 0.0
  %2132 = vmatpush1.msra.mxu0 0.0
  %2133 = vmatprep.subr.mxu0 0.0
  %2134 = vmatpush1.msra.mxu0 0.0
  %2135 = vmatprep.subr.mxu0 0.0
  %2136 = vmatpush1.msra.mxu0 0.0
  %2137 = vmatprep.subr.mxu0 0.0
  %2138 = vmatpush1.msra.mxu0 0.0
  %2139 = vmatprep.subr.mxu0 0.0
  %2140 = vmatpush1.msra.mxu0 0.0
  %2141 = vmatprep.subr.mxu0 0.0
  %2142 = vmatpush1.msra.mxu0 0.0
  %2143 = vmatprep.subr.mxu0 0.0
  %2144 = vmatpush1.msra.mxu0 0.0
  %2145 = vmatprep.subr.mxu0 0.0
  %2146 = vmatpush1.msra.mxu0 0.0
  %2147 = vmatprep.subr.mxu0 0.0
  %2148 = vmatpush1.msra.mxu0 0.0
  %2149 = vmatprep.subr.mxu0 0.0
  %2150 = vmatpush1.msra.mxu0 0.0
  %2151 = vmatprep.subr.mxu0 0.0
  %2152 = vmatpush1.msra.mxu0 0.0
  %2153 = vmatprep.subr.mxu0 0.0
  %2154 = vmatpush1.msra.mxu0 0.0
  %2155 = vmatprep.subr.mxu0 0.0
  %2156 = vmatpush1.msra.mxu0 0.0
  %2157 = vmatprep.subr.mxu0 0.0
  %2158 = vmatpush1.msra.mxu0 0.0
  %2159 = vmatprep.subr.mxu0 0.0
  %2160 = vmatpush1.msra.mxu0 0.0
  %2161 = vmatprep.subr.mxu0 0.0
  %2162 = vmatpush1.msra.mxu0 0.0
  %2163 = vmatprep.subr.mxu0 0.0
  %2164 = vmatpush1.msra.mxu0 0.0
  %2165 = vmatprep.subr.mxu0 0.0
  %2166 = vmatpush1.msra.mxu0 0.0
  %2167 = vmatprep.subr.mxu0 0.0
  %2168 = vmatpush1.msra.mxu0 0.0
  %2169 = vmatprep.subr.mxu0 0.0
  %2170 = vmatpush1.msra.mxu0 0.0
  %2171 = vmatprep.subr.mxu0 0.0
  %2172 = vmatpush1.msra.mxu0 0.0
  %2173 = vmatprep.subr.mxu0 0.0
  %2174 = vmatpush1.msra.mxu0 0.0
  %2175 = vmatprep.mubr.f32.mxu0 0.0
  %2176 = vmatmul.mubr.f32.gmra.mrb[0].mxu0 %v2103
  %v2177 = vpop.f32.mrb[0].mxu0
  %v2178 = vadd.f32 0.0, %v2177
  %v2179 = vpop.f32.mrb[0].mxu0
  %v2180 = vadd.f32 0.0, %v2179
  %2181 = vdwg.mxu0
  %2182 = vmatprep.subr.mxu0 0.0
  %2183 = vmatpush1.msra.mxu0 %v2109
  %2184 = vmatprep.subr.mxu0 0.0
  %2185 = vmatpush1.msra.mxu0 0.0
  %2186 = vmatprep.subr.mxu0 0.0
  %2187 = vmatpush1.msra.mxu0 0.0
  %2188 = vmatprep.subr.mxu0 0.0
  %2189 = vmatpush1.msra.mxu0 0.0
  %2190 = vmatprep.subr.mxu0 0.0
  %2191 = vmatpush1.msra.mxu0 0.0
  %2192 = vmatprep.subr.mxu0 0.0
  %2193 = vmatpush1.msra.mxu0 0.0
  %2194 = vmatprep.subr.mxu0 0.0
  %2195 = vmatpush1.msra.mxu0 0.0
  %2196 = vmatprep.subr.mxu0 0.0
  %2197 = vmatpush1.msra.mxu0 0.0
  %2198 = vmatprep.subr.mxu0 0.0
  %2199 = vmatpush1.msra.mxu0 0.0
  %2200 = vmatprep.subr.mxu0 0.0
  %2201 = vmatpush1.msra.mxu0 0.0
  %2202 = vmatprep.subr.mxu0 0.0
  %2203 = vmatpush1.msra.mxu0 0.0
  %2204 = vmatprep.subr.mxu0 0.0
  %2205 = vmatpush1.msra.mxu0 0.0
  %2206 = vmatprep.subr.mxu0 0.0
  %2207 = vmatpush1.msra.mxu0 0.0
  %2208 = vmatprep.subr.mxu0 0.0
  %2209 = vmatpush1.msra.mxu0 0.0
  %2210 = vmatprep.subr.mxu0 0.0
  %2211 = vmatpush1.msra.mxu0 0.0
  %2212 = vmatprep.subr.mxu0 0.0
  %2213 = vmatpush1.msra.mxu0 0.0
  %2214 = vmatprep.subr.mxu0 0.0
  %2215 = vmatpush1.msra.mxu0 0.0
  %2216 = vmatprep.subr.mxu0 0.0
  %2217 = vmatpush1.msra.mxu0 0.0
  %2218 = vmatprep.subr.mxu0 0.0
  %2219 = vmatpush1.msra.mxu0 0.0
  %2220 = vmatprep.subr.mxu0 0.0
  %2221 = vmatpush1.msra.mxu0 0.0
  %2222 = vmatprep.subr.mxu0 0.0
  %2223 = vmatpush1.msra.mxu0 0.0
  %2224 = vmatprep.subr.mxu0 0.0
  %2225 = vmatpush1.msra.mxu0 0.0
  %2226 = vmatprep.subr.mxu0 0.0
  %2227 = vmatpush1.msra.mxu0 0.0
  %2228 = vmatprep.subr.mxu0 0.0
  %2229 = vmatpush1.msra.mxu0 0.0
  %2230 = vmatprep.subr.mxu0 0.0
  %2231 = vmatpush1.msra.mxu0 0.0
  %2232 = vmatprep.subr.mxu0 0.0
  %2233 = vmatpush1.msra.mxu0 0.0
  %2234 = vmatprep.subr.mxu0 0.0
  %2235 = vmatpush1.msra.mxu0 0.0
  %2236 = vmatprep.subr.mxu0 0.0
  %2237 = vmatpush1.msra.mxu0 0.0
  %2238 = vmatprep.subr.mxu0 0.0
  %2239 = vmatpush1.msra.mxu0 0.0
  %2240 = vmatprep.subr.mxu0 0.0
  %2241 = vmatpush1.msra.mxu0 0.0
  %2242 = vmatprep.subr.mxu0 0.0
  %2243 = vmatpush1.msra.mxu0 0.0
  %2244 = vmatprep.subr.mxu0 0.0
  %2245 = vmatpush1.msra.mxu0 0.0
  %2246 = vmatprep.mubr.f32.mxu0 0.0
  %2247 = vmatmul.mubr.f32.gmra.mrb[0].mxu0 %v2103
  %v2248 = vpop.f32.mrb[0].mxu0
  %v2249 = vadd.f32 0.0, %v2248
  %v2250 = vpop.f32.mrb[0].mxu0
  %2251 = vdwg.mxu0
  %v2252 = vadd.f32 %v2089, %v2178
  %v2253 = vadd.f32 %v2090, %v2180
  %v2254 = vadd.f32 %v2091, %v2249
  %2255 = vrot.lane.b32.xlu0 %v455, 84
  %v2256 = vpop.permute.xlu0 %2255
  %2257 = vrot.lane.b32.xlu0 %v238, 40
  %v2258 = vpop.permute.xlu0 %2257
  %2259 = vrot.lane.b32.xlu0 %v240, 40
  %v2260 = vpop.permute.xlu0 %2259
  %2261 = vrot.lane.b32.xlu0 %v309, 40
  %v2262 = vpop.permute.xlu0 %2261
  %vm2263 = vcmask 326656
  %v2264 = vsel %vm2263, %v2258, %v2260
  %v2265 = vsel %vm2263, %v2260, %v2262
  %v2266 = vsel %vm461, %v2256, 0
  %v2268 = vsel %vm464, %v2264, 0
  %v2270 = vsel %vm464, %v2265, 0
  %v2272 = vsel %vm464, %v2262, 0
  %2274 = vmatprep.subr.mxu0 %v2270
  %2275 = vmatpush1.msra.mxu0 %v2268
  %2276 = vmatprep.subr.mxu0 0.0
  %2277 = vmatpush1.msra.mxu0 0.0
  %2278 = vmatprep.subr.mxu0 0.0
  %2279 = vmatpush1.msra.mxu0 0.0
  %2280 = vmatprep.subr.mxu0 0.0
  %2281 = vmatpush1.msra.mxu0 0.0
  %2282 = vmatprep.subr.mxu0 0.0
  %2283 = vmatpush1.msra.mxu0 0.0
  %2284 = vmatprep.subr.mxu0 0.0
  %2285 = vmatpush1.msra.mxu0 0.0
  %2286 = vmatprep.subr.mxu0 0.0
  %2287 = vmatpush1.msra.mxu0 0.0
  %2288 = vmatprep.subr.mxu0 0.0
  %2289 = vmatpush1.msra.mxu0 0.0
  %2290 = vmatprep.subr.mxu0 0.0
  %2291 = vmatpush1.msra.mxu0 0.0
  %2292 = vmatprep.subr.mxu0 0.0
  %2293 = vmatpush1.msra.mxu0 0.0
  %2294 = vmatprep.subr.mxu0 0.0
  %2295 = vmatpush1.msra.mxu0 0.0
  %2296 = vmatprep.subr.mxu0 0.0
  %2297 = vmatpush1.msra.mxu0 0.0
  %2298 = vmatprep.subr.mxu0 0.0
  %2299 = vmatpush1.msra.mxu0 0.0
  %2300 = vmatprep.subr.mxu0 0.0
  %2301 = vmatpush1.msra.mxu0 0.0
  %2302 = vmatprep.subr.mxu0 0.0
  %2303 = vmatpush1.msra.mxu0 0.0
  %2304 = vmatprep.subr.mxu0 0.0
  %2305 = vmatpush1.msra.mxu0 0.0
  %2306 = vmatprep.subr.mxu0 0.0
  %2307 = vmatpush1.msra.mxu0 0.0
  %2308 = vmatprep.subr.mxu0 0.0
  %2309 = vmatpush1.msra.mxu0 0.0
  %2310 = vmatprep.subr.mxu0 0.0
  %2311 = vmatpush1.msra.mxu0 0.0
  %2312 = vmatprep.subr.mxu0 0.0
  %2313 = vmatpush1.msra.mxu0 0.0
  %2314 = vmatprep.subr.mxu0 0.0
  %2315 = vmatpush1.msra.mxu0 0.0
  %2316 = vmatprep.subr.mxu0 0.0
  %2317 = vmatpush1.msra.mxu0 0.0
  %2318 = vmatprep.subr.mxu0 0.0
  %2319 = vmatpush1.msra.mxu0 0.0
  %2320 = vmatprep.subr.mxu0 0.0
  %2321 = vmatpush1.msra.mxu0 0.0
  %2322 = vmatprep.subr.mxu0 0.0
  %2323 = vmatpush1.msra.mxu0 0.0
  %2324 = vmatprep.subr.mxu0 0.0
  %2325 = vmatpush1.msra.mxu0 0.0
  %2326 = vmatprep.subr.mxu0 0.0
  %2327 = vmatpush1.msra.mxu0 0.0
  %2328 = vmatprep.subr.mxu0 0.0
  %2329 = vmatpush1.msra.mxu0 0.0
  %2330 = vmatprep.subr.mxu0 0.0
  %2331 = vmatpush1.msra.mxu0 0.0
  %2332 = vmatprep.subr.mxu0 0.0
  %2333 = vmatpush1.msra.mxu0 0.0
  %2334 = vmatprep.subr.mxu0 0.0
  %2335 = vmatpush1.msra.mxu0 0.0
  %2336 = vmatprep.subr.mxu0 0.0
  %2337 = vmatpush1.msra.mxu0 0.0
  %2338 = vmatprep.mubr.f32.mxu0 0.0
  %2339 = vmatmul.mubr.f32.gmra.mrb[0].mxu0 %v2266
  %v2340 = vpop.f32.mrb[0].mxu0
  %v2341 = vadd.f32 0.0, %v2340
  %v2342 = vpop.f32.mrb[0].mxu0
  %v2343 = vadd.f32 0.0, %v2342
  %2344 = vdwg.mxu0
  %2345 = vmatprep.subr.mxu0 0.0
  %2346 = vmatpush1.msra.mxu0 %v2272
  %2347 = vmatprep.subr.mxu0 0.0
  %2348 = vmatpush1.msra.mxu0 0.0
  %2349 = vmatprep.subr.mxu0 0.0
  %2350 = vmatpush1.msra.mxu0 0.0
  %2351 = vmatprep.subr.mxu0 0.0
  %2352 = vmatpush1.msra.mxu0 0.0
  %2353 = vmatprep.subr.mxu0 0.0
  %2354 = vmatpush1.msra.mxu0 0.0
  %2355 = vmatprep.subr.mxu0 0.0
  %2356 = vmatpush1.msra.mxu0 0.0
  %2357 = vmatprep.subr.mxu0 0.0
  %2358 = vmatpush1.msra.mxu0 0.0
  %2359 = vmatprep.subr.mxu0 0.0
  %2360 = vmatpush1.msra.mxu0 0.0
  %2361 = vmatprep.subr.mxu0 0.0
  %2362 = vmatpush1.msra.mxu0 0.0
  %2363 = vmatprep.subr.mxu0 0.0
  %2364 = vmatpush1.msra.mxu0 0.0
  %2365 = vmatprep.subr.mxu0 0.0
  %2366 = vmatpush1.msra.mxu0 0.0
  %2367 = vmatprep.subr.mxu0 0.0
  %2368 = vmatpush1.msra.mxu0 0.0
  %2369 = vmatprep.subr.mxu0 0.0
  %2370 = vmatpush1.msra.mxu0 0.0
  %2371 = vmatprep.subr.mxu0 0.0
  %2372 = vmatpush1.msra.mxu0 0.0
  %2373 = vmatprep.subr.mxu0 0.0
  %2374 = vmatpush1.msra.mxu0 0.0
  %2375 = vmatprep.subr.mxu0 0.0
  %2376 = vmatpush1.msra.mxu0 0.0
  %2377 = vmatprep.subr.mxu0 0.0
  %2378 = vmatpush1.msra.mxu0 0.0
  %2379 = vmatprep.subr.mxu0 0.0
  %2380 = vmatpush1.msra.mxu0 0.0
  %2381 = vmatprep.subr.mxu0 0.0
  %2382 = vmatpush1.msra.mxu0 0.0
  %2383 = vmatprep.subr.mxu0 0.0
  %2384 = vmatpush1.msra.mxu0 0.0
  %2385 = vmatprep.subr.mxu0 0.0
  %2386 = vmatpush1.msra.mxu0 0.0
  %2387 = vmatprep.subr.mxu0 0.0
  %2388 = vmatpush1.msra.mxu0 0.0
  %2389 = vmatprep.subr.mxu0 0.0
  %2390 = vmatpush1.msra.mxu0 0.0
  %2391 = vmatprep.subr.mxu0 0.0
  %2392 = vmatpush1.msra.mxu0 0.0
  %2393 = vmatprep.subr.mxu0 0.0
  %2394 = vmatpush1.msra.mxu0 0.0
  %2395 = vmatprep.subr.mxu0 0.0
  %2396 = vmatpush1.msra.mxu0 0.0
  %2397 = vmatprep.subr.mxu0 0.0
  %2398 = vmatpush1.msra.mxu0 0.0
  %2399 = vmatprep.subr.mxu0 0.0
  %2400 = vmatpush1.msra.mxu0 0.0
  %2401 = vmatprep.subr.mxu0 0.0
  %2402 = vmatpush1.msra.mxu0 0.0
  %2403 = vmatprep.subr.mxu0 0.0
  %2404 = vmatpush1.msra.mxu0 0.0
  %2405 = vmatprep.subr.mxu0 0.0
  %2406 = vmatpush1.msra.mxu0 0.0
  %2407 = vmatprep.subr.mxu0 0.0
  %2408 = vmatpush1.msra.mxu0 0.0
  %2409 = vmatprep.mubr.f32.mxu0 0.0
  %2410 = vmatmul.mubr.f32.gmra.mrb[0].mxu0 %v2266
  %v2411 = vpop.f32.mrb[0].mxu0
  %v2412 = vadd.f32 0.0, %v2411
  %v2413 = vpop.f32.mrb[0].mxu0
  %2414 = vdwg.mxu0
  %v2415 = vadd.f32 %v2252, %v2341
  %v2416 = vadd.f32 %v2253, %v2343
  %v2417 = vadd.f32 %v2254, %v2412
  %2418 = vrot.lane.b32.xlu0 %v455, 80
  %v2419 = vpop.permute.xlu0 %2418
  %2420 = vrot.lane.b32.xlu0 %v167, 108
  %v2421 = vpop.permute.xlu0 %2420
  %2422 = vrot.lane.b32.xlu0 %v169, 108
  %v2423 = vpop.permute.xlu0 %2422
  %2424 = vrot.lane.b32.xlu0 %v238, 108
  %v2425 = vpop.permute.xlu0 %2424
  %vm2426 = vcmask 883712
  %v2427 = vsel %vm2426, %v2421, %v2423
  %v2428 = vsel %vm2426, %v2423, %v2425
  %v2429 = vsel %vm461, %v2419, 0
  %v2431 = vsel %vm464, %v2427, 0
  %v2433 = vsel %vm464, %v2428, 0
  %v2435 = vsel %vm464, %v2425, 0
  %2437 = vmatprep.subr.mxu0 %v2433
  %2438 = vmatpush1.msra.mxu0 %v2431
  %2439 = vmatprep.subr.mxu0 0.0
  %2440 = vmatpush1.msra.mxu0 0.0
  %2441 = vmatprep.subr.mxu0 0.0
  %2442 = vmatpush1.msra.mxu0 0.0
  %2443 = vmatprep.subr.mxu0 0.0
  %2444 = vmatpush1.msra.mxu0 0.0
  %2445 = vmatprep.subr.mxu0 0.0
  %2446 = vmatpush1.msra.mxu0 0.0
  %2447 = vmatprep.subr.mxu0 0.0
  %2448 = vmatpush1.msra.mxu0 0.0
  %2449 = vmatprep.subr.mxu0 0.0
  %2450 = vmatpush1.msra.mxu0 0.0
  %2451 = vmatprep.subr.mxu0 0.0
  %2452 = vmatpush1.msra.mxu0 0.0
  %2453 = vmatprep.subr.mxu0 0.0
  %2454 = vmatpush1.msra.mxu0 0.0
  %2455 = vmatprep.subr.mxu0 0.0
  %2456 = vmatpush1.msra.mxu0 0.0
  %2457 = vmatprep.subr.mxu0 0.0
  %2458 = vmatpush1.msra.mxu0 0.0
  %2459 = vmatprep.subr.mxu0 0.0
  %2460 = vmatpush1.msra.mxu0 0.0
  %2461 = vmatprep.subr.mxu0 0.0
  %2462 = vmatpush1.msra.mxu0 0.0
  %2463 = vmatprep.subr.mxu0 0.0
  %2464 = vmatpush1.msra.mxu0 0.0
  %2465 = vmatprep.subr.mxu0 0.0
  %2466 = vmatpush1.msra.mxu0 0.0
  %2467 = vmatprep.subr.mxu0 0.0
  %2468 = vmatpush1.msra.mxu0 0.0
  %2469 = vmatprep.subr.mxu0 0.0
  %2470 = vmatpush1.msra.mxu0 0.0
  %2471 = vmatprep.subr.mxu0 0.0
  %2472 = vmatpush1.msra.mxu0 0.0
  %2473 = vmatprep.subr.mxu0 0.0
  %2474 = vmatpush1.msra.mxu0 0.0
  %2475 = vmatprep.subr.mxu0 0.0
  %2476 = vmatpush1.msra.mxu0 0.0
  %2477 = vmatprep.subr.mxu0 0.0
  %2478 = vmatpush1.msra.mxu0 0.0
  %2479 = vmatprep.subr.mxu0 0.0
  %2480 = vmatpush1.msra.mxu0 0.0
  %2481 = vmatprep.subr.mxu0 0.0
  %2482 = vmatpush1.msra.mxu0 0.0
  %2483 = vmatprep.subr.mxu0 0.0
  %2484 = vmatpush1.msra.mxu0 0.0
  %2485 = vmatprep.subr.mxu0 0.0
  %2486 = vmatpush1.msra.mxu0 0.0
  %2487 = vmatprep.subr.mxu0 0.0
  %2488 = vmatpush1.msra.mxu0 0.0
  %2489 = vmatprep.subr.mxu0 0.0
  %2490 = vmatpush1.msra.mxu0 0.0
  %2491 = vmatprep.subr.mxu0 0.0
  %2492 = vmatpush1.msra.mxu0 0.0
  %2493 = vmatprep.subr.mxu0 0.0
  %2494 = vmatpush1.msra.mxu0 0.0
  %2495 = vmatprep.subr.mxu0 0.0
  %2496 = vmatpush1.msra.mxu0 0.0
  %2497 = vmatprep.subr.mxu0 0.0
  %2498 = vmatpush1.msra.mxu0 0.0
  %2499 = vmatprep.subr.mxu0 0.0
  %2500 = vmatpush1.msra.mxu0 0.0
  %2501 = vmatprep.mubr.f32.mxu0 0.0
  %2502 = vmatmul.mubr.f32.gmra.mrb[0].mxu0 %v2429
  %v2503 = vpop.f32.mrb[0].mxu0
  %v2504 = vadd.f32 0.0, %v2503
  %v2505 = vpop.f32.mrb[0].mxu0
  %v2506 = vadd.f32 0.0, %v2505
  %2507 = vdwg.mxu0
  %2508 = vmatprep.subr.mxu0 0.0
  %2509 = vmatpush1.msra.mxu0 %v2435
  %2510 = vmatprep.subr.mxu0 0.0
  %2511 = vmatpush1.msra.mxu0 0.0
  %2512 = vmatprep.subr.mxu0 0.0
  %2513 = vmatpush1.msra.mxu0 0.0
  %2514 = vmatprep.subr.mxu0 0.0
  %2515 = vmatpush1.msra.mxu0 0.0
  %2516 = vmatprep.subr.mxu0 0.0
  %2517 = vmatpush1.msra.mxu0 0.0
  %2518 = vmatprep.subr.mxu0 0.0
  %2519 = vmatpush1.msra.mxu0 0.0
  %2520 = vmatprep.subr.mxu0 0.0
  %2521 = vmatpush1.msra.mxu0 0.0
  %2522 = vmatprep.subr.mxu0 0.0
  %2523 = vmatpush1.msra.mxu0 0.0
  %2524 = vmatprep.subr.mxu0 0.0
  %2525 = vmatpush1.msra.mxu0 0.0
  %2526 = vmatprep.subr.mxu0 0.0
  %2527 = vmatpush1.msra.mxu0 0.0
  %2528 = vmatprep.subr.mxu0 0.0
  %2529 = vmatpush1.msra.mxu0 0.0
  %2530 = vmatprep.subr.mxu0 0.0
  %2531 = vmatpush1.msra.mxu0 0.0
  %2532 = vmatprep.subr.mxu0 0.0
  %2533 = vmatpush1.msra.mxu0 0.0
  %2534 = vmatprep.subr.mxu0 0.0
  %2535 = vmatpush1.msra.mxu0 0.0
  %2536 = vmatprep.subr.mxu0 0.0
  %2537 = vmatpush1.msra.mxu0 0.0
  %2538 = vmatprep.subr.mxu0 0.0
  %2539 = vmatpush1.msra.mxu0 0.0
  %2540 = vmatprep.subr.mxu0 0.0
  %2541 = vmatpush1.msra.mxu0 0.0
  %2542 = vmatprep.subr.mxu0 0.0
  %2543 = vmatpush1.msra.mxu0 0.0
  %2544 = vmatprep.subr.mxu0 0.0
  %2545 = vmatpush1.msra.mxu0 0.0
  %2546 = vmatprep.subr.mxu0 0.0
  %2547 = vmatpush1.msra.mxu0 0.0
  %2548 = vmatprep.subr.mxu0 0.0
  %2549 = vmatpush1.msra.mxu0 0.0
  %2550 = vmatprep.subr.mxu0 0.0
  %2551 = vmatpush1.msra.mxu0 0.0
  %2552 = vmatprep.subr.mxu0 0.0
  %2553 = vmatpush1.msra.mxu0 0.0
  %2554 = vmatprep.subr.mxu0 0.0
  %2555 = vmatpush1.msra.mxu0 0.0
  %2556 = vmatprep.subr.mxu0 0.0
  %2557 = vmatpush1.msra.mxu0 0.0
  %2558 = vmatprep.subr.mxu0 0.0
  %2559 = vmatpush1.msra.mxu0 0.0
  %2560 = vmatprep.subr.mxu0 0.0
  %2561 = vmatpush1.msra.mxu0 0.0
  %2562 = vmatprep.subr.mxu0 0.0
  %2563 = vmatpush1.msra.mxu0 0.0
  %2564 = vmatprep.subr.mxu0 0.0
  %2565 = vmatpush1.msra.mxu0 0.0
  %2566 = vmatprep.subr.mxu0 0.0
  %2567 = vmatpush1.msra.mxu0 0.0
  %2568 = vmatprep.subr.mxu0 0.0
  %2569 = vmatpush1.msra.mxu0 0.0
  %2570 = vmatprep.subr.mxu0 0.0
  %2571 = vmatpush1.msra.mxu0 0.0
  %2572 = vmatprep.mubr.f32.mxu0 0.0
  %2573 = vmatmul.mubr.f32.gmra.mrb[0].mxu0 %v2429
  %v2574 = vpop.f32.mrb[0].mxu0
  %v2575 = vadd.f32 0.0, %v2574
  %v2576 = vpop.f32.mrb[0].mxu0
  %2577 = vdwg.mxu0
  %v2578 = vadd.f32 %v2415, %v2504
  %v2579 = vadd.f32 %v2416, %v2506
  %v2580 = vadd.f32 %v2417, %v2575
  %2581 = vrot.lane.b32.xlu0 %v455, 76
  %v2582 = vpop.permute.xlu0 %2581
  %2583 = vrot.lane.b32.xlu0 %v238, 39
  %v2584 = vpop.permute.xlu0 %2583
  %2585 = vrot.lane.b32.xlu0 %v240, 39
  %v2586 = vpop.permute.xlu0 %2585
  %2587 = vrot.lane.b32.xlu0 %v309, 39
  %v2588 = vpop.permute.xlu0 %2587
  %vm2589 = vcmask 318464
  %v2590 = vsel %vm2589, %v2584, %v2586
  %v2591 = vsel %vm2589, %v2586, %v2588
  %v2592 = vsel %vm461, %v2582, 0
  %v2594 = vsel %vm464, %v2590, 0
  %v2596 = vsel %vm464, %v2591, 0
  %v2598 = vsel %vm464, %v2588, 0
  %2600 = vmatprep.subr.mxu0 %v2596
  %2601 = vmatpush1.msra.mxu0 %v2594
  %2602 = vmatprep.subr.mxu0 0.0
  %2603 = vmatpush1.msra.mxu0 0.0
  %2604 = vmatprep.subr.mxu0 0.0
  %2605 = vmatpush1.msra.mxu0 0.0
  %2606 = vmatprep.subr.mxu0 0.0
  %2607 = vmatpush1.msra.mxu0 0.0
  %2608 = vmatprep.subr.mxu0 0.0
  %2609 = vmatpush1.msra.mxu0 0.0
  %2610 = vmatprep.subr.mxu0 0.0
  %2611 = vmatpush1.msra.mxu0 0.0
  %2612 = vmatprep.subr.mxu0 0.0
  %2613 = vmatpush1.msra.mxu0 0.0
  %2614 = vmatprep.subr.mxu0 0.0
  %2615 = vmatpush1.msra.mxu0 0.0
  %2616 = vmatprep.subr.mxu0 0.0
  %2617 = vmatpush1.msra.mxu0 0.0
  %2618 = vmatprep.subr.mxu0 0.0
  %2619 = vmatpush1.msra.mxu0 0.0
  %2620 = vmatprep.subr.mxu0 0.0
  %2621 = vmatpush1.msra.mxu0 0.0
  %2622 = vmatprep.subr.mxu0 0.0
  %2623 = vmatpush1.msra.mxu0 0.0
  %2624 = vmatprep.subr.mxu0 0.0
  %2625 = vmatpush1.msra.mxu0 0.0
  %2626 = vmatprep.subr.mxu0 0.0
  %2627 = vmatpush1.msra.mxu0 0.0
  %2628 = vmatprep.subr.mxu0 0.0
  %2629 = vmatpush1.msra.mxu0 0.0
  %2630 = vmatprep.subr.mxu0 0.0
  %2631 = vmatpush1.msra.mxu0 0.0
  %2632 = vmatprep.subr.mxu0 0.0
  %2633 = vmatpush1.msra.mxu0 0.0
  %2634 = vmatprep.subr.mxu0 0.0
  %2635 = vmatpush1.msra.mxu0 0.0
  %2636 = vmatprep.subr.mxu0 0.0
  %2637 = vmatpush1.msra.mxu0 0.0
  %2638 = vmatprep.subr.mxu0 0.0
  %2639 = vmatpush1.msra.mxu0 0.0
  %2640 = vmatprep.subr.mxu0 0.0
  %2641 = vmatpush1.msra.mxu0 0.0
  %2642 = vmatprep.subr.mxu0 0.0
  %2643 = vmatpush1.msra.mxu0 0.0
  %2644 = vmatprep.subr.mxu0 0.0
  %2645 = vmatpush1.msra.mxu0 0.0
  %2646 = vmatprep.subr.mxu0 0.0
  %2647 = vmatpush1.msra.mxu0 0.0
  %2648 = vmatprep.subr.mxu0 0.0
  %2649 = vmatpush1.msra.mxu0 0.0
  %2650 = vmatprep.subr.mxu0 0.0
  %2651 = vmatpush1.msra.mxu0 0.0
  %2652 = vmatprep.subr.mxu0 0.0
  %2653 = vmatpush1.msra.mxu0 0.0
  %2654 = vmatprep.subr.mxu0 0.0
  %2655 = vmatpush1.msra.mxu0 0.0
  %2656 = vmatprep.subr.mxu0 0.0
  %2657 = vmatpush1.msra.mxu0 0.0
  %2658 = vmatprep.subr.mxu0 0.0
  %2659 = vmatpush1.msra.mxu0 0.0
  %2660 = vmatprep.subr.mxu0 0.0
  %2661 = vmatpush1.msra.mxu0 0.0
  %2662 = vmatprep.subr.mxu0 0.0
  %2663 = vmatpush1.msra.mxu0 0.0
  %2664 = vmatprep.mubr.f32.mxu0 0.0
  %2665 = vmatmul.mubr.f32.gmra.mrb[0].mxu0 %v2592
  %v2666 = vpop.f32.mrb[0].mxu0
  %v2667 = vadd.f32 0.0, %v2666
  %v2668 = vpop.f32.mrb[0].mxu0
  %v2669 = vadd.f32 0.0, %v2668
  %2670 = vdwg.mxu0
  %2671 = vmatprep.subr.mxu0 0.0
  %2672 = vmatpush1.msra.mxu0 %v2598
  %2673 = vmatprep.subr.mxu0 0.0
  %2674 = vmatpush1.msra.mxu0 0.0
  %2675 = vmatprep.subr.mxu0 0.0
  %2676 = vmatpush1.msra.mxu0 0.0
  %2677 = vmatprep.subr.mxu0 0.0
  %2678 = vmatpush1.msra.mxu0 0.0
  %2679 = vmatprep.subr.mxu0 0.0
  %2680 = vmatpush1.msra.mxu0 0.0
  %2681 = vmatprep.subr.mxu0 0.0
  %2682 = vmatpush1.msra.mxu0 0.0
  %2683 = vmatprep.subr.mxu0 0.0
  %2684 = vmatpush1.msra.mxu0 0.0
  %2685 = vmatprep.subr.mxu0 0.0
  %2686 = vmatpush1.msra.mxu0 0.0
  %2687 = vmatprep.subr.mxu0 0.0
  %2688 = vmatpush1.msra.mxu0 0.0
  %2689 = vmatprep.subr.mxu0 0.0
  %2690 = vmatpush1.msra.mxu0 0.0
  %2691 = vmatprep.subr.mxu0 0.0
  %2692 = vmatpush1.msra.mxu0 0.0
  %2693 = vmatprep.subr.mxu0 0.0
  %2694 = vmatpush1.msra.mxu0 0.0
  %2695 = vmatprep.subr.mxu0 0.0
  %2696 = vmatpush1.msra.mxu0 0.0
  %2697 = vmatprep.subr.mxu0 0.0
  %2698 = vmatpush1.msra.mxu0 0.0
  %2699 = vmatprep.subr.mxu0 0.0
  %2700 = vmatpush1.msra.mxu0 0.0
  %2701 = vmatprep.subr.mxu0 0.0
  %2702 = vmatpush1.msra.mxu0 0.0
  %2703 = vmatprep.subr.mxu0 0.0
  %2704 = vmatpush1.msra.mxu0 0.0
  %2705 = vmatprep.subr.mxu0 0.0
  %2706 = vmatpush1.msra.mxu0 0.0
  %2707 = vmatprep.subr.mxu0 0.0
  %2708 = vmatpush1.msra.mxu0 0.0
  %2709 = vmatprep.subr.mxu0 0.0
  %2710 = vmatpush1.msra.mxu0 0.0
  %2711 = vmatprep.subr.mxu0 0.0
  %2712 = vmatpush1.msra.mxu0 0.0
  %2713 = vmatprep.subr.mxu0 0.0
  %2714 = vmatpush1.msra.mxu0 0.0
  %2715 = vmatprep.subr.mxu0 0.0
  %2716 = vmatpush1.msra.mxu0 0.0
  %2717 = vmatprep.subr.mxu0 0.0
  %2718 = vmatpush1.msra.mxu0 0.0
  %2719 = vmatprep.subr.mxu0 0.0
  %2720 = vmatpush1.msra.mxu0 0.0
  %2721 = vmatprep.subr.mxu0 0.0
  %2722 = vmatpush1.msra.mxu0 0.0
  %2723 = vmatprep.subr.mxu0 0.0
  %2724 = vmatpush1.msra.mxu0 0.0
  %2725 = vmatprep.subr.mxu0 0.0
  %2726 = vmatpush1.msra.mxu0 0.0
  %2727 = vmatprep.subr.mxu0 0.0
  %2728 = vmatpush1.msra.mxu0 0.0
  %2729 = vmatprep.subr.mxu0 0.0
  %2730 = vmatpush1.msra.mxu0 0.0
  %2731 = vmatprep.subr.mxu0 0.0
  %2732 = vmatpush1.msra.mxu0 0.0
  %2733 = vmatprep.subr.mxu0 0.0
  %2734 = vmatpush1.msra.mxu0 0.0
  %2735 = vmatprep.mubr.f32.mxu0 0.0
  %2736 = vmatmul.mubr.f32.gmra.mrb[0].mxu0 %v2592
  %v2737 = vpop.f32.mrb[0].mxu0
  %v2738 = vadd.f32 0.0, %v2737
  %v2739 = vpop.f32.mrb[0].mxu0
  %2740 = vdwg.mxu0
  %v2741 = vadd.f32 %v2578, %v2667
  %v2742 = vadd.f32 %v2579, %v2669
  %v2743 = vadd.f32 %v2580, %v2738
  %2744 = vrot.lane.b32.xlu0 %v455, 72
  %v2745 = vpop.permute.xlu0 %2744
  %2746 = vrot.lane.b32.xlu0 %v167, 107
  %v2747 = vpop.permute.xlu0 %2746
  %2748 = vrot.lane.b32.xlu0 %v169, 107
  %v2749 = vpop.permute.xlu0 %2748
  %2750 = vrot.lane.b32.xlu0 %v238, 107
  %v2751 = vpop.permute.xlu0 %2750
  %vm2752 = vcmask 875520
  %v2753 = vsel %vm2752, %v2747, %v2749
  %v2754 = vsel %vm2752, %v2749, %v2751
  %v2755 = vsel %vm461, %v2745, 0
  %v2757 = vsel %vm464, %v2753, 0
  %v2759 = vsel %vm464, %v2754, 0
  %v2761 = vsel %vm464, %v2751, 0
  %2763 = vmatprep.subr.mxu0 %v2759
  %2764 = vmatpush1.msra.mxu0 %v2757
  %2765 = vmatprep.subr.mxu0 0.0
  %2766 = vmatpush1.msra.mxu0 0.0
  %2767 = vmatprep.subr.mxu0 0.0
  %2768 = vmatpush1.msra.mxu0 0.0
  %2769 = vmatprep.subr.mxu0 0.0
  %2770 = vmatpush1.msra.mxu0 0.0
  %2771 = vmatprep.subr.mxu0 0.0
  %2772 = vmatpush1.msra.mxu0 0.0
  %2773 = vmatprep.subr.mxu0 0.0
  %2774 = vmatpush1.msra.mxu0 0.0
  %2775 = vmatprep.subr.mxu0 0.0
  %2776 = vmatpush1.msra.mxu0 0.0
  %2777 = vmatprep.subr.mxu0 0.0
  %2778 = vmatpush1.msra.mxu0 0.0
  %2779 = vmatprep.subr.mxu0 0.0
  %2780 = vmatpush1.msra.mxu0 0.0
  %2781 = vmatprep.subr.mxu0 0.0
  %2782 = vmatpush1.msra.mxu0 0.0
  %2783 = vmatprep.subr.mxu0 0.0
  %2784 = vmatpush1.msra.mxu0 0.0
  %2785 = vmatprep.subr.mxu0 0.0
  %2786 = vmatpush1.msra.mxu0 0.0
  %2787 = vmatprep.subr.mxu0 0.0
  %2788 = vmatpush1.msra.mxu0 0.0
  %2789 = vmatprep.subr.mxu0 0.0
  %2790 = vmatpush1.msra.mxu0 0.0
  %2791 = vmatprep.subr.mxu0 0.0
  %2792 = vmatpush1.msra.mxu0 0.0
  %2793 = vmatprep.subr.mxu0 0.0
  %2794 = vmatpush1.msra.mxu0 0.0
  %2795 = vmatprep.subr.mxu0 0.0
  %2796 = vmatpush1.msra.mxu0 0.0
  %2797 = vmatprep.subr.mxu0 0.0
  %2798 = vmatpush1.msra.mxu0 0.0
  %2799 = vmatprep.subr.mxu0 0.0
  %2800 = vmatpush1.msra.mxu0 0.0
  %2801 = vmatprep.subr.mxu0 0.0
  %2802 = vmatpush1.msra.mxu0 0.0
  %2803 = vmatprep.subr.mxu0 0.0
  %2804 = vmatpush1.msra.mxu0 0.0
  %2805 = vmatprep.subr.mxu0 0.0
  %2806 = vmatpush1.msra.mxu0 0.0
  %2807 = vmatprep.subr.mxu0 0.0
  %2808 = vmatpush1.msra.mxu0 0.0
  %2809 = vmatprep.subr.mxu0 0.0
  %2810 = vmatpush1.msra.mxu0 0.0
  %2811 = vmatprep.subr.mxu0 0.0
  %2812 = vmatpush1.msra.mxu0 0.0
  %2813 = vmatprep.subr.mxu0 0.0
  %2814 = vmatpush1.msra.mxu0 0.0
  %2815 = vmatprep.subr.mxu0 0.0
  %2816 = vmatpush1.msra.mxu0 0.0
  %2817 = vmatprep.subr.mxu0 0.0
  %2818 = vmatpush1.msra.mxu0 0.0
  %2819 = vmatprep.subr.mxu0 0.0
  %2820 = vmatpush1.msra.mxu0 0.0
  %2821 = vmatprep.subr.mxu0 0.0
  %2822 = vmatpush1.msra.mxu0 0.0
  %2823 = vmatprep.subr.mxu0 0.0
  %2824 = vmatpush1.msra.mxu0 0.0
  %2825 = vmatprep.subr.mxu0 0.0
  %2826 = vmatpush1.msra.mxu0 0.0
  %2827 = vmatprep.mubr.f32.mxu0 0.0
  %2828 = vmatmul.mubr.f32.gmra.mrb[0].mxu0 %v2755
  %v2829 = vpop.f32.mrb[0].mxu0
  %v2830 = vadd.f32 0.0, %v2829
  %v2831 = vpop.f32.mrb[0].mxu0
  %v2832 = vadd.f32 0.0, %v2831
  %2833 = vdwg.mxu0
  %2834 = vmatprep.subr.mxu0 0.0
  %2835 = vmatpush1.msra.mxu0 %v2761
  %2836 = vmatprep.subr.mxu0 0.0
  %2837 = vmatpush1.msra.mxu0 0.0
  %2838 = vmatprep.subr.mxu0 0.0
  %2839 = vmatpush1.msra.mxu0 0.0
  %2840 = vmatprep.subr.mxu0 0.0
  %2841 = vmatpush1.msra.mxu0 0.0
  %2842 = vmatprep.subr.mxu0 0.0
  %2843 = vmatpush1.msra.mxu0 0.0
  %2844 = vmatprep.subr.mxu0 0.0
  %2845 = vmatpush1.msra.mxu0 0.0
  %2846 = vmatprep.subr.mxu0 0.0
  %2847 = vmatpush1.msra.mxu0 0.0
  %2848 = vmatprep.subr.mxu0 0.0
  %2849 = vmatpush1.msra.mxu0 0.0
  %2850 = vmatprep.subr.mxu0 0.0
  %2851 = vmatpush1.msra.mxu0 0.0
  %2852 = vmatprep.subr.mxu0 0.0
  %2853 = vmatpush1.msra.mxu0 0.0
  %2854 = vmatprep.subr.mxu0 0.0
  %2855 = vmatpush1.msra.mxu0 0.0
  %2856 = vmatprep.subr.mxu0 0.0
  %2857 = vmatpush1.msra.mxu0 0.0
  %2858 = vmatprep.subr.mxu0 0.0
  %2859 = vmatpush1.msra.mxu0 0.0
  %2860 = vmatprep.subr.mxu0 0.0
  %2861 = vmatpush1.msra.mxu0 0.0
  %2862 = vmatprep.subr.mxu0 0.0
  %2863 = vmatpush1.msra.mxu0 0.0
  %2864 = vmatprep.subr.mxu0 0.0
  %2865 = vmatpush1.msra.mxu0 0.0
  %2866 = vmatprep.subr.mxu0 0.0
  %2867 = vmatpush1.msra.mxu0 0.0
  %2868 = vmatprep.subr.mxu0 0.0
  %2869 = vmatpush1.msra.mxu0 0.0
  %2870 = vmatprep.subr.mxu0 0.0
  %2871 = vmatpush1.msra.mxu0 0.0
  %2872 = vmatprep.subr.mxu0 0.0
  %2873 = vmatpush1.msra.mxu0 0.0
  %2874 = vmatprep.subr.mxu0 0.0
  %2875 = vmatpush1.msra.mxu0 0.0
  %2876 = vmatprep.subr.mxu0 0.0
  %2877 = vmatpush1.msra.mxu0 0.0
  %2878 = vmatprep.subr.mxu0 0.0
  %2879 = vmatpush1.msra.mxu0 0.0
  %2880 = vmatprep.subr.mxu0 0.0
  %2881 = vmatpush1.msra.mxu0 0.0
  %2882 = vmatprep.subr.mxu0 0.0
  %2883 = vmatpush1.msra.mxu0 0.0
  %2884 = vmatprep.subr.mxu0 0.0
  %2885 = vmatpush1.msra.mxu0 0.0
  %2886 = vmatprep.subr.mxu0 0.0
  %2887 = vmatpush1.msra.mxu0 0.0
  %2888 = vmatprep.subr.mxu0 0.0
  %2889 = vmatpush1.msra.mxu0 0.0
  %2890 = vmatprep.subr.mxu0 0.0
  %2891 = vmatpush1.msra.mxu0 0.0
  %2892 = vmatprep.subr.mxu0 0.0
  %2893 = vmatpush1.msra.mxu0 0.0
  %2894 = vmatprep.subr.mxu0 0.0
  %2895 = vmatpush1.msra.mxu0 0.0
  %2896 = vmatprep.subr.mxu0 0.0
  %2897 = vmatpush1.msra.mxu0 0.0
  %2898 = vmatprep.mubr.f32.mxu0 0.0
  %2899 = vmatmul.mubr.f32.gmra.mrb[0].mxu0 %v2755
  %v2900 = vpop.f32.mrb[0].mxu0
  %v2901 = vadd.f32 0.0, %v2900
  %v2902 = vpop.f32.mrb[0].mxu0
  %2903 = vdwg.mxu0
  %v2904 = vadd.f32 %v2741, %v2830
  %v2905 = vadd.f32 %v2742, %v2832
  %v2906 = vadd.f32 %v2743, %v2901
  %2907 = vrot.lane.b32.xlu0 %v455, 68
  %v2908 = vpop.permute.xlu0 %2907
  %2909 = vrot.lane.b32.xlu0 %v311, 99
  %v2910 = vpop.permute.xlu0 %2909
  %2911 = vrot.lane.b32.xlu0 %v380, 99
  %v2912 = vpop.permute.xlu0 %2911
  %2913 = vrot.lane.b32.xlu0 %v382, 99
  %v2914 = vpop.permute.xlu0 %2913
  %vm2915 = vcmask 809984
  %v2916 = vsel %vm2915, %v2910, %v2912
  %v2917 = vsel %vm2915, %v2912, %v2914
  %v2918 = vsel %vm461, %v2908, 0
  %v2920 = vsel %vm464, %v2916, 0
  %v2922 = vsel %vm464, %v2917, 0
  %v2924 = vsel %vm464, %v2914, 0
  %2926 = vmatprep.subr.mxu0 %v2922
  %2927 = vmatpush1.msra.mxu0 %v2920
  %2928 = vmatprep.subr.mxu0 0.0
  %2929 = vmatpush1.msra.mxu0 0.0
  %2930 = vmatprep.subr.mxu0 0.0
  %2931 = vmatpush1.msra.mxu0 0.0
  %2932 = vmatprep.subr.mxu0 0.0
  %2933 = vmatpush1.msra.mxu0 0.0
  %2934 = vmatprep.subr.mxu0 0.0
  %2935 = vmatpush1.msra.mxu0 0.0
  %2936 = vmatprep.subr.mxu0 0.0
  %2937 = vmatpush1.msra.mxu0 0.0
  %2938 = vmatprep.subr.mxu0 0.0
  %2939 = vmatpush1.msra.mxu0 0.0
  %2940 = vmatprep.subr.mxu0 0.0
  %2941 = vmatpush1.msra.mxu0 0.0
  %2942 = vmatprep.subr.mxu0 0.0
  %2943 = vmatpush1.msra.mxu0 0.0
  %2944 = vmatprep.subr.mxu0 0.0
  %2945 = vmatpush1.msra.mxu0 0.0
  %2946 = vmatprep.subr.mxu0 0.0
  %2947 = vmatpush1.msra.mxu0 0.0
  %2948 = vmatprep.subr.mxu0 0.0
  %2949 = vmatpush1.msra.mxu0 0.0
  %2950 = vmatprep.subr.mxu0 0.0
  %2951 = vmatpush1.msra.mxu0 0.0
  %2952 = vmatprep.subr.mxu0 0.0
  %2953 = vmatpush1.msra.mxu0 0.0
  %2954 = vmatprep.subr.mxu0 0.0
  %2955 = vmatpush1.msra.mxu0 0.0
  %2956 = vmatprep.subr.mxu0 0.0
  %2957 = vmatpush1.msra.mxu0 0.0
  %2958 = vmatprep.subr.mxu0 0.0
  %2959 = vmatpush1.msra.mxu0 0.0
  %2960 = vmatprep.subr.mxu0 0.0
  %2961 = vmatpush1.msra.mxu0 0.0
  %2962 = vmatprep.subr.mxu0 0.0
  %2963 = vmatpush1.msra.mxu0 0.0
  %2964 = vmatprep.subr.mxu0 0.0
  %2965 = vmatpush1.msra.mxu0 0.0
  %2966 = vmatprep.subr.mxu0 0.0
  %2967 = vmatpush1.msra.mxu0 0.0
  %2968 = vmatprep.subr.mxu0 0.0
  %2969 = vmatpush1.msra.mxu0 0.0
  %2970 = vmatprep.subr.mxu0 0.0
  %2971 = vmatpush1.msra.mxu0 0.0
  %2972 = vmatprep.subr.mxu0 0.0
  %2973 = vmatpush1.msra.mxu0 0.0
  %2974 = vmatprep.subr.mxu0 0.0
  %2975 = vmatpush1.msra.mxu0 0.0
  %2976 = vmatprep.subr.mxu0 0.0
  %2977 = vmatpush1.msra.mxu0 0.0
  %2978 = vmatprep.subr.mxu0 0.0
  %2979 = vmatpush1.msra.mxu0 0.0
  %2980 = vmatprep.subr.mxu0 0.0
  %2981 = vmatpush1.msra.mxu0 0.0
  %2982 = vmatprep.subr.mxu0 0.0
  %2983 = vmatpush1.msra.mxu0 0.0
  %2984 = vmatprep.subr.mxu0 0.0
  %2985 = vmatpush1.msra.mxu0 0.0
  %2986 = vmatprep.subr.mxu0 0.0
  %2987 = vmatpush1.msra.mxu0 0.0
  %2988 = vmatprep.subr.mxu0 0.0
  %2989 = vmatpush1.msra.mxu0 0.0
  %2990 = vmatprep.mubr.f32.mxu0 0.0
  %2991 = vmatmul.mubr.f32.gmra.mrb[0].mxu0 %v2918
  %v2992 = vpop.f32.mrb[0].mxu0
  %v2993 = vadd.f32 0.0, %v2992
  %v2994 = vpop.f32.mrb[0].mxu0
  %v2995 = vadd.f32 0.0, %v2994
  %2996 = vdwg.mxu0
  %2997 = vmatprep.subr.mxu0 0.0
  %2998 = vmatpush1.msra.mxu0 %v2924
  %2999 = vmatprep.subr.mxu0 0.0
  %3000 = vmatpush1.msra.mxu0 0.0
  %3001 = vmatprep.subr.mxu0 0.0
  %3002 = vmatpush1.msra.mxu0 0.0
  %3003 = vmatprep.subr.mxu0 0.0
  %3004 = vmatpush1.msra.mxu0 0.0
  %3005 = vmatprep.subr.mxu0 0.0
  %3006 = vmatpush1.msra.mxu0 0.0
  %3007 = vmatprep.subr.mxu0 0.0
  %3008 = vmatpush1.msra.mxu0 0.0
  %3009 = vmatprep.subr.mxu0 0.0
  %3010 = vmatpush1.msra.mxu0 0.0
  %3011 = vmatprep.subr.mxu0 0.0
  %3012 = vmatpush1.msra.mxu0 0.0
  %3013 = vmatprep.subr.mxu0 0.0
  %3014 = vmatpush1.msra.mxu0 0.0
  %3015 = vmatprep.subr.mxu0 0.0
  %3016 = vmatpush1.msra.mxu0 0.0
  %3017 = vmatprep.subr.mxu0 0.0
  %3018 = vmatpush1.msra.mxu0 0.0
  %3019 = vmatprep.subr.mxu0 0.0
  %3020 = vmatpush1.msra.mxu0 0.0
  %3021 = vmatprep.subr.mxu0 0.0
  %3022 = vmatpush1.msra.mxu0 0.0
  %3023 = vmatprep.subr.mxu0 0.0
  %3024 = vmatpush1.msra.mxu0 0.0
  %3025 = vmatprep.subr.mxu0 0.0
  %3026 = vmatpush1.msra.mxu0 0.0
  %3027 = vmatprep.subr.mxu0 0.0
  %3028 = vmatpush1.msra.mxu0 0.0
  %3029 = vmatprep.subr.mxu0 0.0
  %3030 = vmatpush1.msra.mxu0 0.0
  %3031 = vmatprep.subr.mxu0 0.0
  %3032 = vmatpush1.msra.mxu0 0.0
  %3033 = vmatprep.subr.mxu0 0.0
  %3034 = vmatpush1.msra.mxu0 0.0
  %3035 = vmatprep.subr.mxu0 0.0
  %3036 = vmatpush1.msra.mxu0 0.0
  %3037 = vmatprep.subr.mxu0 0.0
  %3038 = vmatpush1.msra.mxu0 0.0
  %3039 = vmatprep.subr.mxu0 0.0
  %3040 = vmatpush1.msra.mxu0 0.0
  %3041 = vmatprep.subr.mxu0 0.0
  %3042 = vmatpush1.msra.mxu0 0.0
  %3043 = vmatprep.subr.mxu0 0.0
  %3044 = vmatpush1.msra.mxu0 0.0
  %3045 = vmatprep.subr.mxu0 0.0
  %3046 = vmatpush1.msra.mxu0 0.0
  %3047 = vmatprep.subr.mxu0 0.0
  %3048 = vmatpush1.msra.mxu0 0.0
  %3049 = vmatprep.subr.mxu0 0.0
  %3050 = vmatpush1.msra.mxu0 0.0
  %3051 = vmatprep.subr.mxu0 0.0
  %3052 = vmatpush1.msra.mxu0 0.0
  %3053 = vmatprep.subr.mxu0 0.0
  %3054 = vmatpush1.msra.mxu0 0.0
  %3055 = vmatprep.subr.mxu0 0.0
  %3056 = vmatpush1.msra.mxu0 0.0
  %3057 = vmatprep.subr.mxu0 0.0
  %3058 = vmatpush1.msra.mxu0 0.0
  %3059 = vmatprep.subr.mxu0 0.0
  %3060 = vmatpush1.msra.mxu0 0.0
  %3061 = vmatprep.mubr.f32.mxu0 0.0
  %3062 = vmatmul.mubr.f32.gmra.mrb[0].mxu0 %v2918
  %v3063 = vpop.f32.mrb[0].mxu0
  %v3064 = vadd.f32 0.0, %v3063
  %v3065 = vpop.f32.mrb[0].mxu0
  %3066 = vdwg.mxu0
  %v3067 = vadd.f32 %v2904, %v2993
  %v3068 = vadd.f32 %v2905, %v2995
  %v3069 = vadd.f32 %v2906, %v3064
  %3070 = vrot.lane.b32.xlu0 %v455, 64
  %v3071 = vpop.permute.xlu0 %3070
  %3072 = vrot.lane.b32.xlu0 %v382, 30
  %v3073 = vpop.permute.xlu0 %3072
  %3074 = vrot.lane.b32.xlu0 %v451, 30
  %v3075 = vpop.permute.xlu0 %3074
  %3076 = vrot.lane.b32.xlu0 %v453, 30
  %v3077 = vpop.permute.xlu0 %3076
  %vm3078 = vcmask 244736
  %v3079 = vsel %vm3078, %v3073, %v3075
  %v3080 = vsel %vm3078, %v3075, %v3077
  %v3081 = vsel %vm461, %v3071, 0
  %v3083 = vsel %vm464, %v3079, 0
  %v3085 = vsel %vm464, %v3080, 0
  %v3087 = vsel %vm464, %v3077, 0
  %3089 = vmatprep.subr.mxu0 %v3085
  %3090 = vmatpush1.msra.mxu0 %v3083
  %3091 = vmatprep.subr.mxu0 0.0
  %3092 = vmatpush1.msra.mxu0 0.0
  %3093 = vmatprep.subr.mxu0 0.0
  %3094 = vmatpush1.msra.mxu0 0.0
  %3095 = vmatprep.subr.mxu0 0.0
  %3096 = vmatpush1.msra.mxu0 0.0
  %3097 = vmatprep.subr.mxu0 0.0
  %3098 = vmatpush1.msra.mxu0 0.0
  %3099 = vmatprep.subr.mxu0 0.0
  %3100 = vmatpush1.msra.mxu0 0.0
  %3101 = vmatprep.subr.mxu0 0.0
  %3102 = vmatpush1.msra.mxu0 0.0
  %3103 = vmatprep.subr.mxu0 0.0
  %3104 = vmatpush1.msra.mxu0 0.0
  %3105 = vmatprep.subr.mxu0 0.0
  %3106 = vmatpush1.msra.mxu0 0.0
  %3107 = vmatprep.subr.mxu0 0.0
  %3108 = vmatpush1.msra.mxu0 0.0
  %3109 = vmatprep.subr.mxu0 0.0
  %3110 = vmatpush1.msra.mxu0 0.0
  %3111 = vmatprep.subr.mxu0 0.0
  %3112 = vmatpush1.msra.mxu0 0.0
  %3113 = vmatprep.subr.mxu0 0.0
  %3114 = vmatpush1.msra.mxu0 0.0
  %3115 = vmatprep.subr.mxu0 0.0
  %3116 = vmatpush1.msra.mxu0 0.0
  %3117 = vmatprep.subr.mxu0 0.0
  %3118 = vmatpush1.msra.mxu0 0.0
  %3119 = vmatprep.subr.mxu0 0.0
  %3120 = vmatpush1.msra.mxu0 0.0
  %3121 = vmatprep.subr.mxu0 0.0
  %3122 = vmatpush1.msra.mxu0 0.0
  %3123 = vmatprep.subr.mxu0 0.0
  %3124 = vmatpush1.msra.mxu0 0.0
  %3125 = vmatprep.subr.mxu0 0.0
  %3126 = vmatpush1.msra.mxu0 0.0
  %3127 = vmatprep.subr.mxu0 0.0
  %3128 = vmatpush1.msra.mxu0 0.0
  %3129 = vmatprep.subr.mxu0 0.0
  %3130 = vmatpush1.msra.mxu0 0.0
  %3131 = vmatprep.subr.mxu0 0.0
  %3132 = vmatpush1.msra.mxu0 0.0
  %3133 = vmatprep.subr.mxu0 0.0
  %3134 = vmatpush1.msra.mxu0 0.0
  %3135 = vmatprep.subr.mxu0 0.0
  %3136 = vmatpush1.msra.mxu0 0.0
  %3137 = vmatprep.subr.mxu0 0.0
  %3138 = vmatpush1.msra.mxu0 0.0
  %3139 = vmatprep.subr.mxu0 0.0
  %3140 = vmatpush1.msra.mxu0 0.0
  %3141 = vmatprep.subr.mxu0 0.0
  %3142 = vmatpush1.msra.mxu0 0.0
  %3143 = vmatprep.subr.mxu0 0.0
  %3144 = vmatpush1.msra.mxu0 0.0
  %3145 = vmatprep.subr.mxu0 0.0
  %3146 = vmatpush1.msra.mxu0 0.0
  %3147 = vmatprep.subr.mxu0 0.0
  %3148 = vmatpush1.msra.mxu0 0.0
  %3149 = vmatprep.subr.mxu0 0.0
  %3150 = vmatpush1.msra.mxu0 0.0
  %3151 = vmatprep.subr.mxu0 0.0
  %3152 = vmatpush1.msra.mxu0 0.0
  %3153 = vmatprep.mubr.f32.mxu0 0.0
  %3154 = vmatmul.mubr.f32.gmra.mrb[0].mxu0 %v3081
  %v3155 = vpop.f32.mrb[0].mxu0
  %v3156 = vadd.f32 0.0, %v3155
  %v3157 = vpop.f32.mrb[0].mxu0
  %v3158 = vadd.f32 0.0, %v3157
  %3159 = vdwg.mxu0
  %3160 = vmatprep.subr.mxu0 0.0
  %3161 = vmatpush1.msra.mxu0 %v3087
  %3162 = vmatprep.subr.mxu0 0.0
  %3163 = vmatpush1.msra.mxu0 0.0
  %3164 = vmatprep.subr.mxu0 0.0
  %3165 = vmatpush1.msra.mxu0 0.0
  %3166 = vmatprep.subr.mxu0 0.0
  %3167 = vmatpush1.msra.mxu0 0.0
  %3168 = vmatprep.subr.mxu0 0.0
  %3169 = vmatpush1.msra.mxu0 0.0
  %3170 = vmatprep.subr.mxu0 0.0
  %3171 = vmatpush1.msra.mxu0 0.0
  %3172 = vmatprep.subr.mxu0 0.0
  %3173 = vmatpush1.msra.mxu0 0.0
  %3174 = vmatprep.subr.mxu0 0.0
  %3175 = vmatpush1.msra.mxu0 0.0
  %3176 = vmatprep.subr.mxu0 0.0
  %3177 = vmatpush1.msra.mxu0 0.0
  %3178 = vmatprep.subr.mxu0 0.0
  %3179 = vmatpush1.msra.mxu0 0.0
  %3180 = vmatprep.subr.mxu0 0.0
  %3181 = vmatpush1.msra.mxu0 0.0
  %3182 = vmatprep.subr.mxu0 0.0
  %3183 = vmatpush1.msra.mxu0 0.0
  %3184 = vmatprep.subr.mxu0 0.0
  %3185 = vmatpush1.msra.mxu0 0.0
  %3186 = vmatprep.subr.mxu0 0.0
  %3187 = vmatpush1.msra.mxu0 0.0
  %3188 = vmatprep.subr.mxu0 0.0
  %3189 = vmatpush1.msra.mxu0 0.0
  %3190 = vmatprep.subr.mxu0 0.0
  %3191 = vmatpush1.msra.mxu0 0.0
  %3192 = vmatprep.subr.mxu0 0.0
  %3193 = vmatpush1.msra.mxu0 0.0
  %3194 = vmatprep.subr.mxu0 0.0
  %3195 = vmatpush1.msra.mxu0 0.0
  %3196 = vmatprep.subr.mxu0 0.0
  %3197 = vmatpush1.msra.mxu0 0.0
  %3198 = vmatprep.subr.mxu0 0.0
  %3199 = vmatpush1.msra.mxu0 0.0
  %3200 = vmatprep.subr.mxu0 0.0
  %3201 = vmatpush1.msra.mxu0 0.0
  %3202 = vmatprep.subr.mxu0 0.0
  %3203 = vmatpush1.msra.mxu0 0.0
  %3204 = vmatprep.subr.mxu0 0.0
  %3205 = vmatpush1.msra.mxu0 0.0
  %3206 = vmatprep.subr.mxu0 0.0
  %3207 = vmatpush1.msra.mxu0 0.0
  %3208 = vmatprep.subr.mxu0 0.0
  %3209 = vmatpush1.msra.mxu0 0.0
  %3210 = vmatprep.subr.mxu0 0.0
  %3211 = vmatpush1.msra.mxu0 0.0
  %3212 = vmatprep.subr.mxu0 0.0
  %3213 = vmatpush1.msra.mxu0 0.0
  %3214 = vmatprep.subr.mxu0 0.0
  %3215 = vmatpush1.msra.mxu0 0.0
  %3216 = vmatprep.subr.mxu0 0.0
  %3217 = vmatpush1.msra.mxu0 0.0
  %3218 = vmatprep.subr.mxu0 0.0
  %3219 = vmatpush1.msra.mxu0 0.0
  %3220 = vmatprep.subr.mxu0 0.0
  %3221 = vmatpush1.msra.mxu0 0.0
  %3222 = vmatprep.subr.mxu0 0.0
  %3223 = vmatpush1.msra.mxu0 0.0
  %3224 = vmatprep.mubr.f32.mxu0 0.0
  %3225 = vmatmul.mubr.f32.gmra.mrb[0].mxu0 %v3081
  %v3226 = vpop.f32.mrb[0].mxu0
  %v3227 = vadd.f32 0.0, %v3226
  %v3228 = vpop.f32.mrb[0].mxu0
  %3229 = vdwg.mxu0
  %v3230 = vadd.f32 %v3067, %v3156
  %v3231 = vadd.f32 %v3068, %v3158
  %v3232 = vadd.f32 %v3069, %v3227
  %3233 = vrot.lane.b32.xlu0 %v455, 60
  %v3234 = vpop.permute.xlu0 %3233
  %3235 = vrot.lane.b32.xlu0 %v311, 98
  %v3236 = vpop.permute.xlu0 %3235
  %3237 = vrot.lane.b32.xlu0 %v380, 98
  %v3238 = vpop.permute.xlu0 %3237
  %3239 = vrot.lane.b32.xlu0 %v382, 98
  %v3240 = vpop.permute.xlu0 %3239
  %vm3241 = vcmask 801792
  %v3242 = vsel %vm3241, %v3236, %v3238
  %v3243 = vsel %vm3241, %v3238, %v3240
  %v3244 = vsel %vm461, %v3234, 0
  %v3246 = vsel %vm464, %v3242, 0
  %v3248 = vsel %vm464, %v3243, 0
  %v3250 = vsel %vm464, %v3240, 0
  %3252 = vmatprep.subr.mxu0 %v3248
  %3253 = vmatpush1.msra.mxu0 %v3246
  %3254 = vmatprep.subr.mxu0 0.0
  %3255 = vmatpush1.msra.mxu0 0.0
  %3256 = vmatprep.subr.mxu0 0.0
  %3257 = vmatpush1.msra.mxu0 0.0
  %3258 = vmatprep.subr.mxu0 0.0
  %3259 = vmatpush1.msra.mxu0 0.0
  %3260 = vmatprep.subr.mxu0 0.0
  %3261 = vmatpush1.msra.mxu0 0.0
  %3262 = vmatprep.subr.mxu0 0.0
  %3263 = vmatpush1.msra.mxu0 0.0
  %3264 = vmatprep.subr.mxu0 0.0
  %3265 = vmatpush1.msra.mxu0 0.0
  %3266 = vmatprep.subr.mxu0 0.0
  %3267 = vmatpush1.msra.mxu0 0.0
  %3268 = vmatprep.subr.mxu0 0.0
  %3269 = vmatpush1.msra.mxu0 0.0
  %3270 = vmatprep.subr.mxu0 0.0
  %3271 = vmatpush1.msra.mxu0 0.0
  %3272 = vmatprep.subr.mxu0 0.0
  %3273 = vmatpush1.msra.mxu0 0.0
  %3274 = vmatprep.subr.mxu0 0.0
  %3275 = vmatpush1.msra.mxu0 0.0
  %3276 = vmatprep.subr.mxu0 0.0
  %3277 = vmatpush1.msra.mxu0 0.0
  %3278 = vmatprep.subr.mxu0 0.0
  %3279 = vmatpush1.msra.mxu0 0.0
  %3280 = vmatprep.subr.mxu0 0.0
  %3281 = vmatpush1.msra.mxu0 0.0
  %3282 = vmatprep.subr.mxu0 0.0
  %3283 = vmatpush1.msra.mxu0 0.0
  %3284 = vmatprep.subr.mxu0 0.0
  %3285 = vmatpush1.msra.mxu0 0.0
  %3286 = vmatprep.subr.mxu0 0.0
  %3287 = vmatpush1.msra.mxu0 0.0
  %3288 = vmatprep.subr.mxu0 0.0
  %3289 = vmatpush1.msra.mxu0 0.0
  %3290 = vmatprep.subr.mxu0 0.0
  %3291 = vmatpush1.msra.mxu0 0.0
  %3292 = vmatprep.subr.mxu0 0.0
  %3293 = vmatpush1.msra.mxu0 0.0
  %3294 = vmatprep.subr.mxu0 0.0
  %3295 = vmatpush1.msra.mxu0 0.0
  %3296 = vmatprep.subr.mxu0 0.0
  %3297 = vmatpush1.msra.mxu0 0.0
  %3298 = vmatprep.subr.mxu0 0.0
  %3299 = vmatpush1.msra.mxu0 0.0
  %3300 = vmatprep.subr.mxu0 0.0
  %3301 = vmatpush1.msra.mxu0 0.0
  %3302 = vmatprep.subr.mxu0 0.0
  %3303 = vmatpush1.msra.mxu0 0.0
  %3304 = vmatprep.subr.mxu0 0.0
  %3305 = vmatpush1.msra.mxu0 0.0
  %3306 = vmatprep.subr.mxu0 0.0
  %3307 = vmatpush1.msra.mxu0 0.0
  %3308 = vmatprep.subr.mxu0 0.0
  %3309 = vmatpush1.msra.mxu0 0.0
  %3310 = vmatprep.subr.mxu0 0.0
  %3311 = vmatpush1.msra.mxu0 0.0
  %3312 = vmatprep.subr.mxu0 0.0
  %3313 = vmatpush1.msra.mxu0 0.0
  %3314 = vmatprep.subr.mxu0 0.0
  %3315 = vmatpush1.msra.mxu0 0.0
  %3316 = vmatprep.mubr.f32.mxu0 0.0
  %3317 = vmatmul.mubr.f32.gmra.mrb[0].mxu0 %v3244
  %v3318 = vpop.f32.mrb[0].mxu0
  %v3319 = vadd.f32 0.0, %v3318
  %v3320 = vpop.f32.mrb[0].mxu0
  %v3321 = vadd.f32 0.0, %v3320
  %3322 = vdwg.mxu0
  %3323 = vmatprep.subr.mxu0 0.0
  %3324 = vmatpush1.msra.mxu0 %v3250
  %3325 = vmatprep.subr.mxu0 0.0
  %3326 = vmatpush1.msra.mxu0 0.0
  %3327 = vmatprep.subr.mxu0 0.0
  %3328 = vmatpush1.msra.mxu0 0.0
  %3329 = vmatprep.subr.mxu0 0.0
  %3330 = vmatpush1.msra.mxu0 0.0
  %3331 = vmatprep.subr.mxu0 0.0
  %3332 = vmatpush1.msra.mxu0 0.0
  %3333 = vmatprep.subr.mxu0 0.0
  %3334 = vmatpush1.msra.mxu0 0.0
  %3335 = vmatprep.subr.mxu0 0.0
  %3336 = vmatpush1.msra.mxu0 0.0
  %3337 = vmatprep.subr.mxu0 0.0
  %3338 = vmatpush1.msra.mxu0 0.0
  %3339 = vmatprep.subr.mxu0 0.0
  %3340 = vmatpush1.msra.mxu0 0.0
  %3341 = vmatprep.subr.mxu0 0.0
  %3342 = vmatpush1.msra.mxu0 0.0
  %3343 = vmatprep.subr.mxu0 0.0
  %3344 = vmatpush1.msra.mxu0 0.0
  %3345 = vmatprep.subr.mxu0 0.0
  %3346 = vmatpush1.msra.mxu0 0.0
  %3347 = vmatprep.subr.mxu0 0.0
  %3348 = vmatpush1.msra.mxu0 0.0
  %3349 = vmatprep.subr.mxu0 0.0
  %3350 = vmatpush1.msra.mxu0 0.0
  %3351 = vmatprep.subr.mxu0 0.0
  %3352 = vmatpush1.msra.mxu0 0.0
  %3353 = vmatprep.subr.mxu0 0.0
  %3354 = vmatpush1.msra.mxu0 0.0
  %3355 = vmatprep.subr.mxu0 0.0
  %3356 = vmatpush1.msra.mxu0 0.0
  %3357 = vmatprep.subr.mxu0 0.0
  %3358 = vmatpush1.msra.mxu0 0.0
  %3359 = vmatprep.subr.mxu0 0.0
  %3360 = vmatpush1.msra.mxu0 0.0
  %3361 = vmatprep.subr.mxu0 0.0
  %3362 = vmatpush1.msra.mxu0 0.0
  %3363 = vmatprep.subr.mxu0 0.0
  %3364 = vmatpush1.msra.mxu0 0.0
  %3365 = vmatprep.subr.mxu0 0.0
  %3366 = vmatpush1.msra.mxu0 0.0
  %3367 = vmatprep.subr.mxu0 0.0
  %3368 = vmatpush1.msra.mxu0 0.0
  %3369 = vmatprep.subr.mxu0 0.0
  %3370 = vmatpush1.msra.mxu0 0.0
  %3371 = vmatprep.subr.mxu0 0.0
  %3372 = vmatpush1.msra.mxu0 0.0
  %3373 = vmatprep.subr.mxu0 0.0
  %3374 = vmatpush1.msra.mxu0 0.0
  %3375 = vmatprep.subr.mxu0 0.0
  %3376 = vmatpush1.msra.mxu0 0.0
  %3377 = vmatprep.subr.mxu0 0.0
  %3378 = vmatpush1.msra.mxu0 0.0
  %3379 = vmatprep.subr.mxu0 0.0
  %3380 = vmatpush1.msra.mxu0 0.0
  %3381 = vmatprep.subr.mxu0 0.0
  %3382 = vmatpush1.msra.mxu0 0.0
  %3383 = vmatprep.subr.mxu0 0.0
  %3384 = vmatpush1.msra.mxu0 0.0
  %3385 = vmatprep.subr.mxu0 0.0
  %3386 = vmatpush1.msra.mxu0 0.0
  %3387 = vmatprep.mubr.f32.mxu0 0.0
  %3388 = vmatmul.mubr.f32.gmra.mrb[0].mxu0 %v3244
  %v3389 = vpop.f32.mrb[0].mxu0
  %v3390 = vadd.f32 0.0, %v3389
  %v3391 = vpop.f32.mrb[0].mxu0
  %3392 = vdwg.mxu0
  %v3393 = vadd.f32 %v3230, %v3319
  %v3394 = vadd.f32 %v3231, %v3321
  %v3395 = vadd.f32 %v3232, %v3390
  %3396 = vrot.lane.b32.xlu0 %v455, 56
  %v3397 = vpop.permute.xlu0 %3396
  %3398 = vrot.lane.b32.xlu0 %v382, 29
  %v3399 = vpop.permute.xlu0 %3398
  %3400 = vrot.lane.b32.xlu0 %v451, 29
  %v3401 = vpop.permute.xlu0 %3400
  %3402 = vrot.lane.b32.xlu0 %v453, 29
  %v3403 = vpop.permute.xlu0 %3402
  %vm3404 = vcmask 236544
  %v3405 = vsel %vm3404, %v3399, %v3401
  %v3406 = vsel %vm3404, %v3401, %v3403
  %v3407 = vsel %vm461, %v3397, 0
  %v3409 = vsel %vm464, %v3405, 0
  %v3411 = vsel %vm464, %v3406, 0
  %v3413 = vsel %vm464, %v3403, 0
  %3415 = vmatprep.subr.mxu0 %v3411
  %3416 = vmatpush1.msra.mxu0 %v3409
  %3417 = vmatprep.subr.mxu0 0.0
  %3418 = vmatpush1.msra.mxu0 0.0
  %3419 = vmatprep.subr.mxu0 0.0
  %3420 = vmatpush1.msra.mxu0 0.0
  %3421 = vmatprep.subr.mxu0 0.0
  %3422 = vmatpush1.msra.mxu0 0.0
  %3423 = vmatprep.subr.mxu0 0.0
  %3424 = vmatpush1.msra.mxu0 0.0
  %3425 = vmatprep.subr.mxu0 0.0
  %3426 = vmatpush1.msra.mxu0 0.0
  %3427 = vmatprep.subr.mxu0 0.0
  %3428 = vmatpush1.msra.mxu0 0.0
  %3429 = vmatprep.subr.mxu0 0.0
  %3430 = vmatpush1.msra.mxu0 0.0
  %3431 = vmatprep.subr.mxu0 0.0
  %3432 = vmatpush1.msra.mxu0 0.0
  %3433 = vmatprep.subr.mxu0 0.0
  %3434 = vmatpush1.msra.mxu0 0.0
  %3435 = vmatprep.subr.mxu0 0.0
  %3436 = vmatpush1.msra.mxu0 0.0
  %3437 = vmatprep.subr.mxu0 0.0
  %3438 = vmatpush1.msra.mxu0 0.0
  %3439 = vmatprep.subr.mxu0 0.0
  %3440 = vmatpush1.msra.mxu0 0.0
  %3441 = vmatprep.subr.mxu0 0.0
  %3442 = vmatpush1.msra.mxu0 0.0
  %3443 = vmatprep.subr.mxu0 0.0
  %3444 = vmatpush1.msra.mxu0 0.0
  %3445 = vmatprep.subr.mxu0 0.0
  %3446 = vmatpush1.msra.mxu0 0.0
  %3447 = vmatprep.subr.mxu0 0.0
  %3448 = vmatpush1.msra.mxu0 0.0
  %3449 = vmatprep.subr.mxu0 0.0
  %3450 = vmatpush1.msra.mxu0 0.0
  %3451 = vmatprep.subr.mxu0 0.0
  %3452 = vmatpush1.msra.mxu0 0.0
  %3453 = vmatprep.subr.mxu0 0.0
  %3454 = vmatpush1.msra.mxu0 0.0
  %3455 = vmatprep.subr.mxu0 0.0
  %3456 = vmatpush1.msra.mxu0 0.0
  %3457 = vmatprep.subr.mxu0 0.0
  %3458 = vmatpush1.msra.mxu0 0.0
  %3459 = vmatprep.subr.mxu0 0.0
  %3460 = vmatpush1.msra.mxu0 0.0
  %3461 = vmatprep.subr.mxu0 0.0
  %3462 = vmatpush1.msra.mxu0 0.0
  %3463 = vmatprep.subr.mxu0 0.0
  %3464 = vmatpush1.msra.mxu0 0.0
  %3465 = vmatprep.subr.mxu0 0.0
  %3466 = vmatpush1.msra.mxu0 0.0
  %3467 = vmatprep.subr.mxu0 0.0
  %3468 = vmatpush1.msra.mxu0 0.0
  %3469 = vmatprep.subr.mxu0 0.0
  %3470 = vmatpush1.msra.mxu0 0.0
  %3471 = vmatprep.subr.mxu0 0.0
  %3472 = vmatpush1.msra.mxu0 0.0
  %3473 = vmatprep.subr.mxu0 0.0
  %3474 = vmatpush1.msra.mxu0 0.0
  %3475 = vmatprep.subr.mxu0 0.0
  %3476 = vmatpush1.msra.mxu0 0.0
  %3477 = vmatprep.subr.mxu0 0.0
  %3478 = vmatpush1.msra.mxu0 0.0
  %3479 = vmatprep.mubr.f32.mxu0 0.0
  %3480 = vmatmul.mubr.f32.gmra.mrb[0].mxu0 %v3407
  %v3481 = vpop.f32.mrb[0].mxu0
  %v3482 = vadd.f32 0.0, %v3481
  %v3483 = vpop.f32.mrb[0].mxu0
  %v3484 = vadd.f32 0.0, %v3483
  %3485 = vdwg.mxu0
  %3486 = vmatprep.subr.mxu0 0.0
  %3487 = vmatpush1.msra.mxu0 %v3413
  %3488 = vmatprep.subr.mxu0 0.0
  %3489 = vmatpush1.msra.mxu0 0.0
  %3490 = vmatprep.subr.mxu0 0.0
  %3491 = vmatpush1.msra.mxu0 0.0
  %3492 = vmatprep.subr.mxu0 0.0
  %3493 = vmatpush1.msra.mxu0 0.0
  %3494 = vmatprep.subr.mxu0 0.0
  %3495 = vmatpush1.msra.mxu0 0.0
  %3496 = vmatprep.subr.mxu0 0.0
  %3497 = vmatpush1.msra.mxu0 0.0
  %3498 = vmatprep.subr.mxu0 0.0
  %3499 = vmatpush1.msra.mxu0 0.0
  %3500 = vmatprep.subr.mxu0 0.0
  %3501 = vmatpush1.msra.mxu0 0.0
  %3502 = vmatprep.subr.mxu0 0.0
  %3503 = vmatpush1.msra.mxu0 0.0
  %3504 = vmatprep.subr.mxu0 0.0
  %3505 = vmatpush1.msra.mxu0 0.0
  %3506 = vmatprep.subr.mxu0 0.0
  %3507 = vmatpush1.msra.mxu0 0.0
  %3508 = vmatprep.subr.mxu0 0.0
  %3509 = vmatpush1.msra.mxu0 0.0
  %3510 = vmatprep.subr.mxu0 0.0
  %3511 = vmatpush1.msra.mxu0 0.0
  %3512 = vmatprep.subr.mxu0 0.0
  %3513 = vmatpush1.msra.mxu0 0.0
  %3514 = vmatprep.subr.mxu0 0.0
  %3515 = vmatpush1.msra.mxu0 0.0
  %3516 = vmatprep.subr.mxu0 0.0
  %3517 = vmatpush1.msra.mxu0 0.0
  %3518 = vmatprep.subr.mxu0 0.0
  %3519 = vmatpush1.msra.mxu0 0.0
  %3520 = vmatprep.subr.mxu0 0.0
  %3521 = vmatpush1.msra.mxu0 0.0
  %3522 = vmatprep.subr.mxu0 0.0
  %3523 = vmatpush1.msra.mxu0 0.0
  %3524 = vmatprep.subr.mxu0 0.0
  %3525 = vmatpush1.msra.mxu0 0.0
  %3526 = vmatprep.subr.mxu0 0.0
  %3527 = vmatpush1.msra.mxu0 0.0
  %3528 = vmatprep.subr.mxu0 0.0
  %3529 = vmatpush1.msra.mxu0 0.0
  %3530 = vmatprep.subr.mxu0 0.0
  %3531 = vmatpush1.msra.mxu0 0.0
  %3532 = vmatprep.subr.mxu0 0.0
  %3533 = vmatpush1.msra.mxu0 0.0
  %3534 = vmatprep.subr.mxu0 0.0
  %3535 = vmatpush1.msra.mxu0 0.0
  %3536 = vmatprep.subr.mxu0 0.0
  %3537 = vmatpush1.msra.mxu0 0.0
  %3538 = vmatprep.subr.mxu0 0.0
  %3539 = vmatpush1.msra.mxu0 0.0
  %3540 = vmatprep.subr.mxu0 0.0
  %3541 = vmatpush1.msra.mxu0 0.0
  %3542 = vmatprep.subr.mxu0 0.0
  %3543 = vmatpush1.msra.mxu0 0.0
  %3544 = vmatprep.subr.mxu0 0.0
  %3545 = vmatpush1.msra.mxu0 0.0
  %3546 = vmatprep.subr.mxu0 0.0
  %3547 = vmatpush1.msra.mxu0 0.0
  %3548 = vmatprep.subr.mxu0 0.0
  %3549 = vmatpush1.msra.mxu0 0.0
  %3550 = vmatprep.mubr.f32.mxu0 0.0
  %3551 = vmatmul.mubr.f32.gmra.mrb[0].mxu0 %v3407
  %v3552 = vpop.f32.mrb[0].mxu0
  %v3553 = vadd.f32 0.0, %v3552
  %v3554 = vpop.f32.mrb[0].mxu0
  %3555 = vdwg.mxu0
  %v3556 = vadd.f32 %v3393, %v3482
  %v3557 = vadd.f32 %v3394, %v3484
  %v3558 = vadd.f32 %v3395, %v3553
  %3559 = vrot.lane.b32.xlu0 %v455, 52
  %v3560 = vpop.permute.xlu0 %3559
  %3561 = vrot.lane.b32.xlu0 %v311, 97
  %v3562 = vpop.permute.xlu0 %3561
  %3563 = vrot.lane.b32.xlu0 %v380, 97
  %v3564 = vpop.permute.xlu0 %3563
  %3565 = vrot.lane.b32.xlu0 %v382, 97
  %v3566 = vpop.permute.xlu0 %3565
  %vm3567 = vcmask 793600
  %v3568 = vsel %vm3567, %v3562, %v3564
  %v3569 = vsel %vm3567, %v3564, %v3566
  %v3570 = vsel %vm461, %v3560, 0
  %v3572 = vsel %vm464, %v3568, 0
  %v3574 = vsel %vm464, %v3569, 0
  %v3576 = vsel %vm464, %v3566, 0
  %3578 = vmatprep.subr.mxu0 %v3574
  %3579 = vmatpush1.msra.mxu0 %v3572
  %3580 = vmatprep.subr.mxu0 0.0
  %3581 = vmatpush1.msra.mxu0 0.0
  %3582 = vmatprep.subr.mxu0 0.0
  %3583 = vmatpush1.msra.mxu0 0.0
  %3584 = vmatprep.subr.mxu0 0.0
  %3585 = vmatpush1.msra.mxu0 0.0
  %3586 = vmatprep.subr.mxu0 0.0
  %3587 = vmatpush1.msra.mxu0 0.0
  %3588 = vmatprep.subr.mxu0 0.0
  %3589 = vmatpush1.msra.mxu0 0.0
  %3590 = vmatprep.subr.mxu0 0.0
  %3591 = vmatpush1.msra.mxu0 0.0
  %3592 = vmatprep.subr.mxu0 0.0
  %3593 = vmatpush1.msra.mxu0 0.0
  %3594 = vmatprep.subr.mxu0 0.0
  %3595 = vmatpush1.msra.mxu0 0.0
  %3596 = vmatprep.subr.mxu0 0.0
  %3597 = vmatpush1.msra.mxu0 0.0
  %3598 = vmatprep.subr.mxu0 0.0
  %3599 = vmatpush1.msra.mxu0 0.0
  %3600 = vmatprep.subr.mxu0 0.0
  %3601 = vmatpush1.msra.mxu0 0.0
  %3602 = vmatprep.subr.mxu0 0.0
  %3603 = vmatpush1.msra.mxu0 0.0
  %3604 = vmatprep.subr.mxu0 0.0
  %3605 = vmatpush1.msra.mxu0 0.0
  %3606 = vmatprep.subr.mxu0 0.0
  %3607 = vmatpush1.msra.mxu0 0.0
  %3608 = vmatprep.subr.mxu0 0.0
  %3609 = vmatpush1.msra.mxu0 0.0
  %3610 = vmatprep.subr.mxu0 0.0
  %3611 = vmatpush1.msra.mxu0 0.0
  %3612 = vmatprep.subr.mxu0 0.0
  %3613 = vmatpush1.msra.mxu0 0.0
  %3614 = vmatprep.subr.mxu0 0.0
  %3615 = vmatpush1.msra.mxu0 0.0
  %3616 = vmatprep.subr.mxu0 0.0
  %3617 = vmatpush1.msra.mxu0 0.0
  %3618 = vmatprep.subr.mxu0 0.0
  %3619 = vmatpush1.msra.mxu0 0.0
  %3620 = vmatprep.subr.mxu0 0.0
  %3621 = vmatpush1.msra.mxu0 0.0
  %3622 = vmatprep.subr.mxu0 0.0
  %3623 = vmatpush1.msra.mxu0 0.0
  %3624 = vmatprep.subr.mxu0 0.0
  %3625 = vmatpush1.msra.mxu0 0.0
  %3626 = vmatprep.subr.mxu0 0.0
  %3627 = vmatpush1.msra.mxu0 0.0
  %3628 = vmatprep.subr.mxu0 0.0
  %3629 = vmatpush1.msra.mxu0 0.0
  %3630 = vmatprep.subr.mxu0 0.0
  %3631 = vmatpush1.msra.mxu0 0.0
  %3632 = vmatprep.subr.mxu0 0.0
  %3633 = vmatpush1.msra.mxu0 0.0
  %3634 = vmatprep.subr.mxu0 0.0
  %3635 = vmatpush1.msra.mxu0 0.0
  %3636 = vmatprep.subr.mxu0 0.0
  %3637 = vmatpush1.msra.mxu0 0.0
  %3638 = vmatprep.subr.mxu0 0.0
  %3639 = vmatpush1.msra.mxu0 0.0
  %3640 = vmatprep.subr.mxu0 0.0
  %3641 = vmatpush1.msra.mxu0 0.0
  %3642 = vmatprep.mubr.f32.mxu0 0.0
  %3643 = vmatmul.mubr.f32.gmra.mrb[0].mxu0 %v3570
  %v3644 = vpop.f32.mrb[0].mxu0
  %v3645 = vadd.f32 0.0, %v3644
  %v3646 = vpop.f32.mrb[0].mxu0
  %v3647 = vadd.f32 0.0, %v3646
  %3648 = vdwg.mxu0
  %3649 = vmatprep.subr.mxu0 0.0
  %3650 = vmatpush1.msra.mxu0 %v3576
  %3651 = vmatprep.subr.mxu0 0.0
  %3652 = vmatpush1.msra.mxu0 0.0
  %3653 = vmatprep.subr.mxu0 0.0
  %3654 = vmatpush1.msra.mxu0 0.0
  %3655 = vmatprep.subr.mxu0 0.0
  %3656 = vmatpush1.msra.mxu0 0.0
  %3657 = vmatprep.subr.mxu0 0.0
  %3658 = vmatpush1.msra.mxu0 0.0
  %3659 = vmatprep.subr.mxu0 0.0
  %3660 = vmatpush1.msra.mxu0 0.0
  %3661 = vmatprep.subr.mxu0 0.0
  %3662 = vmatpush1.msra.mxu0 0.0
  %3663 = vmatprep.subr.mxu0 0.0
  %3664 = vmatpush1.msra.mxu0 0.0
  %3665 = vmatprep.subr.mxu0 0.0
  %3666 = vmatpush1.msra.mxu0 0.0
  %3667 = vmatprep.subr.mxu0 0.0
  %3668 = vmatpush1.msra.mxu0 0.0
  %3669 = vmatprep.subr.mxu0 0.0
  %3670 = vmatpush1.msra.mxu0 0.0
  %3671 = vmatprep.subr.mxu0 0.0
  %3672 = vmatpush1.msra.mxu0 0.0
  %3673 = vmatprep.subr.mxu0 0.0
  %3674 = vmatpush1.msra.mxu0 0.0
  %3675 = vmatprep.subr.mxu0 0.0
  %3676 = vmatpush1.msra.mxu0 0.0
  %3677 = vmatprep.subr.mxu0 0.0
  %3678 = vmatpush1.msra.mxu0 0.0
  %3679 = vmatprep.subr.mxu0 0.0
  %3680 = vmatpush1.msra.mxu0 0.0
  %3681 = vmatprep.subr.mxu0 0.0
  %3682 = vmatpush1.msra.mxu0 0.0
  %3683 = vmatprep.subr.mxu0 0.0
  %3684 = vmatpush1.msra.mxu0 0.0
  %3685 = vmatprep.subr.mxu0 0.0
  %3686 = vmatpush1.msra.mxu0 0.0
  %3687 = vmatprep.subr.mxu0 0.0
  %3688 = vmatpush1.msra.mxu0 0.0
  %3689 = vmatprep.subr.mxu0 0.0
  %3690 = vmatpush1.msra.mxu0 0.0
  %3691 = vmatprep.subr.mxu0 0.0
  %3692 = vmatpush1.msra.mxu0 0.0
  %3693 = vmatprep.subr.mxu0 0.0
  %3694 = vmatpush1.msra.mxu0 0.0
  %3695 = vmatprep.subr.mxu0 0.0
  %3696 = vmatpush1.msra.mxu0 0.0
  %3697 = vmatprep.subr.mxu0 0.0
  %3698 = vmatpush1.msra.mxu0 0.0
  %3699 = vmatprep.subr.mxu0 0.0
  %3700 = vmatpush1.msra.mxu0 0.0
  %3701 = vmatprep.subr.mxu0 0.0
  %3702 = vmatpush1.msra.mxu0 0.0
  %3703 = vmatprep.subr.mxu0 0.0
  %3704 = vmatpush1.msra.mxu0 0.0
  %3705 = vmatprep.subr.mxu0 0.0
  %3706 = vmatpush1.msra.mxu0 0.0
  %3707 = vmatprep.subr.mxu0 0.0
  %3708 = vmatpush1.msra.mxu0 0.0
  %3709 = vmatprep.subr.mxu0 0.0
  %3710 = vmatpush1.msra.mxu0 0.0
  %3711 = vmatprep.subr.mxu0 0.0
  %3712 = vmatpush1.msra.mxu0 0.0
  %3713 = vmatprep.mubr.f32.mxu0 0.0
  %3714 = vmatmul.mubr.f32.gmra.mrb[0].mxu0 %v3570
  %v3715 = vpop.f32.mrb[0].mxu0
  %v3716 = vadd.f32 0.0, %v3715
  %v3717 = vpop.f32.mrb[0].mxu0
  %3718 = vdwg.mxu0
  %v3719 = vadd.f32 %v3556, %v3645
  %v3720 = vadd.f32 %v3557, %v3647
  %v3721 = vadd.f32 %v3558, %v3716
  %3722 = vrot.lane.b32.xlu0 %v455, 48
  %v3723 = vpop.permute.xlu0 %3722
  %3724 = vrot.lane.b32.xlu0 %v167, 90
  %v3725 = vpop.permute.xlu0 %3724
  %3726 = vrot.lane.b32.xlu0 %v169, 90
  %v3727 = vpop.permute.xlu0 %3726
  %3728 = vrot.lane.b32.xlu0 %v238, 90
  %v3729 = vpop.permute.xlu0 %3728
  %vm3730 = vcmask 736256
  %v3731 = vsel %vm3730, %v3725, %v3727
  %v3732 = vsel %vm3730, %v3727, %v3729
  %v3733 = vsel %vm461, %v3723, 0
  %v3735 = vsel %vm464, %v3731, 0
  %v3737 = vsel %vm464, %v3732, 0
  %v3739 = vsel %vm464, %v3729, 0
  %3741 = vmatprep.subr.mxu0 %v3737
  %3742 = vmatpush1.msra.mxu0 %v3735
  %3743 = vmatprep.subr.mxu0 0.0
  %3744 = vmatpush1.msra.mxu0 0.0
  %3745 = vmatprep.subr.mxu0 0.0
  %3746 = vmatpush1.msra.mxu0 0.0
  %3747 = vmatprep.subr.mxu0 0.0
  %3748 = vmatpush1.msra.mxu0 0.0
  %3749 = vmatprep.subr.mxu0 0.0
  %3750 = vmatpush1.msra.mxu0 0.0
  %3751 = vmatprep.subr.mxu0 0.0
  %3752 = vmatpush1.msra.mxu0 0.0
  %3753 = vmatprep.subr.mxu0 0.0
  %3754 = vmatpush1.msra.mxu0 0.0
  %3755 = vmatprep.subr.mxu0 0.0
  %3756 = vmatpush1.msra.mxu0 0.0
  %3757 = vmatprep.subr.mxu0 0.0
  %3758 = vmatpush1.msra.mxu0 0.0
  %3759 = vmatprep.subr.mxu0 0.0
  %3760 = vmatpush1.msra.mxu0 0.0
  %3761 = vmatprep.subr.mxu0 0.0
  %3762 = vmatpush1.msra.mxu0 0.0
  %3763 = vmatprep.subr.mxu0 0.0
  %3764 = vmatpush1.msra.mxu0 0.0
  %3765 = vmatprep.subr.mxu0 0.0
  %3766 = vmatpush1.msra.mxu0 0.0
  %3767 = vmatprep.subr.mxu0 0.0
  %3768 = vmatpush1.msra.mxu0 0.0
  %3769 = vmatprep.subr.mxu0 0.0
  %3770 = vmatpush1.msra.mxu0 0.0
  %3771 = vmatprep.subr.mxu0 0.0
  %3772 = vmatpush1.msra.mxu0 0.0
  %3773 = vmatprep.subr.mxu0 0.0
  %3774 = vmatpush1.msra.mxu0 0.0
  %3775 = vmatprep.subr.mxu0 0.0
  %3776 = vmatpush1.msra.mxu0 0.0
  %3777 = vmatprep.subr.mxu0 0.0
  %3778 = vmatpush1.msra.mxu0 0.0
  %3779 = vmatprep.subr.mxu0 0.0
  %3780 = vmatpush1.msra.mxu0 0.0
  %3781 = vmatprep.subr.mxu0 0.0
  %3782 = vmatpush1.msra.mxu0 0.0
  %3783 = vmatprep.subr.mxu0 0.0
  %3784 = vmatpush1.msra.mxu0 0.0
  %3785 = vmatprep.subr.mxu0 0.0
  %3786 = vmatpush1.msra.mxu0 0.0
  %3787 = vmatprep.subr.mxu0 0.0
  %3788 = vmatpush1.msra.mxu0 0.0
  %3789 = vmatprep.subr.mxu0 0.0
  %3790 = vmatpush1.msra.mxu0 0.0
  %3791 = vmatprep.subr.mxu0 0.0
  %3792 = vmatpush1.msra.mxu0 0.0
  %3793 = vmatprep.subr.mxu0 0.0
  %3794 = vmatpush1.msra.mxu0 0.0
  %3795 = vmatprep.subr.mxu0 0.0
  %3796 = vmatpush1.msra.mxu0 0.0
  %3797 = vmatprep.subr.mxu0 0.0
  %3798 = vmatpush1.msra.mxu0 0.0
  %3799 = vmatprep.subr.mxu0 0.0
  %3800 = vmatpush1.msra.mxu0 0.0
  %3801 = vmatprep.subr.mxu0 0.0
  %3802 = vmatpush1.msra.mxu0 0.0
  %3803 = vmatprep.subr.mxu0 0.0
  %3804 = vmatpush1.msra.mxu0 0.0
  %3805 = vmatprep.mubr.f32.mxu0 0.0
  %3806 = vmatmul.mubr.f32.gmra.mrb[0].mxu0 %v3733
  %v3807 = vpop.f32.mrb[0].mxu0
  %v3808 = vadd.f32 0.0, %v3807
  %v3809 = vpop.f32.mrb[0].mxu0
  %v3810 = vadd.f32 0.0, %v3809
  %3811 = vdwg.mxu0
  %3812 = vmatprep.subr.mxu0 0.0
  %3813 = vmatpush1.msra.mxu0 %v3739
  %3814 = vmatprep.subr.mxu0 0.0
  %3815 = vmatpush1.msra.mxu0 0.0
  %3816 = vmatprep.subr.mxu0 0.0
  %3817 = vmatpush1.msra.mxu0 0.0
  %3818 = vmatprep.subr.mxu0 0.0
  %3819 = vmatpush1.msra.mxu0 0.0
  %3820 = vmatprep.subr.mxu0 0.0
  %3821 = vmatpush1.msra.mxu0 0.0
  %3822 = vmatprep.subr.mxu0 0.0
  %3823 = vmatpush1.msra.mxu0 0.0
  %3824 = vmatprep.subr.mxu0 0.0
  %3825 = vmatpush1.msra.mxu0 0.0
  %3826 = vmatprep.subr.mxu0 0.0
  %3827 = vmatpush1.msra.mxu0 0.0
  %3828 = vmatprep.subr.mxu0 0.0
  %3829 = vmatpush1.msra.mxu0 0.0
  %3830 = vmatprep.subr.mxu0 0.0
  %3831 = vmatpush1.msra.mxu0 0.0
  %3832 = vmatprep.subr.mxu0 0.0
  %3833 = vmatpush1.msra.mxu0 0.0
  %3834 = vmatprep.subr.mxu0 0.0
  %3835 = vmatpush1.msra.mxu0 0.0
  %3836 = vmatprep.subr.mxu0 0.0
  %3837 = vmatpush1.msra.mxu0 0.0
  %3838 = vmatprep.subr.mxu0 0.0
  %3839 = vmatpush1.msra.mxu0 0.0
  %3840 = vmatprep.subr.mxu0 0.0
  %3841 = vmatpush1.msra.mxu0 0.0
  %3842 = vmatprep.subr.mxu0 0.0
  %3843 = vmatpush1.msra.mxu0 0.0
  %3844 = vmatprep.subr.mxu0 0.0
  %3845 = vmatpush1.msra.mxu0 0.0
  %3846 = vmatprep.subr.mxu0 0.0
  %3847 = vmatpush1.msra.mxu0 0.0
  %3848 = vmatprep.subr.mxu0 0.0
  %3849 = vmatpush1.msra.mxu0 0.0
  %3850 = vmatprep.subr.mxu0 0.0
  %3851 = vmatpush1.msra.mxu0 0.0
  %3852 = vmatprep.subr.mxu0 0.0
  %3853 = vmatpush1.msra.mxu0 0.0
  %3854 = vmatprep.subr.mxu0 0.0
  %3855 = vmatpush1.msra.mxu0 0.0
  %3856 = vmatprep.subr.mxu0 0.0
  %3857 = vmatpush1.msra.mxu0 0.0
  %3858 = vmatprep.subr.mxu0 0.0
  %3859 = vmatpush1.msra.mxu0 0.0
  %3860 = vmatprep.subr.mxu0 0.0
  %3861 = vmatpush1.msra.mxu0 0.0
  %3862 = vmatprep.subr.mxu0 0.0
  %3863 = vmatpush1.msra.mxu0 0.0
  %3864 = vmatprep.subr.mxu0 0.0
  %3865 = vmatpush1.msra.mxu0 0.0
  %3866 = vmatprep.subr.mxu0 0.0
  %3867 = vmatpush1.msra.mxu0 0.0
  %3868 = vmatprep.subr.mxu0 0.0
  %3869 = vmatpush1.msra.mxu0 0.0
  %3870 = vmatprep.subr.mxu0 0.0
  %3871 = vmatpush1.msra.mxu0 0.0
  %3872 = vmatprep.subr.mxu0 0.0
  %3873 = vmatpush1.msra.mxu0 0.0
  %3874 = vmatprep.subr.mxu0 0.0
  %3875 = vmatpush1.msra.mxu0 0.0
  %3876 = vmatprep.mubr.f32.mxu0 0.0
  %3877 = vmatmul.mubr.f32.gmra.mrb[0].mxu0 %v3733
  %v3878 = vpop.f32.mrb[0].mxu0
  %v3879 = vadd.f32 0.0, %v3878
  %v3880 = vpop.f32.mrb[0].mxu0
  %3881 = vdwg.mxu0
  %v3882 = vadd.f32 %v3719, %v3808
  %v3883 = vadd.f32 %v3720, %v3810
  %v3884 = vadd.f32 %v3721, %v3879
  %3885 = vrot.lane.b32.xlu0 %v455, 44
  %v3886 = vpop.permute.xlu0 %3885
  %3887 = vrot.lane.b32.xlu0 %v238, 21
  %v3888 = vpop.permute.xlu0 %3887
  %3889 = vrot.lane.b32.xlu0 %v240, 21
  %v3890 = vpop.permute.xlu0 %3889
  %3891 = vrot.lane.b32.xlu0 %v309, 21
  %v3892 = vpop.permute.xlu0 %3891
  %3893 = vrot.lane.b32.xlu0 %v311, 21
  %v3894 = vpop.permute.xlu0 %3893
  %vm3895 = vcmask 171008
  %v3896 = vsel %vm3895, %v3888, %v3890
  %v3897 = vsel %vm3895, %v3890, %v3892
  %v3898 = vsel %vm3895, %v3892, %v3894
  %v3899 = vsel %vm461, %v3886, 0
  %v3901 = vsel %vm464, %v3896, 0
  %v3903 = vsel %vm464, %v3897, 0
  %v3905 = vsel %vm464, %v3898, 0
  %3907 = vmatprep.subr.mxu0 %v3903
  %3908 = vmatpush1.msra.mxu0 %v3901
  %3909 = vmatprep.subr.mxu0 0.0
  %3910 = vmatpush1.msra.mxu0 0.0
  %3911 = vmatprep.subr.mxu0 0.0
  %3912 = vmatpush1.msra.mxu0 0.0
  %3913 = vmatprep.subr.mxu0 0.0
  %3914 = vmatpush1.msra.mxu0 0.0
  %3915 = vmatprep.subr.mxu0 0.0
  %3916 = vmatpush1.msra.mxu0 0.0
  %3917 = vmatprep.subr.mxu0 0.0
  %3918 = vmatpush1.msra.mxu0 0.0
  %3919 = vmatprep.subr.mxu0 0.0
  %3920 = vmatpush1.msra.mxu0 0.0
  %3921 = vmatprep.subr.mxu0 0.0
  %3922 = vmatpush1.msra.mxu0 0.0
  %3923 = vmatprep.subr.mxu0 0.0
  %3924 = vmatpush1.msra.mxu0 0.0
  %3925 = vmatprep.subr.mxu0 0.0
  %3926 = vmatpush1.msra.mxu0 0.0
  %3927 = vmatprep.subr.mxu0 0.0
  %3928 = vmatpush1.msra.mxu0 0.0
  %3929 = vmatprep.subr.mxu0 0.0
  %3930 = vmatpush1.msra.mxu0 0.0
  %3931 = vmatprep.subr.mxu0 0.0
  %3932 = vmatpush1.msra.mxu0 0.0
  %3933 = vmatprep.subr.mxu0 0.0
  %3934 = vmatpush1.msra.mxu0 0.0
  %3935 = vmatprep.subr.mxu0 0.0
  %3936 = vmatpush1.msra.mxu0 0.0
  %3937 = vmatprep.subr.mxu0 0.0
  %3938 = vmatpush1.msra.mxu0 0.0
  %3939 = vmatprep.subr.mxu0 0.0
  %3940 = vmatpush1.msra.mxu0 0.0
  %3941 = vmatprep.subr.mxu0 0.0
  %3942 = vmatpush1.msra.mxu0 0.0
  %3943 = vmatprep.subr.mxu0 0.0
  %3944 = vmatpush1.msra.mxu0 0.0
  %3945 = vmatprep.subr.mxu0 0.0
  %3946 = vmatpush1.msra.mxu0 0.0
  %3947 = vmatprep.subr.mxu0 0.0
  %3948 = vmatpush1.msra.mxu0 0.0
  %3949 = vmatprep.subr.mxu0 0.0
  %3950 = vmatpush1.msra.mxu0 0.0
  %3951 = vmatprep.subr.mxu0 0.0
  %3952 = vmatpush1.msra.mxu0 0.0
  %3953 = vmatprep.subr.mxu0 0.0
  %3954 = vmatpush1.msra.mxu0 0.0
  %3955 = vmatprep.subr.mxu0 0.0
  %3956 = vmatpush1.msra.mxu0 0.0
  %3957 = vmatprep.subr.mxu0 0.0
  %3958 = vmatpush1.msra.mxu0 0.0
  %3959 = vmatprep.subr.mxu0 0.0
  %3960 = vmatpush1.msra.mxu0 0.0
  %3961 = vmatprep.subr.mxu0 0.0
  %3962 = vmatpush1.msra.mxu0 0.0
  %3963 = vmatprep.subr.mxu0 0.0
  %3964 = vmatpush1.msra.mxu0 0.0
  %3965 = vmatprep.subr.mxu0 0.0
  %3966 = vmatpush1.msra.mxu0 0.0
  %3967 = vmatprep.subr.mxu0 0.0
  %3968 = vmatpush1.msra.mxu0 0.0
  %3969 = vmatprep.subr.mxu0 0.0
  %3970 = vmatpush1.msra.mxu0 0.0
  %3971 = vmatprep.mubr.f32.mxu0 0.0
  %3972 = vmatmul.mubr.f32.gmra.mrb[0].mxu0 %v3899
  %v3973 = vpop.f32.mrb[0].mxu0
  %v3974 = vadd.f32 0.0, %v3973
  %v3975 = vpop.f32.mrb[0].mxu0
  %v3976 = vadd.f32 0.0, %v3975
  %3977 = vdwg.mxu0
  %3978 = vmatprep.subr.mxu0 0.0
  %3979 = vmatpush1.msra.mxu0 %v3905
  %3980 = vmatprep.subr.mxu0 0.0
  %3981 = vmatpush1.msra.mxu0 0.0
  %3982 = vmatprep.subr.mxu0 0.0
  %3983 = vmatpush1.msra.mxu0 0.0
  %3984 = vmatprep.subr.mxu0 0.0
  %3985 = vmatpush1.msra.mxu0 0.0
  %3986 = vmatprep.subr.mxu0 0.0
  %3987 = vmatpush1.msra.mxu0 0.0
  %3988 = vmatprep.subr.mxu0 0.0
  %3989 = vmatpush1.msra.mxu0 0.0
  %3990 = vmatprep.subr.mxu0 0.0
  %3991 = vmatpush1.msra.mxu0 0.0
  %3992 = vmatprep.subr.mxu0 0.0
  %3993 = vmatpush1.msra.mxu0 0.0
  %3994 = vmatprep.subr.mxu0 0.0
  %3995 = vmatpush1.msra.mxu0 0.0
  %3996 = vmatprep.subr.mxu0 0.0
  %3997 = vmatpush1.msra.mxu0 0.0
  %3998 = vmatprep.subr.mxu0 0.0
  %3999 = vmatpush1.msra.mxu0 0.0
  %4000 = vmatprep.subr.mxu0 0.0
  %4001 = vmatpush1.msra.mxu0 0.0
  %4002 = vmatprep.subr.mxu0 0.0
  %4003 = vmatpush1.msra.mxu0 0.0
  %4004 = vmatprep.subr.mxu0 0.0
  %4005 = vmatpush1.msra.mxu0 0.0
  %4006 = vmatprep.subr.mxu0 0.0
  %4007 = vmatpush1.msra.mxu0 0.0
  %4008 = vmatprep.subr.mxu0 0.0
  %4009 = vmatpush1.msra.mxu0 0.0
  %4010 = vmatprep.subr.mxu0 0.0
  %4011 = vmatpush1.msra.mxu0 0.0
  %4012 = vmatprep.subr.mxu0 0.0
  %4013 = vmatpush1.msra.mxu0 0.0
  %4014 = vmatprep.subr.mxu0 0.0
  %4015 = vmatpush1.msra.mxu0 0.0
  %4016 = vmatprep.subr.mxu0 0.0
  %4017 = vmatpush1.msra.mxu0 0.0
  %4018 = vmatprep.subr.mxu0 0.0
  %4019 = vmatpush1.msra.mxu0 0.0
  %4020 = vmatprep.subr.mxu0 0.0
  %4021 = vmatpush1.msra.mxu0 0.0
  %4022 = vmatprep.subr.mxu0 0.0
  %4023 = vmatpush1.msra.mxu0 0.0
  %4024 = vmatprep.subr.mxu0 0.0
  %4025 = vmatpush1.msra.mxu0 0.0
  %4026 = vmatprep.subr.mxu0 0.0
  %4027 = vmatpush1.msra.mxu0 0.0
  %4028 = vmatprep.subr.mxu0 0.0
  %4029 = vmatpush1.msra.mxu0 0.0
  %4030 = vmatprep.subr.mxu0 0.0
  %4031 = vmatpush1.msra.mxu0 0.0
  %4032 = vmatprep.subr.mxu0 0.0
  %4033 = vmatpush1.msra.mxu0 0.0
  %4034 = vmatprep.subr.mxu0 0.0
  %4035 = vmatpush1.msra.mxu0 0.0
  %4036 = vmatprep.subr.mxu0 0.0
  %4037 = vmatpush1.msra.mxu0 0.0
  %4038 = vmatprep.subr.mxu0 0.0
  %4039 = vmatpush1.msra.mxu0 0.0
  %4040 = vmatprep.subr.mxu0 0.0
  %4041 = vmatpush1.msra.mxu0 0.0
  %4042 = vmatprep.mubr.f32.mxu0 0.0
  %4043 = vmatmul.mubr.f32.gmra.mrb[0].mxu0 %v3899
  %v4044 = vpop.f32.mrb[0].mxu0
  %v4045 = vadd.f32 0.0, %v4044
  %v4046 = vpop.f32.mrb[0].mxu0
  %4047 = vdwg.mxu0
  %v4048 = vadd.f32 %v3882, %v3974
  %v4049 = vadd.f32 %v3883, %v3976
  %v4050 = vadd.f32 %v3884, %v4045
  %4051 = vrot.lane.b32.xlu0 %v455, 40
  %v4052 = vpop.permute.xlu0 %4051
  %4053 = vrot.lane.b32.xlu0 %v167, 89
  %v4054 = vpop.permute.xlu0 %4053
  %4055 = vrot.lane.b32.xlu0 %v169, 89
  %v4056 = vpop.permute.xlu0 %4055
  %4057 = vrot.lane.b32.xlu0 %v238, 89
  %v4058 = vpop.permute.xlu0 %4057
  %vm4059 = vcmask 728064
  %v4060 = vsel %vm4059, %v4054, %v4056
  %v4061 = vsel %vm4059, %v4056, %v4058
  %v4062 = vsel %vm461, %v4052, 0
  %v4064 = vsel %vm464, %v4060, 0
  %v4066 = vsel %vm464, %v4061, 0
  %v4068 = vsel %vm464, %v4058, 0
  %4070 = vmatprep.subr.mxu0 %v4066
  %4071 = vmatpush1.msra.mxu0 %v4064
  %4072 = vmatprep.subr.mxu0 0.0
  %4073 = vmatpush1.msra.mxu0 0.0
  %4074 = vmatprep.subr.mxu0 0.0
  %4075 = vmatpush1.msra.mxu0 0.0
  %4076 = vmatprep.subr.mxu0 0.0
  %4077 = vmatpush1.msra.mxu0 0.0
  %4078 = vmatprep.subr.mxu0 0.0
  %4079 = vmatpush1.msra.mxu0 0.0
  %4080 = vmatprep.subr.mxu0 0.0
  %4081 = vmatpush1.msra.mxu0 0.0
  %4082 = vmatprep.subr.mxu0 0.0
  %4083 = vmatpush1.msra.mxu0 0.0
  %4084 = vmatprep.subr.mxu0 0.0
  %4085 = vmatpush1.msra.mxu0 0.0
  %4086 = vmatprep.subr.mxu0 0.0
  %4087 = vmatpush1.msra.mxu0 0.0
  %4088 = vmatprep.subr.mxu0 0.0
  %4089 = vmatpush1.msra.mxu0 0.0
  %4090 = vmatprep.subr.mxu0 0.0
  %4091 = vmatpush1.msra.mxu0 0.0
  %4092 = vmatprep.subr.mxu0 0.0
  %4093 = vmatpush1.msra.mxu0 0.0
  %4094 = vmatprep.subr.mxu0 0.0
  %4095 = vmatpush1.msra.mxu0 0.0
  %4096 = vmatprep.subr.mxu0 0.0
  %4097 = vmatpush1.msra.mxu0 0.0
  %4098 = vmatprep.subr.mxu0 0.0
  %4099 = vmatpush1.msra.mxu0 0.0
  %4100 = vmatprep.subr.mxu0 0.0
  %4101 = vmatpush1.msra.mxu0 0.0
  %4102 = vmatprep.subr.mxu0 0.0
  %4103 = vmatpush1.msra.mxu0 0.0
  %4104 = vmatprep.subr.mxu0 0.0
  %4105 = vmatpush1.msra.mxu0 0.0
  %4106 = vmatprep.subr.mxu0 0.0
  %4107 = vmatpush1.msra.mxu0 0.0
  %4108 = vmatprep.subr.mxu0 0.0
  %4109 = vmatpush1.msra.mxu0 0.0
  %4110 = vmatprep.subr.mxu0 0.0
  %4111 = vmatpush1.msra.mxu0 0.0
  %4112 = vmatprep.subr.mxu0 0.0
  %4113 = vmatpush1.msra.mxu0 0.0
  %4114 = vmatprep.subr.mxu0 0.0
  %4115 = vmatpush1.msra.mxu0 0.0
  %4116 = vmatprep.subr.mxu0 0.0
  %4117 = vmatpush1.msra.mxu0 0.0
  %4118 = vmatprep.subr.mxu0 0.0
  %4119 = vmatpush1.msra.mxu0 0.0
  %4120 = vmatprep.subr.mxu0 0.0
  %4121 = vmatpush1.msra.mxu0 0.0
  %4122 = vmatprep.subr.mxu0 0.0
  %4123 = vmatpush1.msra.mxu0 0.0
  %4124 = vmatprep.subr.mxu0 0.0
  %4125 = vmatpush1.msra.mxu0 0.0
  %4126 = vmatprep.subr.mxu0 0.0
  %4127 = vmatpush1.msra.mxu0 0.0
  %4128 = vmatprep.subr.mxu0 0.0
  %4129 = vmatpush1.msra.mxu0 0.0
  %4130 = vmatprep.subr.mxu0 0.0
  %4131 = vmatpush1.msra.mxu0 0.0
  %4132 = vmatprep.subr.mxu0 0.0
  %4133 = vmatpush1.msra.mxu0 0.0
  %4134 = vmatprep.mubr.f32.mxu0 0.0
  %4135 = vmatmul.mubr.f32.gmra.mrb[0].mxu0 %v4062
  %v4136 = vpop.f32.mrb[0].mxu0
  %v4137 = vadd.f32 0.0, %v4136
  %v4138 = vpop.f32.mrb[0].mxu0
  %v4139 = vadd.f32 0.0, %v4138
  %4140 = vdwg.mxu0
  %4141 = vmatprep.subr.mxu0 0.0
  %4142 = vmatpush1.msra.mxu0 %v4068
  %4143 = vmatprep.subr.mxu0 0.0
  %4144 = vmatpush1.msra.mxu0 0.0
  %4145 = vmatprep.subr.mxu0 0.0
  %4146 = vmatpush1.msra.mxu0 0.0
  %4147 = vmatprep.subr.mxu0 0.0
  %4148 = vmatpush1.msra.mxu0 0.0
  %4149 = vmatprep.subr.mxu0 0.0
  %4150 = vmatpush1.msra.mxu0 0.0
  %4151 = vmatprep.subr.mxu0 0.0
  %4152 = vmatpush1.msra.mxu0 0.0
  %4153 = vmatprep.subr.mxu0 0.0
  %4154 = vmatpush1.msra.mxu0 0.0
  %4155 = vmatprep.subr.mxu0 0.0
  %4156 = vmatpush1.msra.mxu0 0.0
  %4157 = vmatprep.subr.mxu0 0.0
  %4158 = vmatpush1.msra.mxu0 0.0
  %4159 = vmatprep.subr.mxu0 0.0
  %4160 = vmatpush1.msra.mxu0 0.0
  %4161 = vmatprep.subr.mxu0 0.0
  %4162 = vmatpush1.msra.mxu0 0.0
  %4163 = vmatprep.subr.mxu0 0.0
  %4164 = vmatpush1.msra.mxu0 0.0
  %4165 = vmatprep.subr.mxu0 0.0
  %4166 = vmatpush1.msra.mxu0 0.0
  %4167 = vmatprep.subr.mxu0 0.0
  %4168 = vmatpush1.msra.mxu0 0.0
  %4169 = vmatprep.subr.mxu0 0.0
  %4170 = vmatpush1.msra.mxu0 0.0
  %4171 = vmatprep.subr.mxu0 0.0
  %4172 = vmatpush1.msra.mxu0 0.0
  %4173 = vmatprep.subr.mxu0 0.0
  %4174 = vmatpush1.msra.mxu0 0.0
  %4175 = vmatprep.subr.mxu0 0.0
  %4176 = vmatpush1.msra.mxu0 0.0
  %4177 = vmatprep.subr.mxu0 0.0
  %4178 = vmatpush1.msra.mxu0 0.0
  %4179 = vmatprep.subr.mxu0 0.0
  %4180 = vmatpush1.msra.mxu0 0.0
  %4181 = vmatprep.subr.mxu0 0.0
  %4182 = vmatpush1.msra.mxu0 0.0
  %4183 = vmatprep.subr.mxu0 0.0
  %4184 = vmatpush1.msra.mxu0 0.0
  %4185 = vmatprep.subr.mxu0 0.0
  %4186 = vmatpush1.msra.mxu0 0.0
  %4187 = vmatprep.subr.mxu0 0.0
  %4188 = vmatpush1.msra.mxu0 0.0
  %4189 = vmatprep.subr.mxu0 0.0
  %4190 = vmatpush1.msra.mxu0 0.0
  %4191 = vmatprep.subr.mxu0 0.0
  %4192 = vmatpush1.msra.mxu0 0.0
  %4193 = vmatprep.subr.mxu0 0.0
  %4194 = vmatpush1.msra.mxu0 0.0
  %4195 = vmatprep.subr.mxu0 0.0
  %4196 = vmatpush1.msra.mxu0 0.0
  %4197 = vmatprep.subr.mxu0 0.0
  %4198 = vmatpush1.msra.mxu0 0.0
  %4199 = vmatprep.subr.mxu0 0.0
  %4200 = vmatpush1.msra.mxu0 0.0
  %4201 = vmatprep.subr.mxu0 0.0
  %4202 = vmatpush1.msra.mxu0 0.0
  %4203 = vmatprep.subr.mxu0 0.0
  %4204 = vmatpush1.msra.mxu0 0.0
  %4205 = vmatprep.mubr.f32.mxu0 0.0
  %4206 = vmatmul.mubr.f32.gmra.mrb[0].mxu0 %v4062
  %v4207 = vpop.f32.mrb[0].mxu0
  %v4208 = vadd.f32 0.0, %v4207
  %v4209 = vpop.f32.mrb[0].mxu0
  %4210 = vdwg.mxu0
  %v4211 = vadd.f32 %v4048, %v4137
  %v4212 = vadd.f32 %v4049, %v4139
  %v4213 = vadd.f32 %v4050, %v4208
  %4214 = vrot.lane.b32.xlu0 %v455, 36
  %v4215 = vpop.permute.xlu0 %4214
  %4216 = vrot.lane.b32.xlu0 %v238, 20
  %v4217 = vpop.permute.xlu0 %4216
  %4218 = vrot.lane.b32.xlu0 %v240, 20
  %v4219 = vpop.permute.xlu0 %4218
  %4220 = vrot.lane.b32.xlu0 %v309, 20
  %v4221 = vpop.permute.xlu0 %4220
  %4222 = vrot.lane.b32.xlu0 %v311, 20
  %v4223 = vpop.permute.xlu0 %4222
  %vm4224 = vcmask 162816
  %v4225 = vsel %vm4224, %v4217, %v4219
  %v4226 = vsel %vm4224, %v4219, %v4221
  %v4227 = vsel %vm4224, %v4221, %v4223
  %v4228 = vsel %vm461, %v4215, 0
  %v4230 = vsel %vm464, %v4225, 0
  %v4232 = vsel %vm464, %v4226, 0
  %v4234 = vsel %vm464, %v4227, 0
  %4236 = vmatprep.subr.mxu0 %v4232
  %4237 = vmatpush1.msra.mxu0 %v4230
  %4238 = vmatprep.subr.mxu0 0.0
  %4239 = vmatpush1.msra.mxu0 0.0
  %4240 = vmatprep.subr.mxu0 0.0
  %4241 = vmatpush1.msra.mxu0 0.0
  %4242 = vmatprep.subr.mxu0 0.0
  %4243 = vmatpush1.msra.mxu0 0.0
  %4244 = vmatprep.subr.mxu0 0.0
  %4245 = vmatpush1.msra.mxu0 0.0
  %4246 = vmatprep.subr.mxu0 0.0
  %4247 = vmatpush1.msra.mxu0 0.0
  %4248 = vmatprep.subr.mxu0 0.0
  %4249 = vmatpush1.msra.mxu0 0.0
  %4250 = vmatprep.subr.mxu0 0.0
  %4251 = vmatpush1.msra.mxu0 0.0
  %4252 = vmatprep.subr.mxu0 0.0
  %4253 = vmatpush1.msra.mxu0 0.0
  %4254 = vmatprep.subr.mxu0 0.0
  %4255 = vmatpush1.msra.mxu0 0.0
  %4256 = vmatprep.subr.mxu0 0.0
  %4257 = vmatpush1.msra.mxu0 0.0
  %4258 = vmatprep.subr.mxu0 0.0
  %4259 = vmatpush1.msra.mxu0 0.0
  %4260 = vmatprep.subr.mxu0 0.0
  %4261 = vmatpush1.msra.mxu0 0.0
  %4262 = vmatprep.subr.mxu0 0.0
  %4263 = vmatpush1.msra.mxu0 0.0
  %4264 = vmatprep.subr.mxu0 0.0
  %4265 = vmatpush1.msra.mxu0 0.0
  %4266 = vmatprep.subr.mxu0 0.0
  %4267 = vmatpush1.msra.mxu0 0.0
  %4268 = vmatprep.subr.mxu0 0.0
  %4269 = vmatpush1.msra.mxu0 0.0
  %4270 = vmatprep.subr.mxu0 0.0
  %4271 = vmatpush1.msra.mxu0 0.0
  %4272 = vmatprep.subr.mxu0 0.0
  %4273 = vmatpush1.msra.mxu0 0.0
  %4274 = vmatprep.subr.mxu0 0.0
  %4275 = vmatpush1.msra.mxu0 0.0
  %4276 = vmatprep.subr.mxu0 0.0
  %4277 = vmatpush1.msra.mxu0 0.0
  %4278 = vmatprep.subr.mxu0 0.0
  %4279 = vmatpush1.msra.mxu0 0.0
  %4280 = vmatprep.subr.mxu0 0.0
  %4281 = vmatpush1.msra.mxu0 0.0
  %4282 = vmatprep.subr.mxu0 0.0
  %4283 = vmatpush1.msra.mxu0 0.0
  %4284 = vmatprep.subr.mxu0 0.0
  %4285 = vmatpush1.msra.mxu0 0.0
  %4286 = vmatprep.subr.mxu0 0.0
  %4287 = vmatpush1.msra.mxu0 0.0
  %4288 = vmatprep.subr.mxu0 0.0
  %4289 = vmatpush1.msra.mxu0 0.0
  %4290 = vmatprep.subr.mxu0 0.0
  %4291 = vmatpush1.msra.mxu0 0.0
  %4292 = vmatprep.subr.mxu0 0.0
  %4293 = vmatpush1.msra.mxu0 0.0
  %4294 = vmatprep.subr.mxu0 0.0
  %4295 = vmatpush1.msra.mxu0 0.0
  %4296 = vmatprep.subr.mxu0 0.0
  %4297 = vmatpush1.msra.mxu0 0.0
  %4298 = vmatprep.subr.mxu0 0.0
  %4299 = vmatpush1.msra.mxu0 0.0
  %4300 = vmatprep.mubr.f32.mxu0 0.0
  %4301 = vmatmul.mubr.f32.gmra.mrb[0].mxu0 %v4228
  %v4302 = vpop.f32.mrb[0].mxu0
  %v4303 = vadd.f32 0.0, %v4302
  %v4304 = vpop.f32.mrb[0].mxu0
  %v4305 = vadd.f32 0.0, %v4304
  %4306 = vdwg.mxu0
  %4307 = vmatprep.subr.mxu0 0.0
  %4308 = vmatpush1.msra.mxu0 %v4234
  %4309 = vmatprep.subr.mxu0 0.0
  %4310 = vmatpush1.msra.mxu0 0.0
  %4311 = vmatprep.subr.mxu0 0.0
  %4312 = vmatpush1.msra.mxu0 0.0
  %4313 = vmatprep.subr.mxu0 0.0
  %4314 = vmatpush1.msra.mxu0 0.0
  %4315 = vmatprep.subr.mxu0 0.0
  %4316 = vmatpush1.msra.mxu0 0.0
  %4317 = vmatprep.subr.mxu0 0.0
  %4318 = vmatpush1.msra.mxu0 0.0
  %4319 = vmatprep.subr.mxu0 0.0
  %4320 = vmatpush1.msra.mxu0 0.0
  %4321 = vmatprep.subr.mxu0 0.0
  %4322 = vmatpush1.msra.mxu0 0.0
  %4323 = vmatprep.subr.mxu0 0.0
  %4324 = vmatpush1.msra.mxu0 0.0
  %4325 = vmatprep.subr.mxu0 0.0
  %4326 = vmatpush1.msra.mxu0 0.0
  %4327 = vmatprep.subr.mxu0 0.0
  %4328 = vmatpush1.msra.mxu0 0.0
  %4329 = vmatprep.subr.mxu0 0.0
  %4330 = vmatpush1.msra.mxu0 0.0
  %4331 = vmatprep.subr.mxu0 0.0
  %4332 = vmatpush1.msra.mxu0 0.0
  %4333 = vmatprep.subr.mxu0 0.0
  %4334 = vmatpush1.msra.mxu0 0.0
  %4335 = vmatprep.subr.mxu0 0.0
  %4336 = vmatpush1.msra.mxu0 0.0
  %4337 = vmatprep.subr.mxu0 0.0
  %4338 = vmatpush1.msra.mxu0 0.0
  %4339 = vmatprep.subr.mxu0 0.0
  %4340 = vmatpush1.msra.mxu0 0.0
  %4341 = vmatprep.subr.mxu0 0.0
  %4342 = vmatpush1.msra.mxu0 0.0
  %4343 = vmatprep.subr.mxu0 0.0
  %4344 = vmatpush1.msra.mxu0 0.0
  %4345 = vmatprep.subr.mxu0 0.0
  %4346 = vmatpush1.msra.mxu0 0.0
  %4347 = vmatprep.subr.mxu0 0.0
  %4348 = vmatpush1.msra.mxu0 0.0
  %4349 = vmatprep.subr.mxu0 0.0
  %4350 = vmatpush1.msra.mxu0 0.0
  %4351 = vmatprep.subr.mxu0 0.0
  %4352 = vmatpush1.msra.mxu0 0.0
  %4353 = vmatprep.subr.mxu0 0.0
  %4354 = vmatpush1.msra.mxu0 0.0
  %4355 = vmatprep.subr.mxu0 0.0
  %4356 = vmatpush1.msra.mxu0 0.0
  %4357 = vmatprep.subr.mxu0 0.0
  %4358 = vmatpush1.msra.mxu0 0.0
  %4359 = vmatprep.subr.mxu0 0.0
  %4360 = vmatpush1.msra.mxu0 0.0
  %4361 = vmatprep.subr.mxu0 0.0
  %4362 = vmatpush1.msra.mxu0 0.0
  %4363 = vmatprep.subr.mxu0 0.0
  %4364 = vmatpush1.msra.mxu0 0.0
  %4365 = vmatprep.subr.mxu0 0.0
  %4366 = vmatpush1.msra.mxu0 0.0
  %4367 = vmatprep.subr.mxu0 0.0
  %4368 = vmatpush1.msra.mxu0 0.0
  %4369 = vmatprep.subr.mxu0 0.0
  %4370 = vmatpush1.msra.mxu0 0.0
  %4371 = vmatprep.mubr.f32.mxu0 0.0
  %4372 = vmatmul.mubr.f32.gmra.mrb[0].mxu0 %v4228
  %v4373 = vpop.f32.mrb[0].mxu0
  %v4374 = vadd.f32 0.0, %v4373
  %v4375 = vpop.f32.mrb[0].mxu0
  %4376 = vdwg.mxu0
  %v4377 = vadd.f32 %v4211, %v4303
  %v4378 = vadd.f32 %v4212, %v4305
  %v4379 = vadd.f32 %v4213, %v4374
  %4380 = vrot.lane.b32.xlu0 %v455, 32
  %v4381 = vpop.permute.xlu0 %4380
  %4382 = vrot.lane.b32.xlu0 %v167, 88
  %v4383 = vpop.permute.xlu0 %4382
  %4384 = vrot.lane.b32.xlu0 %v169, 88
  %v4385 = vpop.permute.xlu0 %4384
  %4386 = vrot.lane.b32.xlu0 %v238, 88
  %v4387 = vpop.permute.xlu0 %4386
  %vm4388 = vcmask 719872
  %v4389 = vsel %vm4388, %v4383, %v4385
  %v4390 = vsel %vm4388, %v4385, %v4387
  %v4391 = vsel %vm461, %v4381, 0
  %v4393 = vsel %vm464, %v4389, 0
  %v4395 = vsel %vm464, %v4390, 0
  %v4397 = vsel %vm464, %v4387, 0
  %4399 = vmatprep.subr.mxu0 %v4395
  %4400 = vmatpush1.msra.mxu0 %v4393
  %4401 = vmatprep.subr.mxu0 0.0
  %4402 = vmatpush1.msra.mxu0 0.0
  %4403 = vmatprep.subr.mxu0 0.0
  %4404 = vmatpush1.msra.mxu0 0.0
  %4405 = vmatprep.subr.mxu0 0.0
  %4406 = vmatpush1.msra.mxu0 0.0
  %4407 = vmatprep.subr.mxu0 0.0
  %4408 = vmatpush1.msra.mxu0 0.0
  %4409 = vmatprep.subr.mxu0 0.0
  %4410 = vmatpush1.msra.mxu0 0.0
  %4411 = vmatprep.subr.mxu0 0.0
  %4412 = vmatpush1.msra.mxu0 0.0
  %4413 = vmatprep.subr.mxu0 0.0
  %4414 = vmatpush1.msra.mxu0 0.0
  %4415 = vmatprep.subr.mxu0 0.0
  %4416 = vmatpush1.msra.mxu0 0.0
  %4417 = vmatprep.subr.mxu0 0.0
  %4418 = vmatpush1.msra.mxu0 0.0
  %4419 = vmatprep.subr.mxu0 0.0
  %4420 = vmatpush1.msra.mxu0 0.0
  %4421 = vmatprep.subr.mxu0 0.0
  %4422 = vmatpush1.msra.mxu0 0.0
  %4423 = vmatprep.subr.mxu0 0.0
  %4424 = vmatpush1.msra.mxu0 0.0
  %4425 = vmatprep.subr.mxu0 0.0
  %4426 = vmatpush1.msra.mxu0 0.0
  %4427 = vmatprep.subr.mxu0 0.0
  %4428 = vmatpush1.msra.mxu0 0.0
  %4429 = vmatprep.subr.mxu0 0.0
  %4430 = vmatpush1.msra.mxu0 0.0
  %4431 = vmatprep.subr.mxu0 0.0
  %4432 = vmatpush1.msra.mxu0 0.0
  %4433 = vmatprep.subr.mxu0 0.0
  %4434 = vmatpush1.msra.mxu0 0.0
  %4435 = vmatprep.subr.mxu0 0.0
  %4436 = vmatpush1.msra.mxu0 0.0
  %4437 = vmatprep.subr.mxu0 0.0
  %4438 = vmatpush1.msra.mxu0 0.0
  %4439 = vmatprep.subr.mxu0 0.0
  %4440 = vmatpush1.msra.mxu0 0.0
  %4441 = vmatprep.subr.mxu0 0.0
  %4442 = vmatpush1.msra.mxu0 0.0
  %4443 = vmatprep.subr.mxu0 0.0
  %4444 = vmatpush1.msra.mxu0 0.0
  %4445 = vmatprep.subr.mxu0 0.0
  %4446 = vmatpush1.msra.mxu0 0.0
  %4447 = vmatprep.subr.mxu0 0.0
  %4448 = vmatpush1.msra.mxu0 0.0
  %4449 = vmatprep.subr.mxu0 0.0
  %4450 = vmatpush1.msra.mxu0 0.0
  %4451 = vmatprep.subr.mxu0 0.0
  %4452 = vmatpush1.msra.mxu0 0.0
  %4453 = vmatprep.subr.mxu0 0.0
  %4454 = vmatpush1.msra.mxu0 0.0
  %4455 = vmatprep.subr.mxu0 0.0
  %4456 = vmatpush1.msra.mxu0 0.0
  %4457 = vmatprep.subr.mxu0 0.0
  %4458 = vmatpush1.msra.mxu0 0.0
  %4459 = vmatprep.subr.mxu0 0.0
  %4460 = vmatpush1.msra.mxu0 0.0
  %4461 = vmatprep.subr.mxu0 0.0
  %4462 = vmatpush1.msra.mxu0 0.0
  %4463 = vmatprep.mubr.f32.mxu0 0.0
  %4464 = vmatmul.mubr.f32.gmra.mrb[0].mxu0 %v4391
  %v4465 = vpop.f32.mrb[0].mxu0
  %v4466 = vadd.f32 0.0, %v4465
  %v4467 = vpop.f32.mrb[0].mxu0
  %v4468 = vadd.f32 0.0, %v4467
  %4469 = vdwg.mxu0
  %4470 = vmatprep.subr.mxu0 0.0
  %4471 = vmatpush1.msra.mxu0 %v4397
  %4472 = vmatprep.subr.mxu0 0.0
  %4473 = vmatpush1.msra.mxu0 0.0
  %4474 = vmatprep.subr.mxu0 0.0
  %4475 = vmatpush1.msra.mxu0 0.0
  %4476 = vmatprep.subr.mxu0 0.0
  %4477 = vmatpush1.msra.mxu0 0.0
  %4478 = vmatprep.subr.mxu0 0.0
  %4479 = vmatpush1.msra.mxu0 0.0
  %4480 = vmatprep.subr.mxu0 0.0
  %4481 = vmatpush1.msra.mxu0 0.0
  %4482 = vmatprep.subr.mxu0 0.0
  %4483 = vmatpush1.msra.mxu0 0.0
  %4484 = vmatprep.subr.mxu0 0.0
  %4485 = vmatpush1.msra.mxu0 0.0
  %4486 = vmatprep.subr.mxu0 0.0
  %4487 = vmatpush1.msra.mxu0 0.0
  %4488 = vmatprep.subr.mxu0 0.0
  %4489 = vmatpush1.msra.mxu0 0.0
  %4490 = vmatprep.subr.mxu0 0.0
  %4491 = vmatpush1.msra.mxu0 0.0
  %4492 = vmatprep.subr.mxu0 0.0
  %4493 = vmatpush1.msra.mxu0 0.0
  %4494 = vmatprep.subr.mxu0 0.0
  %4495 = vmatpush1.msra.mxu0 0.0
  %4496 = vmatprep.subr.mxu0 0.0
  %4497 = vmatpush1.msra.mxu0 0.0
  %4498 = vmatprep.subr.mxu0 0.0
  %4499 = vmatpush1.msra.mxu0 0.0
  %4500 = vmatprep.subr.mxu0 0.0
  %4501 = vmatpush1.msra.mxu0 0.0
  %4502 = vmatprep.subr.mxu0 0.0
  %4503 = vmatpush1.msra.mxu0 0.0
  %4504 = vmatprep.subr.mxu0 0.0
  %4505 = vmatpush1.msra.mxu0 0.0
  %4506 = vmatprep.subr.mxu0 0.0
  %4507 = vmatpush1.msra.mxu0 0.0
  %4508 = vmatprep.subr.mxu0 0.0
  %4509 = vmatpush1.msra.mxu0 0.0
  %4510 = vmatprep.subr.mxu0 0.0
  %4511 = vmatpush1.msra.mxu0 0.0
  %4512 = vmatprep.subr.mxu0 0.0
  %4513 = vmatpush1.msra.mxu0 0.0
  %4514 = vmatprep.subr.mxu0 0.0
  %4515 = vmatpush1.msra.mxu0 0.0
  %4516 = vmatprep.subr.mxu0 0.0
  %4517 = vmatpush1.msra.mxu0 0.0
  %4518 = vmatprep.subr.mxu0 0.0
  %4519 = vmatpush1.msra.mxu0 0.0
  %4520 = vmatprep.subr.mxu0 0.0
  %4521 = vmatpush1.msra.mxu0 0.0
  %4522 = vmatprep.subr.mxu0 0.0
  %4523 = vmatpush1.msra.mxu0 0.0
  %4524 = vmatprep.subr.mxu0 0.0
  %4525 = vmatpush1.msra.mxu0 0.0
  %4526 = vmatprep.subr.mxu0 0.0
  %4527 = vmatpush1.msra.mxu0 0.0
  %4528 = vmatprep.subr.mxu0 0.0
  %4529 = vmatpush1.msra.mxu0 0.0
  %4530 = vmatprep.subr.mxu0 0.0
  %4531 = vmatpush1.msra.mxu0 0.0
  %4532 = vmatprep.subr.mxu0 0.0
  %4533 = vmatpush1.msra.mxu0 0.0
  %4534 = vmatprep.mubr.f32.mxu0 0.0
  %4535 = vmatmul.mubr.f32.gmra.mrb[0].mxu0 %v4391
  %v4536 = vpop.f32.mrb[0].mxu0
  %v4537 = vadd.f32 0.0, %v4536
  %v4538 = vpop.f32.mrb[0].mxu0
  %4539 = vdwg.mxu0
  %v4540 = vadd.f32 %v4377, %v4466
  %v4541 = vadd.f32 %v4378, %v4468
  %v4542 = vadd.f32 %v4379, %v4537
  %v4545 = vcombine.low %v4540, %v4541
  %4547 = vst [vmem:[%s3] sm:$0xff] %v4545
  %vm4548 = vcmask 232448
  %4549 = vst.msk [vmem:[%s3 + $0x8] sm:$0xf] %vm4548, %v4542
  // Predicated region
  $region14: #{model_forward.1} parent=0 // pred_check
    _
  $region15: #{model_forward.1} parent=0 // pred_check_branch
    %4551 = sbr.rel (0) target = $region17
  $region16: #{model_forward.1} parent=0 // pred_region
    _
  $region17: #{model_forward.1} parent=0 // pred_fallthru
    _
  // Predicated region
  $region18: #{model_forward.1} parent=0 // pred_check
    _
  $region19: #{model_forward.1} parent=0 // pred_check_branch
    %4553 = sbr.rel (0) target = $region21
  $region20: #{model_forward.1} parent=0 // pred_region
    _
  $region21: #{model_forward.1} parent=0 // pred_fallthru
    _

</llo_original>
